<compile_context>
chip_gen: v7x
topology: tpu7x:2x2x1
jax: 0.10.0
libtpu: 0.0.40
codegen_flags: <defaults>
</compile_context>

<pallas_src>
import functools

import jax
import jax.numpy as jnp
from jax import lax
from jax.experimental import pallas as pl
from jax.experimental.pallas import tpu as pltpu


# ---------------------------------------------------------------------------
# Fused CSA kernel (one grid step == one batch tile)
# ---------------------------------------------------------------------------
def _csa_fused_kernel(x_ref, wsca_ref, bsca_ref, w0_ref, b0_ref, ws_ref,
                      bs_ref, w1_ref, b1_ref, o_ref, *, H, W):
    # Shapes (per grid step):
    #   x_ref / o_ref : (Bt, C, HW)  VMEM, lane-dense (HW on lanes, C on sublanes)
    #   wsca_ref      : (C, C)       VMEM  (C_out, C_in) 1x1-conv weight
    #   bsca_ref      : (C, 1)       VMEM
    #   w0/ws : (2, 25) SMEM ; b0/bs : (1, 2) SMEM ; w1 : (1, 2) ; b1 : (1, 1)
    Bt, C, HW = x_ref.shape
    xb = x_ref[...]                                            # (Bt, C, HW)

    # ---- "sca" branch: pool FIRST (lane reduce), then the tiny 1x1 channel
    #      mix in exact f32 on the VPU (C is small here).
    #      scale[b,o] = b_sca[o] + sum_i w_sca[o,i] * mean_hw(x)[b,i]
    pooled = jnp.mean(xb, axis=2, keepdims=True)               # (Bt, C, 1)
    wsca = wsca_ref[...]                                       # (C, C)
    scale = bsca_ref[...][None]                                # (1, C, 1)
    # TODO(synk): for large C (>~32) replace this unrolled VPU mix with an MXU
    # matvec jnp.dot(wsca, pooled[b]) (still O(C^2), never O(C^2*HW)).
    for i in range(C):
        scale = scale + wsca[:, i:i + 1][None] * pooled[:, i:i + 1, :]
    sca = xb * scale                                           # (Bt, C, HW)

    # ---- channel max / mean maps (sublane reduce; stays lane-dense) --------
    max_map = jnp.max(sca, axis=1, keepdims=True)              # (Bt, 1, HW)
    mean_map = jnp.mean(sca, axis=1, keepdims=True)            # (Bt, 1, HW)

    # ---- flat-layout depthwise 5x5 convs ------------------------------------
    # The two (H, W) spatial maps are kept flattened on the lane axis; each
    # conv tap is a lane rotation (XLU) plus a boundary mask (VPU), instead of
    # a windowed load from a padded VMEM scratch.  No narrow/masked stores.
    # TODO(synk): this path assumes HW is a multiple of 128 (true for the
    # intended spatial sizes); fall back to a padded-scratch conv otherwise.
    pos = lax.broadcasted_iota(jnp.int32, (1, 1, HW), 2)
    if (W & (W - 1)) == 0:                                     # power-of-two W
        px = pos & (W - 1)                                     # column index
        py = pos >> (W.bit_length() - 1)                       # row index
    else:
        px = pos % W
        py = pos // W

    def axis_mask(coord, off, extent):
        # float (1,1,HW) mask of positions where coord+off stays in [0, extent)
        if off == 0:
            return None
        if off > 0:
            cond = coord < (extent - off)
        else:
            cond = coord >= (-off)
        return jnp.where(cond, 1.0, 0.0)

    def roll_lanes(v, d):
        # y[..., p] = v[..., (p + d) % HW]   (np.roll semantics => shift = -d)
        sh = (-d) % HW
        if sh == 0:
            return v
        return pltpu.roll(v, sh, axis=2)

    def depthwise5x5(maps, w_ref, b_ref, offsets):
        # maps: [ch0, ch1] flat (Bt, 1, HW) images; depthwise (groups=2) 5x5.
        mxs = [axis_mask(px, o, W) for o in offsets]
        mys = [axis_mask(py, o, H) for o in offsets]
        acc = [None, None]
        for ky, oy in enumerate(offsets):
            for kx, ox in enumerate(offsets):
                m = mys[ky]
                if mxs[kx] is not None:
                    m = mxs[kx] if m is None else m * mxs[kx]
                d = oy * W + ox
                for c in range(2):
                    tap = roll_lanes(maps[c], d)
                    if m is not None:
                        tap = tap * m
                    term = w_ref[c, ky * 5 + kx] * tap
                    acc[c] = term if acc[c] is None else acc[c] + term
        return [acc[c] + b_ref[0, c] for c in range(2)]

    # conv0: 5x5, padding=2, groups=2  (offsets -2..2)
    c0 = depthwise5x5([max_map, mean_map], w0_ref, b0_ref, (-2, -1, 0, 1, 2))
    # conv_spatial: 5x5, dilation=3, padding=6, groups=2  (offsets -6,-3,0,3,6)
    cs = depthwise5x5(c0, ws_ref, bs_ref, (-6, -3, 0, 3, 6))

    # ---- conv1: 1x1 conv, 2 -> 1 channel ------------------------------------
    att = w1_ref[0, 0] * cs[0] + w1_ref[0, 1] * cs[1] + b1_ref[0, 0]  # (Bt,1,HW)

    # ---- out = att * sca : lane-dense VPU work and wide, unmasked stores ----
    o_ref[...] = att * sca


# ---------------------------------------------------------------------------
# Wrapper
# ---------------------------------------------------------------------------
def _pick_bt(B, C, HW):
    """Batch-tile size: divides B, keeps >=2 grid steps (two v7x TensorCores),
    and keeps double-buffered in+out blocks well under v7x's 64 MiB VMEM."""
    block_bytes = C * HW * 4
    budget = 16 * 1024 * 1024
    for bt in (8, 4, 2):
        if B % bt == 0 and B // bt >= 2 and 4 * bt * block_bytes <= budget:
            return bt
    return 1


def csa_forward(x, params, *, bt=None):
    B, C, H, W = x.shape
    HW = H * W
    if bt is None:
        bt = _pick_bt(B, C, HW)
    assert B % bt == 0, (B, bt)

    x_flat = x.reshape(B, C, HW)                 # NCHW is contiguous over HW: free
    w_sca = params["w_sca"].reshape(C, C)        # (C_out, C_in)
    b_sca = params["b_sca"].reshape(C, 1)
    w0_s = params["w0"].reshape(2, 25)
    b0_s = params["b0"].reshape(1, 2)
    ws_s = params["ws"].reshape(2, 25)
    bs_s = params["bs"].reshape(1, 2)
    w1_s = params["w1"].reshape(1, 2)
    b1_s = params["b1"].reshape(1, 1)

    smem = pl.BlockSpec(memory_space=pltpu.MemorySpace.SMEM)
    kernel = functools.partial(_csa_fused_kernel, H=H, W=W)

    # TODO(synk): for production shapes (C >= 256, HW >= 4096) add a C-tile grid
    # axis (accumulate channel max/sum into (Bt, 1, HW) scratch, finalize with
    # pl.when on the last tile) so a full (Bt, C, HW) slab need not fit VMEM
    # under v7x's 64 MiB ceiling.
    out_flat = pl.pallas_call(
        kernel,
        out_shape=jax.ShapeDtypeStruct((B, C, HW), jnp.float32),
        grid=(B // bt,),
        in_specs=[
            pl.BlockSpec((bt, C, HW), lambda b: (b, 0, 0)),   # x (lane-dense)
            # TODO(synk): pipeline_mode=pl.Buffered(1) on the constant-index
            # weight blocks would save one redundant VMEM buffer at large C.
            pl.BlockSpec((C, C), lambda b: (0, 0)),           # w_sca
            pl.BlockSpec((C, 1), lambda b: (0, 0)),           # b_sca
            smem,   # w0 (2, 25)
            smem,   # b0 (1, 2)
            smem,   # ws (2, 25)
            smem,   # bs (1, 2)
            smem,   # w1 (1, 2)
            smem,   # b1 (1, 1)
        ],
        out_specs=pl.BlockSpec((bt, C, HW), lambda b: (b, 0, 0)),
        compiler_params=pltpu.CompilerParams(
            dimension_semantics=("parallel",),    # batch tiles are independent
            vmem_limit_bytes=32 * 1024 * 1024,    # fits v7x's 64 MiB physical
        ),
    )(x_flat, w_sca, b_sca, w0_s, b0_s, ws_s, bs_s, w1_s, b1_s)

    return out_flat.reshape(B, C, H, W)


# ---------------------------------------------------------------------------
# Deterministic parameter init (shapes from the PyTorch __init__)
# ---------------------------------------------------------------------------
def init_csa_params(key, in_channel):
    ks = jax.random.split(key, 8)

    def n(k, shape, s=0.2):
        return s * jax.random.normal(k, shape, dtype=jnp.float32)

    return {
        "w_sca": n(ks[0], (in_channel, in_channel, 1, 1)),  # sca 1x1 conv
        "b_sca": n(ks[1], (in_channel,)),
        "w0":    n(ks[2], (2, 1, 5, 5)),                    # conv0 (depthwise)
        "b0":    n(ks[3], (2,)),
        "ws":    n(ks[4], (2, 1, 5, 5)),                    # conv_spatial (dilated dw)
        "bs":    n(ks[5], (2,)),
        "w1":    n(ks[6], (1, 2, 1, 1)),                    # conv1 (1x1, 2->1)
        "b1":    n(ks[7], (1,)),
    }


# ---------------------------------------------------------------------------
# Pure-JAX reference (for correctness check; f32-accurate precision so it
# matches the kernel's exact-f32 VPU math)
# ---------------------------------------------------------------------------
def csa_reference(x, p):
    B, C, H, W = x.shape
    dn = ("NCHW", "OIHW", "NCHW")
    prec = lax.Precision.HIGHEST
    pooled = jnp.mean(x, axis=(2, 3), keepdims=True)                       # (B,C,1,1)
    sca_v = jnp.einsum("oi,bihw->bohw", p["w_sca"].reshape(C, C), pooled,
                       precision=prec) + p["b_sca"].reshape(1, C, 1, 1)
    sca = sca_v * x
    max_out = jnp.max(sca, axis=1, keepdims=True)
    mean_out = jnp.mean(sca, axis=1, keepdims=True)
    out = jnp.concatenate([max_out, mean_out], axis=1)                     # (B,2,H,W)
    out = lax.conv_general_dilated(out, p["w0"], (1, 1), ((2, 2), (2, 2)),
                                   dimension_numbers=dn, feature_group_count=2,
                                   precision=prec) + p["b0"].reshape(1, 2, 1, 1)
    out = lax.conv_general_dilated(out, p["ws"], (1, 1), ((6, 6), (6, 6)),
                                   rhs_dilation=(3, 3), dimension_numbers=dn,
                                   feature_group_count=2,
                                   precision=prec) + p["bs"].reshape(1, 2, 1, 1)
    out = lax.conv_general_dilated(out, p["w1"], (1, 1), ((0, 0), (0, 0)),
                                   dimension_numbers=dn,
                                   precision=prec) + p["b1"].reshape(1, 1, 1, 1)
    return out * sca


if __name__ == "__main__":
    key = jax.random.PRNGKey(0)
    kx, kp = jax.random.split(key)
    B, C, H, W = 2, 4, 16, 16
    x = jax.random.normal(kx, (B, C, H, W), dtype=jnp.float32)
    params = init_csa_params(kp, C)

    out = jax.jit(csa_forward)(x, params)
    out = jax.block_until_ready(out)

    ref = csa_reference(x, params)
    assert out.shape == (B, C, H, W)
    assert jnp.allclose(out, ref, atol=1e-4, rtol=1e-4), \
        float(jnp.max(jnp.abs(out - ref)))
    print("KERNEL_OK")
</pallas_src>

<mosaic_0001>
module attributes {stable_mosaic.version = 11 : i64} {
  func.func @_csa_fused_kernel(%arg0: i32, %arg1: memref<1x4x256xf32, #tpu.memory_space<vmem>>, %arg2: memref<4x4xf32, #tpu.memory_space<vmem>>, %arg3: memref<4x1xf32, #tpu.memory_space<vmem>>, %arg4: memref<2x25xf32, #tpu.memory_space<smem>>, %arg5: memref<1x2xf32, #tpu.memory_space<smem>>, %arg6: memref<2x25xf32, #tpu.memory_space<smem>>, %arg7: memref<1x2xf32, #tpu.memory_space<smem>>, %arg8: memref<1x2xf32, #tpu.memory_space<smem>>, %arg9: memref<1x1xf32, #tpu.memory_space<smem>>, %arg10: memref<1x4x256xf32, #tpu.memory_space<vmem>>) attributes {dimension_semantics = [#tpu.dimension_semantics<parallel>], iteration_bounds = array<i64: 2>, scalar_prefetch = 0 : i64, scratch_operands = 0 : i64, tpu.core_type = #tpu.core_type<tc>, window_params = [{transform_indices = @transform_0, window_bounds = array<i64: 1, 4, 256>}, {pipeline_mode = #tpu.pipeline_mode<synchronous>, transform_indices = @transform_1, window_bounds = array<i64: 4, 4>}, {pipeline_mode = #tpu.pipeline_mode<synchronous>, transform_indices = @transform_2, window_bounds = array<i64: 4, 1>}, {transform_indices = @transform_3, window_bounds = array<i64: 2, 25>}, {transform_indices = @transform_4, window_bounds = array<i64: 1, 2>}, {transform_indices = @transform_5, window_bounds = array<i64: 2, 25>}, {transform_indices = @transform_6, window_bounds = array<i64: 1, 2>}, {transform_indices = @transform_7, window_bounds = array<i64: 1, 2>}, {transform_indices = @transform_8, window_bounds = array<i64: 1, 1>}, {transform_indices = @transform_9, window_bounds = array<i64: 1, 4, 256>}]} {
    %c0 = arith.constant 0 : index
    %c0_0 = arith.constant 0 : index
    %c0_1 = arith.constant 0 : index
    %0 = vector.load %arg1[%c0, %c0_0, %c0_1] : memref<1x4x256xf32, #tpu.memory_space<vmem>>, vector<1x4x256xf32>
    %cst = arith.constant dense<0.000000e+00> : vector<1x4xf32>
    %1 = vector.multi_reduction <add>, %0, %cst [2] : vector<1x4x256xf32> to vector<1x4xf32>
    %2 = vector.shape_cast %1 : vector<1x4xf32> to vector<1x4x1xf32>
    %cst_2 = arith.constant 2.560000e+02 : f32
    %3 = vector.broadcast %cst_2 : f32 to vector<1x4x1xf32>
    %4 = arith.divf %2, %3 : vector<1x4x1xf32>
    %c0_3 = arith.constant 0 : index
    %c0_4 = arith.constant 0 : index
    %5 = vector.load %arg2[%c0_3, %c0_4] : memref<4x4xf32, #tpu.memory_space<vmem>>, vector<4x4xf32>
    %c0_5 = arith.constant 0 : index
    %c0_6 = arith.constant 0 : index
    %6 = vector.load %arg3[%c0_5, %c0_6] : memref<4x1xf32, #tpu.memory_space<vmem>>, vector<4x1xf32>
    %7 = vector.shape_cast %6 : vector<4x1xf32> to vector<1x4x1xf32>
    %8 = vector.extract_strided_slice %5 {offsets = [0, 0], sizes = [4, 1], strides = [1, 1]} : vector<4x4xf32> to vector<4x1xf32>
    %9 = vector.shape_cast %8 : vector<4x1xf32> to vector<1x4x1xf32>
    %10 = vector.extract_strided_slice %4 {offsets = [0, 0, 0], sizes = [1, 1, 1], strides = [1, 1, 1]} : vector<1x4x1xf32> to vector<1x1x1xf32>
    %11 = vector.broadcast %10 : vector<1x1x1xf32> to vector<1x4x1xf32>
    %12 = arith.mulf %9, %11 : vector<1x4x1xf32>
    %13 = arith.addf %7, %12 : vector<1x4x1xf32>
    %14 = vector.extract_strided_slice %5 {offsets = [0, 1], sizes = [4, 1], strides = [1, 1]} : vector<4x4xf32> to vector<4x1xf32>
    %15 = vector.shape_cast %14 : vector<4x1xf32> to vector<1x4x1xf32>
    %16 = vector.extract_strided_slice %4 {offsets = [0, 1, 0], sizes = [1, 1, 1], strides = [1, 1, 1]} : vector<1x4x1xf32> to vector<1x1x1xf32>
    %17 = vector.broadcast %16 : vector<1x1x1xf32> to vector<1x4x1xf32>
    %18 = arith.mulf %15, %17 : vector<1x4x1xf32>
    %19 = arith.addf %13, %18 : vector<1x4x1xf32>
    %20 = vector.extract_strided_slice %5 {offsets = [0, 2], sizes = [4, 1], strides = [1, 1]} : vector<4x4xf32> to vector<4x1xf32>
    %21 = vector.shape_cast %20 : vector<4x1xf32> to vector<1x4x1xf32>
    %22 = vector.extract_strided_slice %4 {offsets = [0, 2, 0], sizes = [1, 1, 1], strides = [1, 1, 1]} : vector<1x4x1xf32> to vector<1x1x1xf32>
    %23 = vector.broadcast %22 : vector<1x1x1xf32> to vector<1x4x1xf32>
    %24 = arith.mulf %21, %23 : vector<1x4x1xf32>
    %25 = arith.addf %19, %24 : vector<1x4x1xf32>
    %26 = vector.extract_strided_slice %5 {offsets = [0, 3], sizes = [4, 1], strides = [1, 1]} : vector<4x4xf32> to vector<4x1xf32>
    %27 = vector.shape_cast %26 : vector<4x1xf32> to vector<1x4x1xf32>
    %28 = vector.extract_strided_slice %4 {offsets = [0, 3, 0], sizes = [1, 1, 1], strides = [1, 1, 1]} : vector<1x4x1xf32> to vector<1x1x1xf32>
    %29 = vector.broadcast %28 : vector<1x1x1xf32> to vector<1x4x1xf32>
    %30 = arith.mulf %27, %29 : vector<1x4x1xf32>
    %31 = arith.addf %25, %30 : vector<1x4x1xf32>
    %32 = vector.broadcast %31 : vector<1x4x1xf32> to vector<1x4x256xf32>
    %33 = arith.mulf %0, %32 : vector<1x4x256xf32>
    %cst_7 = arith.constant dense<0xFF800000> : vector<1x256xf32>
    %34 = vector.multi_reduction <maximumf>, %33, %cst_7 [1] : vector<1x4x256xf32> to vector<1x256xf32>
    %35 = vector.shape_cast %34 : vector<1x256xf32> to vector<1x1x256xf32>
    %cst_8 = arith.constant dense<0.000000e+00> : vector<1x256xf32>
    %36 = vector.multi_reduction <add>, %33, %cst_8 [1] : vector<1x4x256xf32> to vector<1x256xf32>
    %37 = vector.shape_cast %36 : vector<1x256xf32> to vector<1x1x256xf32>
    %cst_9 = arith.constant 4.000000e+00 : f32
    %38 = vector.broadcast %cst_9 : f32 to vector<1x1x256xf32>
    %39 = arith.divf %37, %38 : vector<1x1x256xf32>
    %40 = tpu.iota {dimensions = array<i32: 2>} : vector<1x1x256xi32>
    %c15_i32 = arith.constant 15 : i32
    %41 = vector.broadcast %c15_i32 : i32 to vector<1x1x256xi32>
    %42 = arith.andi %40, %41 : vector<1x1x256xi32>
    %c4_i32 = arith.constant 4 : i32
    %43 = vector.broadcast %c4_i32 : i32 to vector<1x1x256xi32>
    %44 = arith.shrsi %40, %43 : vector<1x1x256xi32>
    %c2_i32 = arith.constant 2 : i32
    %45 = vector.broadcast %c2_i32 : i32 to vector<1x1x256xi32>
    %46 = arith.cmpi sge, %42, %45 : vector<1x1x256xi32>
    %cst_10 = arith.constant 1.000000e+00 : f32
    %cst_11 = arith.constant 0.000000e+00 : f32
    %47 = vector.broadcast %cst_10 : f32 to vector<1x1x256xf32>
    %48 = vector.broadcast %cst_11 : f32 to vector<1x1x256xf32>
    %49 = arith.select %46, %47, %48 : vector<1x1x256xi1>, vector<1x1x256xf32>
    %c1_i32 = arith.constant 1 : i32
    %50 = vector.broadcast %c1_i32 : i32 to vector<1x1x256xi32>
    %51 = arith.cmpi sge, %42, %50 : vector<1x1x256xi32>
    %cst_12 = arith.constant 1.000000e+00 : f32
    %cst_13 = arith.constant 0.000000e+00 : f32
    %52 = vector.broadcast %cst_12 : f32 to vector<1x1x256xf32>
    %53 = vector.broadcast %cst_13 : f32 to vector<1x1x256xf32>
    %54 = arith.select %51, %52, %53 : vector<1x1x256xi1>, vector<1x1x256xf32>
    %c15_i32_14 = arith.constant 15 : i32
    %55 = vector.broadcast %c15_i32_14 : i32 to vector<1x1x256xi32>
    %56 = arith.cmpi slt, %42, %55 : vector<1x1x256xi32>
    %cst_15 = arith.constant 1.000000e+00 : f32
    %cst_16 = arith.constant 0.000000e+00 : f32
    %57 = vector.broadcast %cst_15 : f32 to vector<1x1x256xf32>
    %58 = vector.broadcast %cst_16 : f32 to vector<1x1x256xf32>
    %59 = arith.select %56, %57, %58 : vector<1x1x256xi1>, vector<1x1x256xf32>
    %c14_i32 = arith.constant 14 : i32
    %60 = vector.broadcast %c14_i32 : i32 to vector<1x1x256xi32>
    %61 = arith.cmpi slt, %42, %60 : vector<1x1x256xi32>
    %cst_17 = arith.constant 1.000000e+00 : f32
    %cst_18 = arith.constant 0.000000e+00 : f32
    %62 = vector.broadcast %cst_17 : f32 to vector<1x1x256xf32>
    %63 = vector.broadcast %cst_18 : f32 to vector<1x1x256xf32>
    %64 = arith.select %61, %62, %63 : vector<1x1x256xi1>, vector<1x1x256xf32>
    %c2_i32_19 = arith.constant 2 : i32
    %65 = vector.broadcast %c2_i32_19 : i32 to vector<1x1x256xi32>
    %66 = arith.cmpi sge, %44, %65 : vector<1x1x256xi32>
    %cst_20 = arith.constant 1.000000e+00 : f32
    %cst_21 = arith.constant 0.000000e+00 : f32
    %67 = vector.broadcast %cst_20 : f32 to vector<1x1x256xf32>
    %68 = vector.broadcast %cst_21 : f32 to vector<1x1x256xf32>
    %69 = arith.select %66, %67, %68 : vector<1x1x256xi1>, vector<1x1x256xf32>
    %c1_i32_22 = arith.constant 1 : i32
    %70 = vector.broadcast %c1_i32_22 : i32 to vector<1x1x256xi32>
    %71 = arith.cmpi sge, %44, %70 : vector<1x1x256xi32>
    %cst_23 = arith.constant 1.000000e+00 : f32
    %cst_24 = arith.constant 0.000000e+00 : f32
    %72 = vector.broadcast %cst_23 : f32 to vector<1x1x256xf32>
    %73 = vector.broadcast %cst_24 : f32 to vector<1x1x256xf32>
    %74 = arith.select %71, %72, %73 : vector<1x1x256xi1>, vector<1x1x256xf32>
    %c15_i32_25 = arith.constant 15 : i32
    %75 = vector.broadcast %c15_i32_25 : i32 to vector<1x1x256xi32>
    %76 = arith.cmpi slt, %44, %75 : vector<1x1x256xi32>
    %cst_26 = arith.constant 1.000000e+00 : f32
    %cst_27 = arith.constant 0.000000e+00 : f32
    %77 = vector.broadcast %cst_26 : f32 to vector<1x1x256xf32>
    %78 = vector.broadcast %cst_27 : f32 to vector<1x1x256xf32>
    %79 = arith.select %76, %77, %78 : vector<1x1x256xi1>, vector<1x1x256xf32>
    %c14_i32_28 = arith.constant 14 : i32
    %80 = vector.broadcast %c14_i32_28 : i32 to vector<1x1x256xi32>
    %81 = arith.cmpi slt, %44, %80 : vector<1x1x256xi32>
    %cst_29 = arith.constant 1.000000e+00 : f32
    %cst_30 = arith.constant 0.000000e+00 : f32
    %82 = vector.broadcast %cst_29 : f32 to vector<1x1x256xf32>
    %83 = vector.broadcast %cst_30 : f32 to vector<1x1x256xf32>
    %84 = arith.select %81, %82, %83 : vector<1x1x256xi1>, vector<1x1x256xf32>
    %85 = arith.mulf %69, %49 : vector<1x1x256xf32>
    %c34_i32 = arith.constant 34 : i32
    %86 = tpu.dynamic_rotate %35 by %c34_i32 dim 2 : vector<1x1x256xf32>, i32 -> vector<1x1x256xf32>
    %87 = arith.mulf %86, %85 : vector<1x1x256xf32>
    %c0_31 = arith.constant 0 : index
    %c0_32 = arith.constant 0 : index
    %88 = memref.load %arg4[%c0_31, %c0_32] : memref<2x25xf32, #tpu.memory_space<smem>>
    %89 = vector.broadcast %88 : f32 to vector<1x1x256xf32>
    %90 = arith.mulf %89, %87 : vector<1x1x256xf32>
    %c34_i32_33 = arith.constant 34 : i32
    %91 = tpu.dynamic_rotate %39 by %c34_i32_33 dim 2 : vector<1x1x256xf32>, i32 -> vector<1x1x256xf32>
    %92 = arith.mulf %91, %85 : vector<1x1x256xf32>
    %c1 = arith.constant 1 : index
    %c0_34 = arith.constant 0 : index
    %93 = memref.load %arg4[%c1, %c0_34] : memref<2x25xf32, #tpu.memory_space<smem>>
    %94 = vector.broadcast %93 : f32 to vector<1x1x256xf32>
    %95 = arith.mulf %94, %92 : vector<1x1x256xf32>
    %96 = arith.mulf %69, %54 : vector<1x1x256xf32>
    %c33_i32 = arith.constant 33 : i32
    %97 = tpu.dynamic_rotate %35 by %c33_i32 dim 2 : vector<1x1x256xf32>, i32 -> vector<1x1x256xf32>
    %98 = arith.mulf %97, %96 : vector<1x1x256xf32>
    %c0_35 = arith.constant 0 : index
    %c1_36 = arith.constant 1 : index
    %99 = memref.load %arg4[%c0_35, %c1_36] : memref<2x25xf32, #tpu.memory_space<smem>>
    %100 = vector.broadcast %99 : f32 to vector<1x1x256xf32>
    %101 = arith.mulf %100, %98 : vector<1x1x256xf32>
    %102 = arith.addf %90, %101 : vector<1x1x256xf32>
    %c33_i32_37 = arith.constant 33 : i32
    %103 = tpu.dynamic_rotate %39 by %c33_i32_37 dim 2 : vector<1x1x256xf32>, i32 -> vector<1x1x256xf32>
    %104 = arith.mulf %103, %96 : vector<1x1x256xf32>
    %c1_38 = arith.constant 1 : index
    %c1_39 = arith.constant 1 : index
    %105 = memref.load %arg4[%c1_38, %c1_39] : memref<2x25xf32, #tpu.memory_space<smem>>
    %106 = vector.broadcast %105 : f32 to vector<1x1x256xf32>
    %107 = arith.mulf %106, %104 : vector<1x1x256xf32>
    %108 = arith.addf %95, %107 : vector<1x1x256xf32>
    %c32_i32 = arith.constant 32 : i32
    %109 = tpu.dynamic_rotate %35 by %c32_i32 dim 2 : vector<1x1x256xf32>, i32 -> vector<1x1x256xf32>
    %110 = arith.mulf %109, %69 : vector<1x1x256xf32>
    %c0_40 = arith.constant 0 : index
    %c2 = arith.constant 2 : index
    %111 = memref.load %arg4[%c0_40, %c2] : memref<2x25xf32, #tpu.memory_space<smem>>
    %112 = vector.broadcast %111 : f32 to vector<1x1x256xf32>
    %113 = arith.mulf %112, %110 : vector<1x1x256xf32>
    %114 = arith.addf %102, %113 : vector<1x1x256xf32>
    %c32_i32_41 = arith.constant 32 : i32
    %115 = tpu.dynamic_rotate %39 by %c32_i32_41 dim 2 : vector<1x1x256xf32>, i32 -> vector<1x1x256xf32>
    %116 = arith.mulf %115, %69 : vector<1x1x256xf32>
    %c1_42 = arith.constant 1 : index
    %c2_43 = arith.constant 2 : index
    %117 = memref.load %arg4[%c1_42, %c2_43] : memref<2x25xf32, #tpu.memory_space<smem>>
    %118 = vector.broadcast %117 : f32 to vector<1x1x256xf32>
    %119 = arith.mulf %118, %116 : vector<1x1x256xf32>
    %120 = arith.addf %108, %119 : vector<1x1x256xf32>
    %121 = arith.mulf %69, %59 : vector<1x1x256xf32>
    %c31_i32 = arith.constant 31 : i32
    %122 = tpu.dynamic_rotate %35 by %c31_i32 dim 2 : vector<1x1x256xf32>, i32 -> vector<1x1x256xf32>
    %123 = arith.mulf %122, %121 : vector<1x1x256xf32>
    %c0_44 = arith.constant 0 : index
    %c3 = arith.constant 3 : index
    %124 = memref.load %arg4[%c0_44, %c3] : memref<2x25xf32, #tpu.memory_space<smem>>
    %125 = vector.broadcast %124 : f32 to vector<1x1x256xf32>
    %126 = arith.mulf %125, %123 : vector<1x1x256xf32>
    %127 = arith.addf %114, %126 : vector<1x1x256xf32>
    %c31_i32_45 = arith.constant 31 : i32
    %128 = tpu.dynamic_rotate %39 by %c31_i32_45 dim 2 : vector<1x1x256xf32>, i32 -> vector<1x1x256xf32>
    %129 = arith.mulf %128, %121 : vector<1x1x256xf32>
    %c1_46 = arith.constant 1 : index
    %c3_47 = arith.constant 3 : index
    %130 = memref.load %arg4[%c1_46, %c3_47] : memref<2x25xf32, #tpu.memory_space<smem>>
    %131 = vector.broadcast %130 : f32 to vector<1x1x256xf32>
    %132 = arith.mulf %131, %129 : vector<1x1x256xf32>
    %133 = arith.addf %120, %132 : vector<1x1x256xf32>
    %134 = arith.mulf %69, %64 : vector<1x1x256xf32>
    %c30_i32 = arith.constant 30 : i32
    %135 = tpu.dynamic_rotate %35 by %c30_i32 dim 2 : vector<1x1x256xf32>, i32 -> vector<1x1x256xf32>
    %136 = arith.mulf %135, %134 : vector<1x1x256xf32>
    %c0_48 = arith.constant 0 : index
    %c4 = arith.constant 4 : index
    %137 = memref.load %arg4[%c0_48, %c4] : memref<2x25xf32, #tpu.memory_space<smem>>
    %138 = vector.broadcast %137 : f32 to vector<1x1x256xf32>
    %139 = arith.mulf %138, %136 : vector<1x1x256xf32>
    %140 = arith.addf %127, %139 : vector<1x1x256xf32>
    %c30_i32_49 = arith.constant 30 : i32
    %141 = tpu.dynamic_rotate %39 by %c30_i32_49 dim 2 : vector<1x1x256xf32>, i32 -> vector<1x1x256xf32>
    %142 = arith.mulf %141, %134 : vector<1x1x256xf32>
    %c1_50 = arith.constant 1 : index
    %c4_51 = arith.constant 4 : index
    %143 = memref.load %arg4[%c1_50, %c4_51] : memref<2x25xf32, #tpu.memory_space<smem>>
    %144 = vector.broadcast %143 : f32 to vector<1x1x256xf32>
    %145 = arith.mulf %144, %142 : vector<1x1x256xf32>
    %146 = arith.addf %133, %145 : vector<1x1x256xf32>
    %147 = arith.mulf %74, %49 : vector<1x1x256xf32>
    %c18_i32 = arith.constant 18 : i32
    %148 = tpu.dynamic_rotate %35 by %c18_i32 dim 2 : vector<1x1x256xf32>, i32 -> vector<1x1x256xf32>
    %149 = arith.mulf %148, %147 : vector<1x1x256xf32>
    %c0_52 = arith.constant 0 : index
    %c5 = arith.constant 5 : index
    %150 = memref.load %arg4[%c0_52, %c5] : memref<2x25xf32, #tpu.memory_space<smem>>
    %151 = vector.broadcast %150 : f32 to vector<1x1x256xf32>
    %152 = arith.mulf %151, %149 : vector<1x1x256xf32>
    %153 = arith.addf %140, %152 : vector<1x1x256xf32>
    %c18_i32_53 = arith.constant 18 : i32
    %154 = tpu.dynamic_rotate %39 by %c18_i32_53 dim 2 : vector<1x1x256xf32>, i32 -> vector<1x1x256xf32>
    %155 = arith.mulf %154, %147 : vector<1x1x256xf32>
    %c1_54 = arith.constant 1 : index
    %c5_55 = arith.constant 5 : index
    %156 = memref.load %arg4[%c1_54, %c5_55] : memref<2x25xf32, #tpu.memory_space<smem>>
    %157 = vector.broadcast %156 : f32 to vector<1x1x256xf32>
    %158 = arith.mulf %157, %155 : vector<1x1x256xf32>
    %159 = arith.addf %146, %158 : vector<1x1x256xf32>
    %160 = arith.mulf %74, %54 : vector<1x1x256xf32>
    %c17_i32 = arith.constant 17 : i32
    %161 = tpu.dynamic_rotate %35 by %c17_i32 dim 2 : vector<1x1x256xf32>, i32 -> vector<1x1x256xf32>
    %162 = arith.mulf %161, %160 : vector<1x1x256xf32>
    %c0_56 = arith.constant 0 : index
    %c6 = arith.constant 6 : index
    %163 = memref.load %arg4[%c0_56, %c6] : memref<2x25xf32, #tpu.memory_space<smem>>
    %164 = vector.broadcast %163 : f32 to vector<1x1x256xf32>
    %165 = arith.mulf %164, %162 : vector<1x1x256xf32>
    %166 = arith.addf %153, %165 : vector<1x1x256xf32>
    %c17_i32_57 = arith.constant 17 : i32
    %167 = tpu.dynamic_rotate %39 by %c17_i32_57 dim 2 : vector<1x1x256xf32>, i32 -> vector<1x1x256xf32>
    %168 = arith.mulf %167, %160 : vector<1x1x256xf32>
    %c1_58 = arith.constant 1 : index
    %c6_59 = arith.constant 6 : index
    %169 = memref.load %arg4[%c1_58, %c6_59] : memref<2x25xf32, #tpu.memory_space<smem>>
    %170 = vector.broadcast %169 : f32 to vector<1x1x256xf32>
    %171 = arith.mulf %170, %168 : vector<1x1x256xf32>
    %172 = arith.addf %159, %171 : vector<1x1x256xf32>
    %c16_i32 = arith.constant 16 : i32
    %173 = tpu.dynamic_rotate %35 by %c16_i32 dim 2 : vector<1x1x256xf32>, i32 -> vector<1x1x256xf32>
    %174 = arith.mulf %173, %74 : vector<1x1x256xf32>
    %c0_60 = arith.constant 0 : index
    %c7 = arith.constant 7 : index
    %175 = memref.load %arg4[%c0_60, %c7] : memref<2x25xf32, #tpu.memory_space<smem>>
    %176 = vector.broadcast %175 : f32 to vector<1x1x256xf32>
    %177 = arith.mulf %176, %174 : vector<1x1x256xf32>
    %178 = arith.addf %166, %177 : vector<1x1x256xf32>
    %c16_i32_61 = arith.constant 16 : i32
    %179 = tpu.dynamic_rotate %39 by %c16_i32_61 dim 2 : vector<1x1x256xf32>, i32 -> vector<1x1x256xf32>
    %180 = arith.mulf %179, %74 : vector<1x1x256xf32>
    %c1_62 = arith.constant 1 : index
    %c7_63 = arith.constant 7 : index
    %181 = memref.load %arg4[%c1_62, %c7_63] : memref<2x25xf32, #tpu.memory_space<smem>>
    %182 = vector.broadcast %181 : f32 to vector<1x1x256xf32>
    %183 = arith.mulf %182, %180 : vector<1x1x256xf32>
    %184 = arith.addf %172, %183 : vector<1x1x256xf32>
    %185 = arith.mulf %74, %59 : vector<1x1x256xf32>
    %c15_i32_64 = arith.constant 15 : i32
    %186 = tpu.dynamic_rotate %35 by %c15_i32_64 dim 2 : vector<1x1x256xf32>, i32 -> vector<1x1x256xf32>
    %187 = arith.mulf %186, %185 : vector<1x1x256xf32>
    %c0_65 = arith.constant 0 : index
    %c8 = arith.constant 8 : index
    %188 = memref.load %arg4[%c0_65, %c8] : memref<2x25xf32, #tpu.memory_space<smem>>
    %189 = vector.broadcast %188 : f32 to vector<1x1x256xf32>
    %190 = arith.mulf %189, %187 : vector<1x1x256xf32>
    %191 = arith.addf %178, %190 : vector<1x1x256xf32>
    %c15_i32_66 = arith.constant 15 : i32
    %192 = tpu.dynamic_rotate %39 by %c15_i32_66 dim 2 : vector<1x1x256xf32>, i32 -> vector<1x1x256xf32>
    %193 = arith.mulf %192, %185 : vector<1x1x256xf32>
    %c1_67 = arith.constant 1 : index
    %c8_68 = arith.constant 8 : index
    %194 = memref.load %arg4[%c1_67, %c8_68] : memref<2x25xf32, #tpu.memory_space<smem>>
    %195 = vector.broadcast %194 : f32 to vector<1x1x256xf32>
    %196 = arith.mulf %195, %193 : vector<1x1x256xf32>
    %197 = arith.addf %184, %196 : vector<1x1x256xf32>
    %198 = arith.mulf %74, %64 : vector<1x1x256xf32>
    %c14_i32_69 = arith.constant 14 : i32
    %199 = tpu.dynamic_rotate %35 by %c14_i32_69 dim 2 : vector<1x1x256xf32>, i32 -> vector<1x1x256xf32>
    %200 = arith.mulf %199, %198 : vector<1x1x256xf32>
    %c0_70 = arith.constant 0 : index
    %c9 = arith.constant 9 : index
    %201 = memref.load %arg4[%c0_70, %c9] : memref<2x25xf32, #tpu.memory_space<smem>>
    %202 = vector.broadcast %201 : f32 to vector<1x1x256xf32>
    %203 = arith.mulf %202, %200 : vector<1x1x256xf32>
    %204 = arith.addf %191, %203 : vector<1x1x256xf32>
    %c14_i32_71 = arith.constant 14 : i32
    %205 = tpu.dynamic_rotate %39 by %c14_i32_71 dim 2 : vector<1x1x256xf32>, i32 -> vector<1x1x256xf32>
    %206 = arith.mulf %205, %198 : vector<1x1x256xf32>
    %c1_72 = arith.constant 1 : index
    %c9_73 = arith.constant 9 : index
    %207 = memref.load %arg4[%c1_72, %c9_73] : memref<2x25xf32, #tpu.memory_space<smem>>
    %208 = vector.broadcast %207 : f32 to vector<1x1x256xf32>
    %209 = arith.mulf %208, %206 : vector<1x1x256xf32>
    %210 = arith.addf %197, %209 : vector<1x1x256xf32>
    %c2_i32_74 = arith.constant 2 : i32
    %211 = tpu.dynamic_rotate %35 by %c2_i32_74 dim 2 : vector<1x1x256xf32>, i32 -> vector<1x1x256xf32>
    %212 = arith.mulf %211, %49 : vector<1x1x256xf32>
    %c0_75 = arith.constant 0 : index
    %c10 = arith.constant 10 : index
    %213 = memref.load %arg4[%c0_75, %c10] : memref<2x25xf32, #tpu.memory_space<smem>>
    %214 = vector.broadcast %213 : f32 to vector<1x1x256xf32>
    %215 = arith.mulf %214, %212 : vector<1x1x256xf32>
    %216 = arith.addf %204, %215 : vector<1x1x256xf32>
    %c2_i32_76 = arith.constant 2 : i32
    %217 = tpu.dynamic_rotate %39 by %c2_i32_76 dim 2 : vector<1x1x256xf32>, i32 -> vector<1x1x256xf32>
    %218 = arith.mulf %217, %49 : vector<1x1x256xf32>
    %c1_77 = arith.constant 1 : index
    %c10_78 = arith.constant 10 : index
    %219 = memref.load %arg4[%c1_77, %c10_78] : memref<2x25xf32, #tpu.memory_space<smem>>
    %220 = vector.broadcast %219 : f32 to vector<1x1x256xf32>
    %221 = arith.mulf %220, %218 : vector<1x1x256xf32>
    %222 = arith.addf %210, %221 : vector<1x1x256xf32>
    %c1_i32_79 = arith.constant 1 : i32
    %223 = tpu.dynamic_rotate %35 by %c1_i32_79 dim 2 : vector<1x1x256xf32>, i32 -> vector<1x1x256xf32>
    %224 = arith.mulf %223, %54 : vector<1x1x256xf32>
    %c0_80 = arith.constant 0 : index
    %c11 = arith.constant 11 : index
    %225 = memref.load %arg4[%c0_80, %c11] : memref<2x25xf32, #tpu.memory_space<smem>>
    %226 = vector.broadcast %225 : f32 to vector<1x1x256xf32>
    %227 = arith.mulf %226, %224 : vector<1x1x256xf32>
    %228 = arith.addf %216, %227 : vector<1x1x256xf32>
    %c1_i32_81 = arith.constant 1 : i32
    %229 = tpu.dynamic_rotate %39 by %c1_i32_81 dim 2 : vector<1x1x256xf32>, i32 -> vector<1x1x256xf32>
    %230 = arith.mulf %229, %54 : vector<1x1x256xf32>
    %c1_82 = arith.constant 1 : index
    %c11_83 = arith.constant 11 : index
    %231 = memref.load %arg4[%c1_82, %c11_83] : memref<2x25xf32, #tpu.memory_space<smem>>
    %232 = vector.broadcast %231 : f32 to vector<1x1x256xf32>
    %233 = arith.mulf %232, %230 : vector<1x1x256xf32>
    %234 = arith.addf %222, %233 : vector<1x1x256xf32>
    %c0_84 = arith.constant 0 : index
    %c12 = arith.constant 12 : index
    %235 = memref.load %arg4[%c0_84, %c12] : memref<2x25xf32, #tpu.memory_space<smem>>
    %236 = vector.broadcast %235 : f32 to vector<1x1x256xf32>
    %237 = arith.mulf %236, %35 : vector<1x1x256xf32>
    %238 = arith.addf %228, %237 : vector<1x1x256xf32>
    %c1_85 = arith.constant 1 : index
    %c12_86 = arith.constant 12 : index
    %239 = memref.load %arg4[%c1_85, %c12_86] : memref<2x25xf32, #tpu.memory_space<smem>>
    %240 = vector.broadcast %239 : f32 to vector<1x1x256xf32>
    %241 = arith.mulf %240, %39 : vector<1x1x256xf32>
    %242 = arith.addf %234, %241 : vector<1x1x256xf32>
    %c255_i32 = arith.constant 255 : i32
    %243 = tpu.dynamic_rotate %35 by %c255_i32 dim 2 : vector<1x1x256xf32>, i32 -> vector<1x1x256xf32>
    %244 = arith.mulf %243, %59 : vector<1x1x256xf32>
    %c0_87 = arith.constant 0 : index
    %c13 = arith.constant 13 : index
    %245 = memref.load %arg4[%c0_87, %c13] : memref<2x25xf32, #tpu.memory_space<smem>>
    %246 = vector.broadcast %245 : f32 to vector<1x1x256xf32>
    %247 = arith.mulf %246, %244 : vector<1x1x256xf32>
    %248 = arith.addf %238, %247 : vector<1x1x256xf32>
    %c255_i32_88 = arith.constant 255 : i32
    %249 = tpu.dynamic_rotate %39 by %c255_i32_88 dim 2 : vector<1x1x256xf32>, i32 -> vector<1x1x256xf32>
    %250 = arith.mulf %249, %59 : vector<1x1x256xf32>
    %c1_89 = arith.constant 1 : index
    %c13_90 = arith.constant 13 : index
    %251 = memref.load %arg4[%c1_89, %c13_90] : memref<2x25xf32, #tpu.memory_space<smem>>
    %252 = vector.broadcast %251 : f32 to vector<1x1x256xf32>
    %253 = arith.mulf %252, %250 : vector<1x1x256xf32>
    %254 = arith.addf %242, %253 : vector<1x1x256xf32>
    %c254_i32 = arith.constant 254 : i32
    %255 = tpu.dynamic_rotate %35 by %c254_i32 dim 2 : vector<1x1x256xf32>, i32 -> vector<1x1x256xf32>
    %256 = arith.mulf %255, %64 : vector<1x1x256xf32>
    %c0_91 = arith.constant 0 : index
    %c14 = arith.constant 14 : index
    %257 = memref.load %arg4[%c0_91, %c14] : memref<2x25xf32, #tpu.memory_space<smem>>
    %258 = vector.broadcast %257 : f32 to vector<1x1x256xf32>
    %259 = arith.mulf %258, %256 : vector<1x1x256xf32>
    %260 = arith.addf %248, %259 : vector<1x1x256xf32>
    %c254_i32_92 = arith.constant 254 : i32
    %261 = tpu.dynamic_rotate %39 by %c254_i32_92 dim 2 : vector<1x1x256xf32>, i32 -> vector<1x1x256xf32>
    %262 = arith.mulf %261, %64 : vector<1x1x256xf32>
    %c1_93 = arith.constant 1 : index
    %c14_94 = arith.constant 14 : index
    %263 = memref.load %arg4[%c1_93, %c14_94] : memref<2x25xf32, #tpu.memory_space<smem>>
    %264 = vector.broadcast %263 : f32 to vector<1x1x256xf32>
    %265 = arith.mulf %264, %262 : vector<1x1x256xf32>
    %266 = arith.addf %254, %265 : vector<1x1x256xf32>
    %267 = arith.mulf %79, %49 : vector<1x1x256xf32>
    %c242_i32 = arith.constant 242 : i32
    %268 = tpu.dynamic_rotate %35 by %c242_i32 dim 2 : vector<1x1x256xf32>, i32 -> vector<1x1x256xf32>
    %269 = arith.mulf %268, %267 : vector<1x1x256xf32>
    %c0_95 = arith.constant 0 : index
    %c15 = arith.constant 15 : index
    %270 = memref.load %arg4[%c0_95, %c15] : memref<2x25xf32, #tpu.memory_space<smem>>
    %271 = vector.broadcast %270 : f32 to vector<1x1x256xf32>
    %272 = arith.mulf %271, %269 : vector<1x1x256xf32>
    %273 = arith.addf %260, %272 : vector<1x1x256xf32>
    %c242_i32_96 = arith.constant 242 : i32
    %274 = tpu.dynamic_rotate %39 by %c242_i32_96 dim 2 : vector<1x1x256xf32>, i32 -> vector<1x1x256xf32>
    %275 = arith.mulf %274, %267 : vector<1x1x256xf32>
    %c1_97 = arith.constant 1 : index
    %c15_98 = arith.constant 15 : index
    %276 = memref.load %arg4[%c1_97, %c15_98] : memref<2x25xf32, #tpu.memory_space<smem>>
    %277 = vector.broadcast %276 : f32 to vector<1x1x256xf32>
    %278 = arith.mulf %277, %275 : vector<1x1x256xf32>
    %279 = arith.addf %266, %278 : vector<1x1x256xf32>
    %280 = arith.mulf %79, %54 : vector<1x1x256xf32>
    %c241_i32 = arith.constant 241 : i32
    %281 = tpu.dynamic_rotate %35 by %c241_i32 dim 2 : vector<1x1x256xf32>, i32 -> vector<1x1x256xf32>
    %282 = arith.mulf %281, %280 : vector<1x1x256xf32>
    %c0_99 = arith.constant 0 : index
    %c16 = arith.constant 16 : index
    %283 = memref.load %arg4[%c0_99, %c16] : memref<2x25xf32, #tpu.memory_space<smem>>
    %284 = vector.broadcast %283 : f32 to vector<1x1x256xf32>
    %285 = arith.mulf %284, %282 : vector<1x1x256xf32>
    %286 = arith.addf %273, %285 : vector<1x1x256xf32>
    %c241_i32_100 = arith.constant 241 : i32
    %287 = tpu.dynamic_rotate %39 by %c241_i32_100 dim 2 : vector<1x1x256xf32>, i32 -> vector<1x1x256xf32>
    %288 = arith.mulf %287, %280 : vector<1x1x256xf32>
    %c1_101 = arith.constant 1 : index
    %c16_102 = arith.constant 16 : index
    %289 = memref.load %arg4[%c1_101, %c16_102] : memref<2x25xf32, #tpu.memory_space<smem>>
    %290 = vector.broadcast %289 : f32 to vector<1x1x256xf32>
    %291 = arith.mulf %290, %288 : vector<1x1x256xf32>
    %292 = arith.addf %279, %291 : vector<1x1x256xf32>
    %c240_i32 = arith.constant 240 : i32
    %293 = tpu.dynamic_rotate %35 by %c240_i32 dim 2 : vector<1x1x256xf32>, i32 -> vector<1x1x256xf32>
    %294 = arith.mulf %293, %79 : vector<1x1x256xf32>
    %c0_103 = arith.constant 0 : index
    %c17 = arith.constant 17 : index
    %295 = memref.load %arg4[%c0_103, %c17] : memref<2x25xf32, #tpu.memory_space<smem>>
    %296 = vector.broadcast %295 : f32 to vector<1x1x256xf32>
    %297 = arith.mulf %296, %294 : vector<1x1x256xf32>
    %298 = arith.addf %286, %297 : vector<1x1x256xf32>
    %c240_i32_104 = arith.constant 240 : i32
    %299 = tpu.dynamic_rotate %39 by %c240_i32_104 dim 2 : vector<1x1x256xf32>, i32 -> vector<1x1x256xf32>
    %300 = arith.mulf %299, %79 : vector<1x1x256xf32>
    %c1_105 = arith.constant 1 : index
    %c17_106 = arith.constant 17 : index
    %301 = memref.load %arg4[%c1_105, %c17_106] : memref<2x25xf32, #tpu.memory_space<smem>>
    %302 = vector.broadcast %301 : f32 to vector<1x1x256xf32>
    %303 = arith.mulf %302, %300 : vector<1x1x256xf32>
    %304 = arith.addf %292, %303 : vector<1x1x256xf32>
    %305 = arith.mulf %79, %59 : vector<1x1x256xf32>
    %c239_i32 = arith.constant 239 : i32
    %306 = tpu.dynamic_rotate %35 by %c239_i32 dim 2 : vector<1x1x256xf32>, i32 -> vector<1x1x256xf32>
    %307 = arith.mulf %306, %305 : vector<1x1x256xf32>
    %c0_107 = arith.constant 0 : index
    %c18 = arith.constant 18 : index
    %308 = memref.load %arg4[%c0_107, %c18] : memref<2x25xf32, #tpu.memory_space<smem>>
    %309 = vector.broadcast %308 : f32 to vector<1x1x256xf32>
    %310 = arith.mulf %309, %307 : vector<1x1x256xf32>
    %311 = arith.addf %298, %310 : vector<1x1x256xf32>
    %c239_i32_108 = arith.constant 239 : i32
    %312 = tpu.dynamic_rotate %39 by %c239_i32_108 dim 2 : vector<1x1x256xf32>, i32 -> vector<1x1x256xf32>
    %313 = arith.mulf %312, %305 : vector<1x1x256xf32>
    %c1_109 = arith.constant 1 : index
    %c18_110 = arith.constant 18 : index
    %314 = memref.load %arg4[%c1_109, %c18_110] : memref<2x25xf32, #tpu.memory_space<smem>>
    %315 = vector.broadcast %314 : f32 to vector<1x1x256xf32>
    %316 = arith.mulf %315, %313 : vector<1x1x256xf32>
    %317 = arith.addf %304, %316 : vector<1x1x256xf32>
    %318 = arith.mulf %79, %64 : vector<1x1x256xf32>
    %c238_i32 = arith.constant 238 : i32
    %319 = tpu.dynamic_rotate %35 by %c238_i32 dim 2 : vector<1x1x256xf32>, i32 -> vector<1x1x256xf32>
    %320 = arith.mulf %319, %318 : vector<1x1x256xf32>
    %c0_111 = arith.constant 0 : index
    %c19 = arith.constant 19 : index
    %321 = memref.load %arg4[%c0_111, %c19] : memref<2x25xf32, #tpu.memory_space<smem>>
    %322 = vector.broadcast %321 : f32 to vector<1x1x256xf32>
    %323 = arith.mulf %322, %320 : vector<1x1x256xf32>
    %324 = arith.addf %311, %323 : vector<1x1x256xf32>
    %c238_i32_112 = arith.constant 238 : i32
    %325 = tpu.dynamic_rotate %39 by %c238_i32_112 dim 2 : vector<1x1x256xf32>, i32 -> vector<1x1x256xf32>
    %326 = arith.mulf %325, %318 : vector<1x1x256xf32>
    %c1_113 = arith.constant 1 : index
    %c19_114 = arith.constant 19 : index
    %327 = memref.load %arg4[%c1_113, %c19_114] : memref<2x25xf32, #tpu.memory_space<smem>>
    %328 = vector.broadcast %327 : f32 to vector<1x1x256xf32>
    %329 = arith.mulf %328, %326 : vector<1x1x256xf32>
    %330 = arith.addf %317, %329 : vector<1x1x256xf32>
    %331 = arith.mulf %84, %49 : vector<1x1x256xf32>
    %c226_i32 = arith.constant 226 : i32
    %332 = tpu.dynamic_rotate %35 by %c226_i32 dim 2 : vector<1x1x256xf32>, i32 -> vector<1x1x256xf32>
    %333 = arith.mulf %332, %331 : vector<1x1x256xf32>
    %c0_115 = arith.constant 0 : index
    %c20 = arith.constant 20 : index
    %334 = memref.load %arg4[%c0_115, %c20] : memref<2x25xf32, #tpu.memory_space<smem>>
    %335 = vector.broadcast %334 : f32 to vector<1x1x256xf32>
    %336 = arith.mulf %335, %333 : vector<1x1x256xf32>
    %337 = arith.addf %324, %336 : vector<1x1x256xf32>
    %c226_i32_116 = arith.constant 226 : i32
    %338 = tpu.dynamic_rotate %39 by %c226_i32_116 dim 2 : vector<1x1x256xf32>, i32 -> vector<1x1x256xf32>
    %339 = arith.mulf %338, %331 : vector<1x1x256xf32>
    %c1_117 = arith.constant 1 : index
    %c20_118 = arith.constant 20 : index
    %340 = memref.load %arg4[%c1_117, %c20_118] : memref<2x25xf32, #tpu.memory_space<smem>>
    %341 = vector.broadcast %340 : f32 to vector<1x1x256xf32>
    %342 = arith.mulf %341, %339 : vector<1x1x256xf32>
    %343 = arith.addf %330, %342 : vector<1x1x256xf32>
    %344 = arith.mulf %84, %54 : vector<1x1x256xf32>
    %c225_i32 = arith.constant 225 : i32
    %345 = tpu.dynamic_rotate %35 by %c225_i32 dim 2 : vector<1x1x256xf32>, i32 -> vector<1x1x256xf32>
    %346 = arith.mulf %345, %344 : vector<1x1x256xf32>
    %c0_119 = arith.constant 0 : index
    %c21 = arith.constant 21 : index
    %347 = memref.load %arg4[%c0_119, %c21] : memref<2x25xf32, #tpu.memory_space<smem>>
    %348 = vector.broadcast %347 : f32 to vector<1x1x256xf32>
    %349 = arith.mulf %348, %346 : vector<1x1x256xf32>
    %350 = arith.addf %337, %349 : vector<1x1x256xf32>
    %c225_i32_120 = arith.constant 225 : i32
    %351 = tpu.dynamic_rotate %39 by %c225_i32_120 dim 2 : vector<1x1x256xf32>, i32 -> vector<1x1x256xf32>
    %352 = arith.mulf %351, %344 : vector<1x1x256xf32>
    %c1_121 = arith.constant 1 : index
    %c21_122 = arith.constant 21 : index
    %353 = memref.load %arg4[%c1_121, %c21_122] : memref<2x25xf32, #tpu.memory_space<smem>>
    %354 = vector.broadcast %353 : f32 to vector<1x1x256xf32>
    %355 = arith.mulf %354, %352 : vector<1x1x256xf32>
    %356 = arith.addf %343, %355 : vector<1x1x256xf32>
    %c224_i32 = arith.constant 224 : i32
    %357 = tpu.dynamic_rotate %35 by %c224_i32 dim 2 : vector<1x1x256xf32>, i32 -> vector<1x1x256xf32>
    %358 = arith.mulf %357, %84 : vector<1x1x256xf32>
    %c0_123 = arith.constant 0 : index
    %c22 = arith.constant 22 : index
    %359 = memref.load %arg4[%c0_123, %c22] : memref<2x25xf32, #tpu.memory_space<smem>>
    %360 = vector.broadcast %359 : f32 to vector<1x1x256xf32>
    %361 = arith.mulf %360, %358 : vector<1x1x256xf32>
    %362 = arith.addf %350, %361 : vector<1x1x256xf32>
    %c224_i32_124 = arith.constant 224 : i32
    %363 = tpu.dynamic_rotate %39 by %c224_i32_124 dim 2 : vector<1x1x256xf32>, i32 -> vector<1x1x256xf32>
    %364 = arith.mulf %363, %84 : vector<1x1x256xf32>
    %c1_125 = arith.constant 1 : index
    %c22_126 = arith.constant 22 : index
    %365 = memref.load %arg4[%c1_125, %c22_126] : memref<2x25xf32, #tpu.memory_space<smem>>
    %366 = vector.broadcast %365 : f32 to vector<1x1x256xf32>
    %367 = arith.mulf %366, %364 : vector<1x1x256xf32>
    %368 = arith.addf %356, %367 : vector<1x1x256xf32>
    %369 = arith.mulf %84, %59 : vector<1x1x256xf32>
    %c223_i32 = arith.constant 223 : i32
    %370 = tpu.dynamic_rotate %35 by %c223_i32 dim 2 : vector<1x1x256xf32>, i32 -> vector<1x1x256xf32>
    %371 = arith.mulf %370, %369 : vector<1x1x256xf32>
    %c0_127 = arith.constant 0 : index
    %c23 = arith.constant 23 : index
    %372 = memref.load %arg4[%c0_127, %c23] : memref<2x25xf32, #tpu.memory_space<smem>>
    %373 = vector.broadcast %372 : f32 to vector<1x1x256xf32>
    %374 = arith.mulf %373, %371 : vector<1x1x256xf32>
    %375 = arith.addf %362, %374 : vector<1x1x256xf32>
    %c223_i32_128 = arith.constant 223 : i32
    %376 = tpu.dynamic_rotate %39 by %c223_i32_128 dim 2 : vector<1x1x256xf32>, i32 -> vector<1x1x256xf32>
    %377 = arith.mulf %376, %369 : vector<1x1x256xf32>
    %c1_129 = arith.constant 1 : index
    %c23_130 = arith.constant 23 : index
    %378 = memref.load %arg4[%c1_129, %c23_130] : memref<2x25xf32, #tpu.memory_space<smem>>
    %379 = vector.broadcast %378 : f32 to vector<1x1x256xf32>
    %380 = arith.mulf %379, %377 : vector<1x1x256xf32>
    %381 = arith.addf %368, %380 : vector<1x1x256xf32>
    %382 = arith.mulf %84, %64 : vector<1x1x256xf32>
    %c222_i32 = arith.constant 222 : i32
    %383 = tpu.dynamic_rotate %35 by %c222_i32 dim 2 : vector<1x1x256xf32>, i32 -> vector<1x1x256xf32>
    %384 = arith.mulf %383, %382 : vector<1x1x256xf32>
    %c0_131 = arith.constant 0 : index
    %c24 = arith.constant 24 : index
    %385 = memref.load %arg4[%c0_131, %c24] : memref<2x25xf32, #tpu.memory_space<smem>>
    %386 = vector.broadcast %385 : f32 to vector<1x1x256xf32>
    %387 = arith.mulf %386, %384 : vector<1x1x256xf32>
    %388 = arith.addf %375, %387 : vector<1x1x256xf32>
    %c222_i32_132 = arith.constant 222 : i32
    %389 = tpu.dynamic_rotate %39 by %c222_i32_132 dim 2 : vector<1x1x256xf32>, i32 -> vector<1x1x256xf32>
    %390 = arith.mulf %389, %382 : vector<1x1x256xf32>
    %c1_133 = arith.constant 1 : index
    %c24_134 = arith.constant 24 : index
    %391 = memref.load %arg4[%c1_133, %c24_134] : memref<2x25xf32, #tpu.memory_space<smem>>
    %392 = vector.broadcast %391 : f32 to vector<1x1x256xf32>
    %393 = arith.mulf %392, %390 : vector<1x1x256xf32>
    %394 = arith.addf %381, %393 : vector<1x1x256xf32>
    %c0_135 = arith.constant 0 : index
    %c0_136 = arith.constant 0 : index
    %395 = memref.load %arg5[%c0_135, %c0_136] : memref<1x2xf32, #tpu.memory_space<smem>>
    %396 = vector.broadcast %395 : f32 to vector<1x1x256xf32>
    %397 = arith.addf %388, %396 : vector<1x1x256xf32>
    %c0_137 = arith.constant 0 : index
    %c1_138 = arith.constant 1 : index
    %398 = memref.load %arg5[%c0_137, %c1_138] : memref<1x2xf32, #tpu.memory_space<smem>>
    %399 = vector.broadcast %398 : f32 to vector<1x1x256xf32>
    %400 = arith.addf %394, %399 : vector<1x1x256xf32>
    %c6_i32 = arith.constant 6 : i32
    %401 = vector.broadcast %c6_i32 : i32 to vector<1x1x256xi32>
    %402 = arith.cmpi sge, %42, %401 : vector<1x1x256xi32>
    %cst_139 = arith.constant 1.000000e+00 : f32
    %cst_140 = arith.constant 0.000000e+00 : f32
    %403 = vector.broadcast %cst_139 : f32 to vector<1x1x256xf32>
    %404 = vector.broadcast %cst_140 : f32 to vector<1x1x256xf32>
    %405 = arith.select %402, %403, %404 : vector<1x1x256xi1>, vector<1x1x256xf32>
    %c3_i32 = arith.constant 3 : i32
    %406 = vector.broadcast %c3_i32 : i32 to vector<1x1x256xi32>
    %407 = arith.cmpi sge, %42, %406 : vector<1x1x256xi32>
    %cst_141 = arith.constant 1.000000e+00 : f32
    %cst_142 = arith.constant 0.000000e+00 : f32
    %408 = vector.broadcast %cst_141 : f32 to vector<1x1x256xf32>
    %409 = vector.broadcast %cst_142 : f32 to vector<1x1x256xf32>
    %410 = arith.select %407, %408, %409 : vector<1x1x256xi1>, vector<1x1x256xf32>
    %c13_i32 = arith.constant 13 : i32
    %411 = vector.broadcast %c13_i32 : i32 to vector<1x1x256xi32>
    %412 = arith.cmpi slt, %42, %411 : vector<1x1x256xi32>
    %cst_143 = arith.constant 1.000000e+00 : f32
    %cst_144 = arith.constant 0.000000e+00 : f32
    %413 = vector.broadcast %cst_143 : f32 to vector<1x1x256xf32>
    %414 = vector.broadcast %cst_144 : f32 to vector<1x1x256xf32>
    %415 = arith.select %412, %413, %414 : vector<1x1x256xi1>, vector<1x1x256xf32>
    %c10_i32 = arith.constant 10 : i32
    %416 = vector.broadcast %c10_i32 : i32 to vector<1x1x256xi32>
    %417 = arith.cmpi slt, %42, %416 : vector<1x1x256xi32>
    %cst_145 = arith.constant 1.000000e+00 : f32
    %cst_146 = arith.constant 0.000000e+00 : f32
    %418 = vector.broadcast %cst_145 : f32 to vector<1x1x256xf32>
    %419 = vector.broadcast %cst_146 : f32 to vector<1x1x256xf32>
    %420 = arith.select %417, %418, %419 : vector<1x1x256xi1>, vector<1x1x256xf32>
    %c6_i32_147 = arith.constant 6 : i32
    %421 = vector.broadcast %c6_i32_147 : i32 to vector<1x1x256xi32>
    %422 = arith.cmpi sge, %44, %421 : vector<1x1x256xi32>
    %cst_148 = arith.constant 1.000000e+00 : f32
    %cst_149 = arith.constant 0.000000e+00 : f32
    %423 = vector.broadcast %cst_148 : f32 to vector<1x1x256xf32>
    %424 = vector.broadcast %cst_149 : f32 to vector<1x1x256xf32>
    %425 = arith.select %422, %423, %424 : vector<1x1x256xi1>, vector<1x1x256xf32>
    %c3_i32_150 = arith.constant 3 : i32
    %426 = vector.broadcast %c3_i32_150 : i32 to vector<1x1x256xi32>
    %427 = arith.cmpi sge, %44, %426 : vector<1x1x256xi32>
    %cst_151 = arith.constant 1.000000e+00 : f32
    %cst_152 = arith.constant 0.000000e+00 : f32
    %428 = vector.broadcast %cst_151 : f32 to vector<1x1x256xf32>
    %429 = vector.broadcast %cst_152 : f32 to vector<1x1x256xf32>
    %430 = arith.select %427, %428, %429 : vector<1x1x256xi1>, vector<1x1x256xf32>
    %c13_i32_153 = arith.constant 13 : i32
    %431 = vector.broadcast %c13_i32_153 : i32 to vector<1x1x256xi32>
    %432 = arith.cmpi slt, %44, %431 : vector<1x1x256xi32>
    %cst_154 = arith.constant 1.000000e+00 : f32
    %cst_155 = arith.constant 0.000000e+00 : f32
    %433 = vector.broadcast %cst_154 : f32 to vector<1x1x256xf32>
    %434 = vector.broadcast %cst_155 : f32 to vector<1x1x256xf32>
    %435 = arith.select %432, %433, %434 : vector<1x1x256xi1>, vector<1x1x256xf32>
    %c10_i32_156 = arith.constant 10 : i32
    %436 = vector.broadcast %c10_i32_156 : i32 to vector<1x1x256xi32>
    %437 = arith.cmpi slt, %44, %436 : vector<1x1x256xi32>
    %cst_157 = arith.constant 1.000000e+00 : f32
    %cst_158 = arith.constant 0.000000e+00 : f32
    %438 = vector.broadcast %cst_157 : f32 to vector<1x1x256xf32>
    %439 = vector.broadcast %cst_158 : f32 to vector<1x1x256xf32>
    %440 = arith.select %437, %438, %439 : vector<1x1x256xi1>, vector<1x1x256xf32>
    %441 = arith.mulf %425, %405 : vector<1x1x256xf32>
    %c102_i32 = arith.constant 102 : i32
    %442 = tpu.dynamic_rotate %397 by %c102_i32 dim 2 : vector<1x1x256xf32>, i32 -> vector<1x1x256xf32>
    %443 = arith.mulf %442, %441 : vector<1x1x256xf32>
    %c0_159 = arith.constant 0 : index
    %c0_160 = arith.constant 0 : index
    %444 = memref.load %arg6[%c0_159, %c0_160] : memref<2x25xf32, #tpu.memory_space<smem>>
    %445 = vector.broadcast %444 : f32 to vector<1x1x256xf32>
    %446 = arith.mulf %445, %443 : vector<1x1x256xf32>
    %c102_i32_161 = arith.constant 102 : i32
    %447 = tpu.dynamic_rotate %400 by %c102_i32_161 dim 2 : vector<1x1x256xf32>, i32 -> vector<1x1x256xf32>
    %448 = arith.mulf %447, %441 : vector<1x1x256xf32>
    %c1_162 = arith.constant 1 : index
    %c0_163 = arith.constant 0 : index
    %449 = memref.load %arg6[%c1_162, %c0_163] : memref<2x25xf32, #tpu.memory_space<smem>>
    %450 = vector.broadcast %449 : f32 to vector<1x1x256xf32>
    %451 = arith.mulf %450, %448 : vector<1x1x256xf32>
    %452 = arith.mulf %425, %410 : vector<1x1x256xf32>
    %c99_i32 = arith.constant 99 : i32
    %453 = tpu.dynamic_rotate %397 by %c99_i32 dim 2 : vector<1x1x256xf32>, i32 -> vector<1x1x256xf32>
    %454 = arith.mulf %453, %452 : vector<1x1x256xf32>
    %c0_164 = arith.constant 0 : index
    %c1_165 = arith.constant 1 : index
    %455 = memref.load %arg6[%c0_164, %c1_165] : memref<2x25xf32, #tpu.memory_space<smem>>
    %456 = vector.broadcast %455 : f32 to vector<1x1x256xf32>
    %457 = arith.mulf %456, %454 : vector<1x1x256xf32>
    %458 = arith.addf %446, %457 : vector<1x1x256xf32>
    %c99_i32_166 = arith.constant 99 : i32
    %459 = tpu.dynamic_rotate %400 by %c99_i32_166 dim 2 : vector<1x1x256xf32>, i32 -> vector<1x1x256xf32>
    %460 = arith.mulf %459, %452 : vector<1x1x256xf32>
    %c1_167 = arith.constant 1 : index
    %c1_168 = arith.constant 1 : index
    %461 = memref.load %arg6[%c1_167, %c1_168] : memref<2x25xf32, #tpu.memory_space<smem>>
    %462 = vector.broadcast %461 : f32 to vector<1x1x256xf32>
    %463 = arith.mulf %462, %460 : vector<1x1x256xf32>
    %464 = arith.addf %451, %463 : vector<1x1x256xf32>
    %c96_i32 = arith.constant 96 : i32
    %465 = tpu.dynamic_rotate %397 by %c96_i32 dim 2 : vector<1x1x256xf32>, i32 -> vector<1x1x256xf32>
    %466 = arith.mulf %465, %425 : vector<1x1x256xf32>
    %c0_169 = arith.constant 0 : index
    %c2_170 = arith.constant 2 : index
    %467 = memref.load %arg6[%c0_169, %c2_170] : memref<2x25xf32, #tpu.memory_space<smem>>
    %468 = vector.broadcast %467 : f32 to vector<1x1x256xf32>
    %469 = arith.mulf %468, %466 : vector<1x1x256xf32>
    %470 = arith.addf %458, %469 : vector<1x1x256xf32>
    %c96_i32_171 = arith.constant 96 : i32
    %471 = tpu.dynamic_rotate %400 by %c96_i32_171 dim 2 : vector<1x1x256xf32>, i32 -> vector<1x1x256xf32>
    %472 = arith.mulf %471, %425 : vector<1x1x256xf32>
    %c1_172 = arith.constant 1 : index
    %c2_173 = arith.constant 2 : index
    %473 = memref.load %arg6[%c1_172, %c2_173] : memref<2x25xf32, #tpu.memory_space<smem>>
    %474 = vector.broadcast %473 : f32 to vector<1x1x256xf32>
    %475 = arith.mulf %474, %472 : vector<1x1x256xf32>
    %476 = arith.addf %464, %475 : vector<1x1x256xf32>
    %477 = arith.mulf %425, %415 : vector<1x1x256xf32>
    %c93_i32 = arith.constant 93 : i32
    %478 = tpu.dynamic_rotate %397 by %c93_i32 dim 2 : vector<1x1x256xf32>, i32 -> vector<1x1x256xf32>
    %479 = arith.mulf %478, %477 : vector<1x1x256xf32>
    %c0_174 = arith.constant 0 : index
    %c3_175 = arith.constant 3 : index
    %480 = memref.load %arg6[%c0_174, %c3_175] : memref<2x25xf32, #tpu.memory_space<smem>>
    %481 = vector.broadcast %480 : f32 to vector<1x1x256xf32>
    %482 = arith.mulf %481, %479 : vector<1x1x256xf32>
    %483 = arith.addf %470, %482 : vector<1x1x256xf32>
    %c93_i32_176 = arith.constant 93 : i32
    %484 = tpu.dynamic_rotate %400 by %c93_i32_176 dim 2 : vector<1x1x256xf32>, i32 -> vector<1x1x256xf32>
    %485 = arith.mulf %484, %477 : vector<1x1x256xf32>
    %c1_177 = arith.constant 1 : index
    %c3_178 = arith.constant 3 : index
    %486 = memref.load %arg6[%c1_177, %c3_178] : memref<2x25xf32, #tpu.memory_space<smem>>
    %487 = vector.broadcast %486 : f32 to vector<1x1x256xf32>
    %488 = arith.mulf %487, %485 : vector<1x1x256xf32>
    %489 = arith.addf %476, %488 : vector<1x1x256xf32>
    %490 = arith.mulf %425, %420 : vector<1x1x256xf32>
    %c90_i32 = arith.constant 90 : i32
    %491 = tpu.dynamic_rotate %397 by %c90_i32 dim 2 : vector<1x1x256xf32>, i32 -> vector<1x1x256xf32>
    %492 = arith.mulf %491, %490 : vector<1x1x256xf32>
    %c0_179 = arith.constant 0 : index
    %c4_180 = arith.constant 4 : index
    %493 = memref.load %arg6[%c0_179, %c4_180] : memref<2x25xf32, #tpu.memory_space<smem>>
    %494 = vector.broadcast %493 : f32 to vector<1x1x256xf32>
    %495 = arith.mulf %494, %492 : vector<1x1x256xf32>
    %496 = arith.addf %483, %495 : vector<1x1x256xf32>
    %c90_i32_181 = arith.constant 90 : i32
    %497 = tpu.dynamic_rotate %400 by %c90_i32_181 dim 2 : vector<1x1x256xf32>, i32 -> vector<1x1x256xf32>
    %498 = arith.mulf %497, %490 : vector<1x1x256xf32>
    %c1_182 = arith.constant 1 : index
    %c4_183 = arith.constant 4 : index
    %499 = memref.load %arg6[%c1_182, %c4_183] : memref<2x25xf32, #tpu.memory_space<smem>>
    %500 = vector.broadcast %499 : f32 to vector<1x1x256xf32>
    %501 = arith.mulf %500, %498 : vector<1x1x256xf32>
    %502 = arith.addf %489, %501 : vector<1x1x256xf32>
    %503 = arith.mulf %430, %405 : vector<1x1x256xf32>
    %c54_i32 = arith.constant 54 : i32
    %504 = tpu.dynamic_rotate %397 by %c54_i32 dim 2 : vector<1x1x256xf32>, i32 -> vector<1x1x256xf32>
    %505 = arith.mulf %504, %503 : vector<1x1x256xf32>
    %c0_184 = arith.constant 0 : index
    %c5_185 = arith.constant 5 : index
    %506 = memref.load %arg6[%c0_184, %c5_185] : memref<2x25xf32, #tpu.memory_space<smem>>
    %507 = vector.broadcast %506 : f32 to vector<1x1x256xf32>
    %508 = arith.mulf %507, %505 : vector<1x1x256xf32>
    %509 = arith.addf %496, %508 : vector<1x1x256xf32>
    %c54_i32_186 = arith.constant 54 : i32
    %510 = tpu.dynamic_rotate %400 by %c54_i32_186 dim 2 : vector<1x1x256xf32>, i32 -> vector<1x1x256xf32>
    %511 = arith.mulf %510, %503 : vector<1x1x256xf32>
    %c1_187 = arith.constant 1 : index
    %c5_188 = arith.constant 5 : index
    %512 = memref.load %arg6[%c1_187, %c5_188] : memref<2x25xf32, #tpu.memory_space<smem>>
    %513 = vector.broadcast %512 : f32 to vector<1x1x256xf32>
    %514 = arith.mulf %513, %511 : vector<1x1x256xf32>
    %515 = arith.addf %502, %514 : vector<1x1x256xf32>
    %516 = arith.mulf %430, %410 : vector<1x1x256xf32>
    %c51_i32 = arith.constant 51 : i32
    %517 = tpu.dynamic_rotate %397 by %c51_i32 dim 2 : vector<1x1x256xf32>, i32 -> vector<1x1x256xf32>
    %518 = arith.mulf %517, %516 : vector<1x1x256xf32>
    %c0_189 = arith.constant 0 : index
    %c6_190 = arith.constant 6 : index
    %519 = memref.load %arg6[%c0_189, %c6_190] : memref<2x25xf32, #tpu.memory_space<smem>>
    %520 = vector.broadcast %519 : f32 to vector<1x1x256xf32>
    %521 = arith.mulf %520, %518 : vector<1x1x256xf32>
    %522 = arith.addf %509, %521 : vector<1x1x256xf32>
    %c51_i32_191 = arith.constant 51 : i32
    %523 = tpu.dynamic_rotate %400 by %c51_i32_191 dim 2 : vector<1x1x256xf32>, i32 -> vector<1x1x256xf32>
    %524 = arith.mulf %523, %516 : vector<1x1x256xf32>
    %c1_192 = arith.constant 1 : index
    %c6_193 = arith.constant 6 : index
    %525 = memref.load %arg6[%c1_192, %c6_193] : memref<2x25xf32, #tpu.memory_space<smem>>
    %526 = vector.broadcast %525 : f32 to vector<1x1x256xf32>
    %527 = arith.mulf %526, %524 : vector<1x1x256xf32>
    %528 = arith.addf %515, %527 : vector<1x1x256xf32>
    %c48_i32 = arith.constant 48 : i32
    %529 = tpu.dynamic_rotate %397 by %c48_i32 dim 2 : vector<1x1x256xf32>, i32 -> vector<1x1x256xf32>
    %530 = arith.mulf %529, %430 : vector<1x1x256xf32>
    %c0_194 = arith.constant 0 : index
    %c7_195 = arith.constant 7 : index
    %531 = memref.load %arg6[%c0_194, %c7_195] : memref<2x25xf32, #tpu.memory_space<smem>>
    %532 = vector.broadcast %531 : f32 to vector<1x1x256xf32>
    %533 = arith.mulf %532, %530 : vector<1x1x256xf32>
    %534 = arith.addf %522, %533 : vector<1x1x256xf32>
    %c48_i32_196 = arith.constant 48 : i32
    %535 = tpu.dynamic_rotate %400 by %c48_i32_196 dim 2 : vector<1x1x256xf32>, i32 -> vector<1x1x256xf32>
    %536 = arith.mulf %535, %430 : vector<1x1x256xf32>
    %c1_197 = arith.constant 1 : index
    %c7_198 = arith.constant 7 : index
    %537 = memref.load %arg6[%c1_197, %c7_198] : memref<2x25xf32, #tpu.memory_space<smem>>
    %538 = vector.broadcast %537 : f32 to vector<1x1x256xf32>
    %539 = arith.mulf %538, %536 : vector<1x1x256xf32>
    %540 = arith.addf %528, %539 : vector<1x1x256xf32>
    %541 = arith.mulf %430, %415 : vector<1x1x256xf32>
    %c45_i32 = arith.constant 45 : i32
    %542 = tpu.dynamic_rotate %397 by %c45_i32 dim 2 : vector<1x1x256xf32>, i32 -> vector<1x1x256xf32>
    %543 = arith.mulf %542, %541 : vector<1x1x256xf32>
    %c0_199 = arith.constant 0 : index
    %c8_200 = arith.constant 8 : index
    %544 = memref.load %arg6[%c0_199, %c8_200] : memref<2x25xf32, #tpu.memory_space<smem>>
    %545 = vector.broadcast %544 : f32 to vector<1x1x256xf32>
    %546 = arith.mulf %545, %543 : vector<1x1x256xf32>
    %547 = arith.addf %534, %546 : vector<1x1x256xf32>
    %c45_i32_201 = arith.constant 45 : i32
    %548 = tpu.dynamic_rotate %400 by %c45_i32_201 dim 2 : vector<1x1x256xf32>, i32 -> vector<1x1x256xf32>
    %549 = arith.mulf %548, %541 : vector<1x1x256xf32>
    %c1_202 = arith.constant 1 : index
    %c8_203 = arith.constant 8 : index
    %550 = memref.load %arg6[%c1_202, %c8_203] : memref<2x25xf32, #tpu.memory_space<smem>>
    %551 = vector.broadcast %550 : f32 to vector<1x1x256xf32>
    %552 = arith.mulf %551, %549 : vector<1x1x256xf32>
    %553 = arith.addf %540, %552 : vector<1x1x256xf32>
    %554 = arith.mulf %430, %420 : vector<1x1x256xf32>
    %c42_i32 = arith.constant 42 : i32
    %555 = tpu.dynamic_rotate %397 by %c42_i32 dim 2 : vector<1x1x256xf32>, i32 -> vector<1x1x256xf32>
    %556 = arith.mulf %555, %554 : vector<1x1x256xf32>
    %c0_204 = arith.constant 0 : index
    %c9_205 = arith.constant 9 : index
    %557 = memref.load %arg6[%c0_204, %c9_205] : memref<2x25xf32, #tpu.memory_space<smem>>
    %558 = vector.broadcast %557 : f32 to vector<1x1x256xf32>
    %559 = arith.mulf %558, %556 : vector<1x1x256xf32>
    %560 = arith.addf %547, %559 : vector<1x1x256xf32>
    %c42_i32_206 = arith.constant 42 : i32
    %561 = tpu.dynamic_rotate %400 by %c42_i32_206 dim 2 : vector<1x1x256xf32>, i32 -> vector<1x1x256xf32>
    %562 = arith.mulf %561, %554 : vector<1x1x256xf32>
    %c1_207 = arith.constant 1 : index
    %c9_208 = arith.constant 9 : index
    %563 = memref.load %arg6[%c1_207, %c9_208] : memref<2x25xf32, #tpu.memory_space<smem>>
    %564 = vector.broadcast %563 : f32 to vector<1x1x256xf32>
    %565 = arith.mulf %564, %562 : vector<1x1x256xf32>
    %566 = arith.addf %553, %565 : vector<1x1x256xf32>
    %c6_i32_209 = arith.constant 6 : i32
    %567 = tpu.dynamic_rotate %397 by %c6_i32_209 dim 2 : vector<1x1x256xf32>, i32 -> vector<1x1x256xf32>
    %568 = arith.mulf %567, %405 : vector<1x1x256xf32>
    %c0_210 = arith.constant 0 : index
    %c10_211 = arith.constant 10 : index
    %569 = memref.load %arg6[%c0_210, %c10_211] : memref<2x25xf32, #tpu.memory_space<smem>>
    %570 = vector.broadcast %569 : f32 to vector<1x1x256xf32>
    %571 = arith.mulf %570, %568 : vector<1x1x256xf32>
    %572 = arith.addf %560, %571 : vector<1x1x256xf32>
    %c6_i32_212 = arith.constant 6 : i32
    %573 = tpu.dynamic_rotate %400 by %c6_i32_212 dim 2 : vector<1x1x256xf32>, i32 -> vector<1x1x256xf32>
    %574 = arith.mulf %573, %405 : vector<1x1x256xf32>
    %c1_213 = arith.constant 1 : index
    %c10_214 = arith.constant 10 : index
    %575 = memref.load %arg6[%c1_213, %c10_214] : memref<2x25xf32, #tpu.memory_space<smem>>
    %576 = vector.broadcast %575 : f32 to vector<1x1x256xf32>
    %577 = arith.mulf %576, %574 : vector<1x1x256xf32>
    %578 = arith.addf %566, %577 : vector<1x1x256xf32>
    %c3_i32_215 = arith.constant 3 : i32
    %579 = tpu.dynamic_rotate %397 by %c3_i32_215 dim 2 : vector<1x1x256xf32>, i32 -> vector<1x1x256xf32>
    %580 = arith.mulf %579, %410 : vector<1x1x256xf32>
    %c0_216 = arith.constant 0 : index
    %c11_217 = arith.constant 11 : index
    %581 = memref.load %arg6[%c0_216, %c11_217] : memref<2x25xf32, #tpu.memory_space<smem>>
    %582 = vector.broadcast %581 : f32 to vector<1x1x256xf32>
    %583 = arith.mulf %582, %580 : vector<1x1x256xf32>
    %584 = arith.addf %572, %583 : vector<1x1x256xf32>
    %c3_i32_218 = arith.constant 3 : i32
    %585 = tpu.dynamic_rotate %400 by %c3_i32_218 dim 2 : vector<1x1x256xf32>, i32 -> vector<1x1x256xf32>
    %586 = arith.mulf %585, %410 : vector<1x1x256xf32>
    %c1_219 = arith.constant 1 : index
    %c11_220 = arith.constant 11 : index
    %587 = memref.load %arg6[%c1_219, %c11_220] : memref<2x25xf32, #tpu.memory_space<smem>>
    %588 = vector.broadcast %587 : f32 to vector<1x1x256xf32>
    %589 = arith.mulf %588, %586 : vector<1x1x256xf32>
    %590 = arith.addf %578, %589 : vector<1x1x256xf32>
    %c0_221 = arith.constant 0 : index
    %c12_222 = arith.constant 12 : index
    %591 = memref.load %arg6[%c0_221, %c12_222] : memref<2x25xf32, #tpu.memory_space<smem>>
    %592 = vector.broadcast %591 : f32 to vector<1x1x256xf32>
    %593 = arith.mulf %592, %397 : vector<1x1x256xf32>
    %594 = arith.addf %584, %593 : vector<1x1x256xf32>
    %c1_223 = arith.constant 1 : index
    %c12_224 = arith.constant 12 : index
    %595 = memref.load %arg6[%c1_223, %c12_224] : memref<2x25xf32, #tpu.memory_space<smem>>
    %596 = vector.broadcast %595 : f32 to vector<1x1x256xf32>
    %597 = arith.mulf %596, %400 : vector<1x1x256xf32>
    %598 = arith.addf %590, %597 : vector<1x1x256xf32>
    %c253_i32 = arith.constant 253 : i32
    %599 = tpu.dynamic_rotate %397 by %c253_i32 dim 2 : vector<1x1x256xf32>, i32 -> vector<1x1x256xf32>
    %600 = arith.mulf %599, %415 : vector<1x1x256xf32>
    %c0_225 = arith.constant 0 : index
    %c13_226 = arith.constant 13 : index
    %601 = memref.load %arg6[%c0_225, %c13_226] : memref<2x25xf32, #tpu.memory_space<smem>>
    %602 = vector.broadcast %601 : f32 to vector<1x1x256xf32>
    %603 = arith.mulf %602, %600 : vector<1x1x256xf32>
    %604 = arith.addf %594, %603 : vector<1x1x256xf32>
    %c253_i32_227 = arith.constant 253 : i32
    %605 = tpu.dynamic_rotate %400 by %c253_i32_227 dim 2 : vector<1x1x256xf32>, i32 -> vector<1x1x256xf32>
    %606 = arith.mulf %605, %415 : vector<1x1x256xf32>
    %c1_228 = arith.constant 1 : index
    %c13_229 = arith.constant 13 : index
    %607 = memref.load %arg6[%c1_228, %c13_229] : memref<2x25xf32, #tpu.memory_space<smem>>
    %608 = vector.broadcast %607 : f32 to vector<1x1x256xf32>
    %609 = arith.mulf %608, %606 : vector<1x1x256xf32>
    %610 = arith.addf %598, %609 : vector<1x1x256xf32>
    %c250_i32 = arith.constant 250 : i32
    %611 = tpu.dynamic_rotate %397 by %c250_i32 dim 2 : vector<1x1x256xf32>, i32 -> vector<1x1x256xf32>
    %612 = arith.mulf %611, %420 : vector<1x1x256xf32>
    %c0_230 = arith.constant 0 : index
    %c14_231 = arith.constant 14 : index
    %613 = memref.load %arg6[%c0_230, %c14_231] : memref<2x25xf32, #tpu.memory_space<smem>>
    %614 = vector.broadcast %613 : f32 to vector<1x1x256xf32>
    %615 = arith.mulf %614, %612 : vector<1x1x256xf32>
    %616 = arith.addf %604, %615 : vector<1x1x256xf32>
    %c250_i32_232 = arith.constant 250 : i32
    %617 = tpu.dynamic_rotate %400 by %c250_i32_232 dim 2 : vector<1x1x256xf32>, i32 -> vector<1x1x256xf32>
    %618 = arith.mulf %617, %420 : vector<1x1x256xf32>
    %c1_233 = arith.constant 1 : index
    %c14_234 = arith.constant 14 : index
    %619 = memref.load %arg6[%c1_233, %c14_234] : memref<2x25xf32, #tpu.memory_space<smem>>
    %620 = vector.broadcast %619 : f32 to vector<1x1x256xf32>
    %621 = arith.mulf %620, %618 : vector<1x1x256xf32>
    %622 = arith.addf %610, %621 : vector<1x1x256xf32>
    %623 = arith.mulf %435, %405 : vector<1x1x256xf32>
    %c214_i32 = arith.constant 214 : i32
    %624 = tpu.dynamic_rotate %397 by %c214_i32 dim 2 : vector<1x1x256xf32>, i32 -> vector<1x1x256xf32>
    %625 = arith.mulf %624, %623 : vector<1x1x256xf32>
    %c0_235 = arith.constant 0 : index
    %c15_236 = arith.constant 15 : index
    %626 = memref.load %arg6[%c0_235, %c15_236] : memref<2x25xf32, #tpu.memory_space<smem>>
    %627 = vector.broadcast %626 : f32 to vector<1x1x256xf32>
    %628 = arith.mulf %627, %625 : vector<1x1x256xf32>
    %629 = arith.addf %616, %628 : vector<1x1x256xf32>
    %c214_i32_237 = arith.constant 214 : i32
    %630 = tpu.dynamic_rotate %400 by %c214_i32_237 dim 2 : vector<1x1x256xf32>, i32 -> vector<1x1x256xf32>
    %631 = arith.mulf %630, %623 : vector<1x1x256xf32>
    %c1_238 = arith.constant 1 : index
    %c15_239 = arith.constant 15 : index
    %632 = memref.load %arg6[%c1_238, %c15_239] : memref<2x25xf32, #tpu.memory_space<smem>>
    %633 = vector.broadcast %632 : f32 to vector<1x1x256xf32>
    %634 = arith.mulf %633, %631 : vector<1x1x256xf32>
    %635 = arith.addf %622, %634 : vector<1x1x256xf32>
    %636 = arith.mulf %435, %410 : vector<1x1x256xf32>
    %c211_i32 = arith.constant 211 : i32
    %637 = tpu.dynamic_rotate %397 by %c211_i32 dim 2 : vector<1x1x256xf32>, i32 -> vector<1x1x256xf32>
    %638 = arith.mulf %637, %636 : vector<1x1x256xf32>
    %c0_240 = arith.constant 0 : index
    %c16_241 = arith.constant 16 : index
    %639 = memref.load %arg6[%c0_240, %c16_241] : memref<2x25xf32, #tpu.memory_space<smem>>
    %640 = vector.broadcast %639 : f32 to vector<1x1x256xf32>
    %641 = arith.mulf %640, %638 : vector<1x1x256xf32>
    %642 = arith.addf %629, %641 : vector<1x1x256xf32>
    %c211_i32_242 = arith.constant 211 : i32
    %643 = tpu.dynamic_rotate %400 by %c211_i32_242 dim 2 : vector<1x1x256xf32>, i32 -> vector<1x1x256xf32>
    %644 = arith.mulf %643, %636 : vector<1x1x256xf32>
    %c1_243 = arith.constant 1 : index
    %c16_244 = arith.constant 16 : index
    %645 = memref.load %arg6[%c1_243, %c16_244] : memref<2x25xf32, #tpu.memory_space<smem>>
    %646 = vector.broadcast %645 : f32 to vector<1x1x256xf32>
    %647 = arith.mulf %646, %644 : vector<1x1x256xf32>
    %648 = arith.addf %635, %647 : vector<1x1x256xf32>
    %c208_i32 = arith.constant 208 : i32
    %649 = tpu.dynamic_rotate %397 by %c208_i32 dim 2 : vector<1x1x256xf32>, i32 -> vector<1x1x256xf32>
    %650 = arith.mulf %649, %435 : vector<1x1x256xf32>
    %c0_245 = arith.constant 0 : index
    %c17_246 = arith.constant 17 : index
    %651 = memref.load %arg6[%c0_245, %c17_246] : memref<2x25xf32, #tpu.memory_space<smem>>
    %652 = vector.broadcast %651 : f32 to vector<1x1x256xf32>
    %653 = arith.mulf %652, %650 : vector<1x1x256xf32>
    %654 = arith.addf %642, %653 : vector<1x1x256xf32>
    %c208_i32_247 = arith.constant 208 : i32
    %655 = tpu.dynamic_rotate %400 by %c208_i32_247 dim 2 : vector<1x1x256xf32>, i32 -> vector<1x1x256xf32>
    %656 = arith.mulf %655, %435 : vector<1x1x256xf32>
    %c1_248 = arith.constant 1 : index
    %c17_249 = arith.constant 17 : index
    %657 = memref.load %arg6[%c1_248, %c17_249] : memref<2x25xf32, #tpu.memory_space<smem>>
    %658 = vector.broadcast %657 : f32 to vector<1x1x256xf32>
    %659 = arith.mulf %658, %656 : vector<1x1x256xf32>
    %660 = arith.addf %648, %659 : vector<1x1x256xf32>
    %661 = arith.mulf %435, %415 : vector<1x1x256xf32>
    %c205_i32 = arith.constant 205 : i32
    %662 = tpu.dynamic_rotate %397 by %c205_i32 dim 2 : vector<1x1x256xf32>, i32 -> vector<1x1x256xf32>
    %663 = arith.mulf %662, %661 : vector<1x1x256xf32>
    %c0_250 = arith.constant 0 : index
    %c18_251 = arith.constant 18 : index
    %664 = memref.load %arg6[%c0_250, %c18_251] : memref<2x25xf32, #tpu.memory_space<smem>>
    %665 = vector.broadcast %664 : f32 to vector<1x1x256xf32>
    %666 = arith.mulf %665, %663 : vector<1x1x256xf32>
    %667 = arith.addf %654, %666 : vector<1x1x256xf32>
    %c205_i32_252 = arith.constant 205 : i32
    %668 = tpu.dynamic_rotate %400 by %c205_i32_252 dim 2 : vector<1x1x256xf32>, i32 -> vector<1x1x256xf32>
    %669 = arith.mulf %668, %661 : vector<1x1x256xf32>
    %c1_253 = arith.constant 1 : index
    %c18_254 = arith.constant 18 : index
    %670 = memref.load %arg6[%c1_253, %c18_254] : memref<2x25xf32, #tpu.memory_space<smem>>
    %671 = vector.broadcast %670 : f32 to vector<1x1x256xf32>
    %672 = arith.mulf %671, %669 : vector<1x1x256xf32>
    %673 = arith.addf %660, %672 : vector<1x1x256xf32>
    %674 = arith.mulf %435, %420 : vector<1x1x256xf32>
    %c202_i32 = arith.constant 202 : i32
    %675 = tpu.dynamic_rotate %397 by %c202_i32 dim 2 : vector<1x1x256xf32>, i32 -> vector<1x1x256xf32>
    %676 = arith.mulf %675, %674 : vector<1x1x256xf32>
    %c0_255 = arith.constant 0 : index
    %c19_256 = arith.constant 19 : index
    %677 = memref.load %arg6[%c0_255, %c19_256] : memref<2x25xf32, #tpu.memory_space<smem>>
    %678 = vector.broadcast %677 : f32 to vector<1x1x256xf32>
    %679 = arith.mulf %678, %676 : vector<1x1x256xf32>
    %680 = arith.addf %667, %679 : vector<1x1x256xf32>
    %c202_i32_257 = arith.constant 202 : i32
    %681 = tpu.dynamic_rotate %400 by %c202_i32_257 dim 2 : vector<1x1x256xf32>, i32 -> vector<1x1x256xf32>
    %682 = arith.mulf %681, %674 : vector<1x1x256xf32>
    %c1_258 = arith.constant 1 : index
    %c19_259 = arith.constant 19 : index
    %683 = memref.load %arg6[%c1_258, %c19_259] : memref<2x25xf32, #tpu.memory_space<smem>>
    %684 = vector.broadcast %683 : f32 to vector<1x1x256xf32>
    %685 = arith.mulf %684, %682 : vector<1x1x256xf32>
    %686 = arith.addf %673, %685 : vector<1x1x256xf32>
    %687 = arith.mulf %440, %405 : vector<1x1x256xf32>
    %c166_i32 = arith.constant 166 : i32
    %688 = tpu.dynamic_rotate %397 by %c166_i32 dim 2 : vector<1x1x256xf32>, i32 -> vector<1x1x256xf32>
    %689 = arith.mulf %688, %687 : vector<1x1x256xf32>
    %c0_260 = arith.constant 0 : index
    %c20_261 = arith.constant 20 : index
    %690 = memref.load %arg6[%c0_260, %c20_261] : memref<2x25xf32, #tpu.memory_space<smem>>
    %691 = vector.broadcast %690 : f32 to vector<1x1x256xf32>
    %692 = arith.mulf %691, %689 : vector<1x1x256xf32>
    %693 = arith.addf %680, %692 : vector<1x1x256xf32>
    %c166_i32_262 = arith.constant 166 : i32
    %694 = tpu.dynamic_rotate %400 by %c166_i32_262 dim 2 : vector<1x1x256xf32>, i32 -> vector<1x1x256xf32>
    %695 = arith.mulf %694, %687 : vector<1x1x256xf32>
    %c1_263 = arith.constant 1 : index
    %c20_264 = arith.constant 20 : index
    %696 = memref.load %arg6[%c1_263, %c20_264] : memref<2x25xf32, #tpu.memory_space<smem>>
    %697 = vector.broadcast %696 : f32 to vector<1x1x256xf32>
    %698 = arith.mulf %697, %695 : vector<1x1x256xf32>
    %699 = arith.addf %686, %698 : vector<1x1x256xf32>
    %700 = arith.mulf %440, %410 : vector<1x1x256xf32>
    %c163_i32 = arith.constant 163 : i32
    %701 = tpu.dynamic_rotate %397 by %c163_i32 dim 2 : vector<1x1x256xf32>, i32 -> vector<1x1x256xf32>
    %702 = arith.mulf %701, %700 : vector<1x1x256xf32>
    %c0_265 = arith.constant 0 : index
    %c21_266 = arith.constant 21 : index
    %703 = memref.load %arg6[%c0_265, %c21_266] : memref<2x25xf32, #tpu.memory_space<smem>>
    %704 = vector.broadcast %703 : f32 to vector<1x1x256xf32>
    %705 = arith.mulf %704, %702 : vector<1x1x256xf32>
    %706 = arith.addf %693, %705 : vector<1x1x256xf32>
    %c163_i32_267 = arith.constant 163 : i32
    %707 = tpu.dynamic_rotate %400 by %c163_i32_267 dim 2 : vector<1x1x256xf32>, i32 -> vector<1x1x256xf32>
    %708 = arith.mulf %707, %700 : vector<1x1x256xf32>
    %c1_268 = arith.constant 1 : index
    %c21_269 = arith.constant 21 : index
    %709 = memref.load %arg6[%c1_268, %c21_269] : memref<2x25xf32, #tpu.memory_space<smem>>
    %710 = vector.broadcast %709 : f32 to vector<1x1x256xf32>
    %711 = arith.mulf %710, %708 : vector<1x1x256xf32>
    %712 = arith.addf %699, %711 : vector<1x1x256xf32>
    %c160_i32 = arith.constant 160 : i32
    %713 = tpu.dynamic_rotate %397 by %c160_i32 dim 2 : vector<1x1x256xf32>, i32 -> vector<1x1x256xf32>
    %714 = arith.mulf %713, %440 : vector<1x1x256xf32>
    %c0_270 = arith.constant 0 : index
    %c22_271 = arith.constant 22 : index
    %715 = memref.load %arg6[%c0_270, %c22_271] : memref<2x25xf32, #tpu.memory_space<smem>>
    %716 = vector.broadcast %715 : f32 to vector<1x1x256xf32>
    %717 = arith.mulf %716, %714 : vector<1x1x256xf32>
    %718 = arith.addf %706, %717 : vector<1x1x256xf32>
    %c160_i32_272 = arith.constant 160 : i32
    %719 = tpu.dynamic_rotate %400 by %c160_i32_272 dim 2 : vector<1x1x256xf32>, i32 -> vector<1x1x256xf32>
    %720 = arith.mulf %719, %440 : vector<1x1x256xf32>
    %c1_273 = arith.constant 1 : index
    %c22_274 = arith.constant 22 : index
    %721 = memref.load %arg6[%c1_273, %c22_274] : memref<2x25xf32, #tpu.memory_space<smem>>
    %722 = vector.broadcast %721 : f32 to vector<1x1x256xf32>
    %723 = arith.mulf %722, %720 : vector<1x1x256xf32>
    %724 = arith.addf %712, %723 : vector<1x1x256xf32>
    %725 = arith.mulf %440, %415 : vector<1x1x256xf32>
    %c157_i32 = arith.constant 157 : i32
    %726 = tpu.dynamic_rotate %397 by %c157_i32 dim 2 : vector<1x1x256xf32>, i32 -> vector<1x1x256xf32>
    %727 = arith.mulf %726, %725 : vector<1x1x256xf32>
    %c0_275 = arith.constant 0 : index
    %c23_276 = arith.constant 23 : index
    %728 = memref.load %arg6[%c0_275, %c23_276] : memref<2x25xf32, #tpu.memory_space<smem>>
    %729 = vector.broadcast %728 : f32 to vector<1x1x256xf32>
    %730 = arith.mulf %729, %727 : vector<1x1x256xf32>
    %731 = arith.addf %718, %730 : vector<1x1x256xf32>
    %c157_i32_277 = arith.constant 157 : i32
    %732 = tpu.dynamic_rotate %400 by %c157_i32_277 dim 2 : vector<1x1x256xf32>, i32 -> vector<1x1x256xf32>
    %733 = arith.mulf %732, %725 : vector<1x1x256xf32>
    %c1_278 = arith.constant 1 : index
    %c23_279 = arith.constant 23 : index
    %734 = memref.load %arg6[%c1_278, %c23_279] : memref<2x25xf32, #tpu.memory_space<smem>>
    %735 = vector.broadcast %734 : f32 to vector<1x1x256xf32>
    %736 = arith.mulf %735, %733 : vector<1x1x256xf32>
    %737 = arith.addf %724, %736 : vector<1x1x256xf32>
    %738 = arith.mulf %440, %420 : vector<1x1x256xf32>
    %c154_i32 = arith.constant 154 : i32
    %739 = tpu.dynamic_rotate %397 by %c154_i32 dim 2 : vector<1x1x256xf32>, i32 -> vector<1x1x256xf32>
    %740 = arith.mulf %739, %738 : vector<1x1x256xf32>
    %c0_280 = arith.constant 0 : index
    %c24_281 = arith.constant 24 : index
    %741 = memref.load %arg6[%c0_280, %c24_281] : memref<2x25xf32, #tpu.memory_space<smem>>
    %742 = vector.broadcast %741 : f32 to vector<1x1x256xf32>
    %743 = arith.mulf %742, %740 : vector<1x1x256xf32>
    %744 = arith.addf %731, %743 : vector<1x1x256xf32>
    %c154_i32_282 = arith.constant 154 : i32
    %745 = tpu.dynamic_rotate %400 by %c154_i32_282 dim 2 : vector<1x1x256xf32>, i32 -> vector<1x1x256xf32>
    %746 = arith.mulf %745, %738 : vector<1x1x256xf32>
    %c1_283 = arith.constant 1 : index
    %c24_284 = arith.constant 24 : index
    %747 = memref.load %arg6[%c1_283, %c24_284] : memref<2x25xf32, #tpu.memory_space<smem>>
    %748 = vector.broadcast %747 : f32 to vector<1x1x256xf32>
    %749 = arith.mulf %748, %746 : vector<1x1x256xf32>
    %750 = arith.addf %737, %749 : vector<1x1x256xf32>
    %c0_285 = arith.constant 0 : index
    %c0_286 = arith.constant 0 : index
    %751 = memref.load %arg7[%c0_285, %c0_286] : memref<1x2xf32, #tpu.memory_space<smem>>
    %752 = vector.broadcast %751 : f32 to vector<1x1x256xf32>
    %753 = arith.addf %744, %752 : vector<1x1x256xf32>
    %c0_287 = arith.constant 0 : index
    %c1_288 = arith.constant 1 : index
    %754 = memref.load %arg7[%c0_287, %c1_288] : memref<1x2xf32, #tpu.memory_space<smem>>
    %755 = vector.broadcast %754 : f32 to vector<1x1x256xf32>
    %756 = arith.addf %750, %755 : vector<1x1x256xf32>
    %c0_289 = arith.constant 0 : index
    %c0_290 = arith.constant 0 : index
    %757 = memref.load %arg8[%c0_289, %c0_290] : memref<1x2xf32, #tpu.memory_space<smem>>
    %758 = vector.broadcast %757 : f32 to vector<1x1x256xf32>
    %759 = arith.mulf %758, %753 : vector<1x1x256xf32>
    %c0_291 = arith.constant 0 : index
    %c1_292 = arith.constant 1 : index
    %760 = memref.load %arg8[%c0_291, %c1_292] : memref<1x2xf32, #tpu.memory_space<smem>>
    %761 = vector.broadcast %760 : f32 to vector<1x1x256xf32>
    %762 = arith.mulf %761, %756 : vector<1x1x256xf32>
    %763 = arith.addf %759, %762 : vector<1x1x256xf32>
    %c0_293 = arith.constant 0 : index
    %c0_294 = arith.constant 0 : index
    %764 = memref.load %arg9[%c0_293, %c0_294] : memref<1x1xf32, #tpu.memory_space<smem>>
    %765 = vector.broadcast %764 : f32 to vector<1x1x256xf32>
    %766 = arith.addf %763, %765 : vector<1x1x256xf32>
    %767 = vector.broadcast %766 : vector<1x1x256xf32> to vector<1x4x256xf32>
    %768 = arith.mulf %767, %33 : vector<1x4x256xf32>
    %c0_295 = arith.constant 0 : index
    %c0_296 = arith.constant 0 : index
    %c0_297 = arith.constant 0 : index
    %769 = vector.load %arg10[%c0_295, %c0_296, %c0_297] : memref<1x4x256xf32, #tpu.memory_space<vmem>>, vector<1x4x256xf32>
    tpu.vector_store %arg10[%c0_295, %c0_296, %c0_297], %768 {strides = array<i32>} : memref<1x4x256xf32, #tpu.memory_space<vmem>>, vector<1x4x256xf32>,
    return
  }
  func.func @transform_0(%arg0: i32) -> (i32, i32, i32) {
    %c0_i32 = arith.constant 0 : i32
    %c0_i32_0 = arith.constant 0 : i32
    %c0_i32_1 = arith.constant 0 : i32
    return %arg0, %c0_i32, %c0_i32_0 : i32, i32, i32
  }
  func.func @transform_1(%arg0: i32) -> (i32, i32) {
    %c0_i32 = arith.constant 0 : i32
    %c0_i32_0 = arith.constant 0 : i32
    %c0_i32_1 = arith.constant 0 : i32
    return %c0_i32, %c0_i32_0 : i32, i32
  }
  func.func @transform_2(%arg0: i32) -> (i32, i32) {
    %c0_i32 = arith.constant 0 : i32
    %c0_i32_0 = arith.constant 0 : i32
    %c0_i32_1 = arith.constant 0 : i32
    return %c0_i32, %c0_i32_0 : i32, i32
  }
  func.func @transform_3(%arg0: i32) -> (i32, i32) {
    %c0_i32 = arith.constant 0 : i32
    %c0_i32_0 = arith.constant 0 : i32
    %c0_i32_1 = arith.constant 0 : i32
    return %c0_i32, %c0_i32_0 : i32, i32
  }
  func.func @transform_4(%arg0: i32) -> (i32, i32) {
    %c0_i32 = arith.constant 0 : i32
    %c0_i32_0 = arith.constant 0 : i32
    %c0_i32_1 = arith.constant 0 : i32
    return %c0_i32, %c0_i32_0 : i32, i32
  }
  func.func @transform_5(%arg0: i32) -> (i32, i32) {
    %c0_i32 = arith.constant 0 : i32
    %c0_i32_0 = arith.constant 0 : i32
    %c0_i32_1 = arith.constant 0 : i32
    return %c0_i32, %c0_i32_0 : i32, i32
  }
  func.func @transform_6(%arg0: i32) -> (i32, i32) {
    %c0_i32 = arith.constant 0 : i32
    %c0_i32_0 = arith.constant 0 : i32
    %c0_i32_1 = arith.constant 0 : i32
    return %c0_i32, %c0_i32_0 : i32, i32
  }
  func.func @transform_7(%arg0: i32) -> (i32, i32) {
    %c0_i32 = arith.constant 0 : i32
    %c0_i32_0 = arith.constant 0 : i32
    %c0_i32_1 = arith.constant 0 : i32
    return %c0_i32, %c0_i32_0 : i32, i32
  }
  func.func @transform_8(%arg0: i32) -> (i32, i32) {
    %c0_i32 = arith.constant 0 : i32
    %c0_i32_0 = arith.constant 0 : i32
    %c0_i32_1 = arith.constant 0 : i32
    return %c0_i32, %c0_i32_0 : i32, i32
  }
  func.func @transform_9(%arg0: i32) -> (i32, i32, i32) {
    %c0_i32 = arith.constant 0 : i32
    %c0_i32_0 = arith.constant 0 : i32
    %c0_i32_1 = arith.constant 0 : i32
    return %arg0, %c0_i32, %c0_i32_0 : i32, i32, i32
  }
}

</mosaic_0001>

<llo_original>
// kernel: csa_forward.1
$region0: #{csa_forward.1}
  #allocation0 [shape = 'u32[]', space=smem, size = 0x4, offset = 0x4, fixed_abs, tag = 'smem constant byte address 0x4 - core index']
  #allocation1 [shape = 'u32[144,128]{1,0:T(1,128)}', space=vmem, size = 0x12000, scoped, tag = 'internal scratch']
  #allocation2 [shape = 'f32[1,1]{1,0:T(1,128)S(6)}', space=smem, size = 0x200, scoped, tag = 'scoped memory for csa_forward.1']
  %s0 = inlined_call_operand.vmem [shape: f32[2,4,256], index: 0, kind: input, shape index: {}]
  %s1 = inlined_call_operand.vmem [shape: f32[4,4], index: 1, kind: input, shape index: {}]
  %s2 = inlined_call_operand.vmem [shape: f32[4,1], index: 2, kind: input, shape index: {}]
  %s3 = inlined_call_operand.vmem [shape: f32[2,25], index: 3, kind: input, shape index: {}]
  %s4 = inlined_call_operand.vmem [shape: f32[1,2], index: 4, kind: input, shape index: {}]
  %s5 = inlined_call_operand.vmem [shape: f32[2,25], index: 5, kind: input, shape index: {}]
  %s6 = inlined_call_operand.vmem [shape: f32[1,2], index: 6, kind: input, shape index: {}]
  %s7 = inlined_call_operand.vmem [shape: f32[1,2], index: 7, kind: input, shape index: {}]
  %s8 = inlined_call_operand.<no memory space> [shape: f32[1,1], index: 8, kind: input, shape index: {}]
  %s9 = inlined_call_operand.vmem [shape: f32[2,4,256], index: 9, kind: output, shape index: {}]
  %s10 = sld [smem:[#allocation0]]
  $region89: #{csa_forward.1} parent=0
    _
  %s12 = ssub.s32 1, %s10
  %s13 = scalar_select 0, %s12, %s10
  %14 = sst [smem:[#allocation2]] %s8
  $region1: #{csa_forward.1} parent=0
    #allocation3 [shape = 'u8[1024]{0}', space=smem, size = 0x400, scoped, tag = 'input window, operand 3, single buffered']
    #allocation4 [shape = 's32[2]{0}', space=sflag, size = 0x8, scoped, tag = 'scoped memory for csa_forward.1']
    #allocation5 [shape = 'u8[512]{0}', space=smem, size = 0x200, scoped, tag = 'input window, operand 4, single buffered']
    #allocation6 [shape = 's32[1]{0}', space=sflag, size = 0x4, scoped, tag = 'scoped memory for csa_forward.1']
    #allocation7 [shape = 'u8[1024]{0}', space=smem, size = 0x400, scoped, tag = 'input window, operand 5, single buffered']
    #allocation8 [shape = 'u8[512]{0}', space=smem, size = 0x200, scoped, tag = 'input window, operand 6, single buffered']
    #allocation9 [shape = 's32[1]{0}', space=sflag, size = 0x4, scoped, tag = 'scoped memory for csa_forward.1']
    #allocation10 [shape = 'u8[512]{0}', space=smem, size = 0x200, scoped, tag = 'input window, operand 7, single buffered']
    %15 = vsyncpa [#allocation4], 0
    %16 = vsyncpa [#allocation6], 0
    %17 = vsyncpa [#allocation9], 0
    loop: start=0, step=1, limit=4
    $region2: #{csa_forward.1} parent=1 // loop_pre_header
      _
    $region3: #{csa_forward.1} parent=1 // loop_header
      %s19 = sphi 0, %s23
      %p20 = scmp.ge.s32.totalorder %s19, 4
      %s29 = sphi 0, %s31
      %s32 = sphi 0, %s29
      %s33 = sphi 0, %s32
      %s49 = sphi 0, %s33
      %s53 = sphi 0, %s53
      %s55 = sphi 0, %s53
      %s56 = sphi 0, %s55
      %s70 = sphi 0, %s56
      %s74 = sphi 0, %s74
      %s76 = sphi 0, %s74
      %s77 = sphi 0, %s76
      %s91 = sphi 0, %s77
      %s95 = sphi 0, %s95
      %s97 = sphi 0, %s95
      %s98 = sphi 0, %s97
      %s112 = sphi 0, %s98
      %s116 = sphi 0, %s116
      %s118 = sphi 0, %s116
      %s119 = sphi 0, %s118
      %s133 = sphi 0, %s119
      %s137 = sphi 0, %s137
      %s139 = sphi 0, %s137
      %s140 = sphi 0, %s139
      %s154 = sphi 0, %s140
      %s158 = sphi 0, %s158
      %s160 = sphi 0, %s158
      %s161 = sphi 0, %s160
      %s175 = sphi 0, %s161
      %s179 = sphi 0, %s179
      %s181 = sphi 0, %s179
      %s182 = sphi 0, %s181
      %s196 = sphi 0, %s182
      %s200 = sphi 0, %s200
      %s202 = sphi 0, %s200
      %s203 = sphi 0, %s202
      %s217 = sphi 0, %s203
      %s223 = sphi 0, %s225
      %s226 = sphi 0, %s223
      %s227 = sphi 0, %s226
      %s243 = sphi 0, %s227
    $region4: #{csa_forward.1} parent=1 // loop_header_branch
      %22 = sbr.rel (%p20) target = $region8
    $region5: #{csa_forward.1} parent=1 // loop_body
      %s24 = ssub.s32 %s19, 1
      %s25 = ssub.s32 %s19, 2
      %s26 = sadd.s32 %s19, 1
      %s27 = ssub.s32 %s19, %s26
      %p28 = scmp.eq.s32.totalorder %s27, 0
      %s30 = sadd.s32 %s29, 1
      %s31 = scalar_select %p28, %s29, %s30
      %p34 = pneg %p28
      %p35 = scmp.eq.s32.totalorder %s19, 1
      %p36 = por %p34, %p35
      %p37 = scmp.ne.s32.totalorder %s29, %s32
      %p38 = scmp.eq.s32.totalorder %s19, 0
      %p39 = por %p37, %p38
      %p40 = scmp.ne.s32.totalorder %s29, %s32
      %p41 = scmp.eq.s32.totalorder %s24, 1
      %p42 = por %p40, %p41
      %p43 = scmp.ne.s32.totalorder %s32, %s33
      %p44 = scmp.eq.s32.totalorder %s24, 0
      %p45 = por %p43, %p44
      %p46 = scmp.ne.s32.totalorder %s32, %s33
      %p47 = scmp.eq.s32.totalorder %s25, 1
      %p48 = por %p46, %p47
      %p50 = scmp.ne.s32.totalorder %s33, %s49
      %p51 = scmp.eq.s32.totalorder %s25, 0
      %p52 = por %p50, %p51
      %s54 = sadd.s32 %s53, 1
      %p57 = scmp.eq.s32.totalorder %s19, 1
      %p58 = scmp.ne.s32.totalorder %s53, %s55
      %p59 = scmp.eq.s32.totalorder %s19, 0
      %p60 = por %p58, %p59
      %p61 = scmp.ne.s32.totalorder %s53, %s55
      %p62 = scmp.eq.s32.totalorder %s24, 1
      %p63 = por %p61, %p62
      %p64 = scmp.ne.s32.totalorder %s55, %s56
      %p65 = scmp.eq.s32.totalorder %s24, 0
      %p66 = por %p64, %p65
      %p67 = scmp.ne.s32.totalorder %s55, %s56
      %p68 = scmp.eq.s32.totalorder %s25, 1
      %p69 = por %p67, %p68
      %p71 = scmp.ne.s32.totalorder %s56, %s70
      %p72 = scmp.eq.s32.totalorder %s25, 0
      %p73 = por %p71, %p72
      %s75 = sadd.s32 %s74, 1
      %p78 = scmp.eq.s32.totalorder %s19, 1
      %p79 = scmp.ne.s32.totalorder %s74, %s76
      %p80 = scmp.eq.s32.totalorder %s19, 0
      %p81 = por %p79, %p80
      %p82 = scmp.ne.s32.totalorder %s74, %s76
      %p83 = scmp.eq.s32.totalorder %s24, 1
      %p84 = por %p82, %p83
      %p85 = scmp.ne.s32.totalorder %s76, %s77
      %p86 = scmp.eq.s32.totalorder %s24, 0
      %p87 = por %p85, %p86
      %p88 = scmp.ne.s32.totalorder %s76, %s77
      %p89 = scmp.eq.s32.totalorder %s25, 1
      %p90 = por %p88, %p89
      %p92 = scmp.ne.s32.totalorder %s77, %s91
      %p93 = scmp.eq.s32.totalorder %s25, 0
      %p94 = por %p92, %p93
      %s96 = sadd.s32 %s95, 1
      %p99 = scmp.eq.s32.totalorder %s19, 1
      %p100 = scmp.ne.s32.totalorder %s95, %s97
      %p101 = scmp.eq.s32.totalorder %s19, 0
      %p102 = por %p100, %p101
      %p103 = scmp.ne.s32.totalorder %s95, %s97
      %p104 = scmp.eq.s32.totalorder %s24, 1
      %p105 = por %p103, %p104
      %p106 = scmp.ne.s32.totalorder %s97, %s98
      %p107 = scmp.eq.s32.totalorder %s24, 0
      %p108 = por %p106, %p107
      %p109 = scmp.ne.s32.totalorder %s97, %s98
      %p110 = scmp.eq.s32.totalorder %s25, 1
      %p111 = por %p109, %p110
      %p113 = scmp.ne.s32.totalorder %s98, %s112
      %p114 = scmp.eq.s32.totalorder %s25, 0
      %p115 = por %p113, %p114
      %s117 = sadd.s32 %s116, 1
      %p120 = scmp.eq.s32.totalorder %s19, 1
      %p121 = scmp.ne.s32.totalorder %s116, %s118
      %p122 = scmp.eq.s32.totalorder %s19, 0
      %p123 = por %p121, %p122
      %p124 = scmp.ne.s32.totalorder %s116, %s118
      %p125 = scmp.eq.s32.totalorder %s24, 1
      %p126 = por %p124, %p125
      %p127 = scmp.ne.s32.totalorder %s118, %s119
      %p128 = scmp.eq.s32.totalorder %s24, 0
      %p129 = por %p127, %p128
      %p130 = scmp.ne.s32.totalorder %s118, %s119
      %p131 = scmp.eq.s32.totalorder %s25, 1
      %p132 = por %p130, %p131
      %p134 = scmp.ne.s32.totalorder %s119, %s133
      %p135 = scmp.eq.s32.totalorder %s25, 0
      %p136 = por %p134, %p135
      %s138 = sadd.s32 %s137, 1
      %p141 = scmp.eq.s32.totalorder %s19, 1
      %p142 = scmp.ne.s32.totalorder %s137, %s139
      %p143 = scmp.eq.s32.totalorder %s19, 0
      %p144 = por %p142, %p143
      %p145 = scmp.ne.s32.totalorder %s137, %s139
      %p146 = scmp.eq.s32.totalorder %s24, 1
      %p147 = por %p145, %p146
      %p148 = scmp.ne.s32.totalorder %s139, %s140
      %p149 = scmp.eq.s32.totalorder %s24, 0
      %p150 = por %p148, %p149
      %p151 = scmp.ne.s32.totalorder %s139, %s140
      %p152 = scmp.eq.s32.totalorder %s25, 1
      %p153 = por %p151, %p152
      %p155 = scmp.ne.s32.totalorder %s140, %s154
      %p156 = scmp.eq.s32.totalorder %s25, 0
      %p157 = por %p155, %p156
      %s159 = sadd.s32 %s158, 1
      %p162 = scmp.eq.s32.totalorder %s19, 1
      %p163 = scmp.ne.s32.totalorder %s158, %s160
      %p164 = scmp.eq.s32.totalorder %s19, 0
      %p165 = por %p163, %p164
      %p166 = scmp.ne.s32.totalorder %s158, %s160
      %p167 = scmp.eq.s32.totalorder %s24, 1
      %p168 = por %p166, %p167
      %p169 = scmp.ne.s32.totalorder %s160, %s161
      %p170 = scmp.eq.s32.totalorder %s24, 0
      %p171 = por %p169, %p170
      %p172 = scmp.ne.s32.totalorder %s160, %s161
      %p173 = scmp.eq.s32.totalorder %s25, 1
      %p174 = por %p172, %p173
      %p176 = scmp.ne.s32.totalorder %s161, %s175
      %p177 = scmp.eq.s32.totalorder %s25, 0
      %p178 = por %p176, %p177
      %s180 = sadd.s32 %s179, 1
      %p183 = scmp.eq.s32.totalorder %s19, 1
      %p184 = scmp.ne.s32.totalorder %s179, %s181
      %p185 = scmp.eq.s32.totalorder %s19, 0
      %p186 = por %p184, %p185
      %p187 = scmp.ne.s32.totalorder %s179, %s181
      %p188 = scmp.eq.s32.totalorder %s24, 1
      %p189 = por %p187, %p188
      %p190 = scmp.ne.s32.totalorder %s181, %s182
      %p191 = scmp.eq.s32.totalorder %s24, 0
      %p192 = por %p190, %p191
      %p193 = scmp.ne.s32.totalorder %s181, %s182
      %p194 = scmp.eq.s32.totalorder %s25, 1
      %p195 = por %p193, %p194
      %p197 = scmp.ne.s32.totalorder %s182, %s196
      %p198 = scmp.eq.s32.totalorder %s25, 0
      %p199 = por %p197, %p198
      %s201 = sadd.s32 %s200, 1
      %p204 = scmp.eq.s32.totalorder %s19, 1
      %p205 = scmp.ne.s32.totalorder %s200, %s202
      %p206 = scmp.eq.s32.totalorder %s19, 0
      %p207 = por %p205, %p206
      %p208 = scmp.ne.s32.totalorder %s200, %s202
      %p209 = scmp.eq.s32.totalorder %s24, 1
      %p210 = por %p208, %p209
      %p211 = scmp.ne.s32.totalorder %s202, %s203
      %p212 = scmp.eq.s32.totalorder %s24, 0
      %p213 = por %p211, %p212
      %p214 = scmp.ne.s32.totalorder %s202, %s203
      %p215 = scmp.eq.s32.totalorder %s25, 1
      %p216 = por %p214, %p215
      %p218 = scmp.ne.s32.totalorder %s203, %s217
      %p219 = scmp.eq.s32.totalorder %s25, 0
      %p220 = por %p218, %p219
      %s221 = ssub.s32 %s19, %s26
      %p222 = scmp.eq.s32.totalorder %s221, 0
      %s224 = sadd.s32 %s223, 1
      %s225 = scalar_select %p222, %s223, %s224
      %p228 = pneg %p222
      %p229 = scmp.eq.s32.totalorder %s19, 1
      %p230 = por %p228, %p229
      %p231 = scmp.ne.s32.totalorder %s223, %s226
      %p232 = scmp.eq.s32.totalorder %s19, 0
      %p233 = por %p231, %p232
      %p234 = scmp.ne.s32.totalorder %s223, %s226
      %p235 = scmp.eq.s32.totalorder %s24, 1
      %p236 = por %p234, %p235
      %p237 = scmp.ne.s32.totalorder %s226, %s227
      %p238 = scmp.eq.s32.totalorder %s24, 0
      %p239 = por %p237, %p238
      %p240 = scmp.ne.s32.totalorder %s226, %s227
      %p241 = scmp.eq.s32.totalorder %s25, 1
      %p242 = por %p240, %p241
      %p244 = scmp.ne.s32.totalorder %s227, %s243
      %p245 = scmp.eq.s32.totalorder %s25, 0
      %p246 = por %p244, %p245
      %p247 = scmp.le.s32.totalorder 1, %s19
      %p248 = scmp.lt.s32.totalorder %s19, 3
      %p249 = pnand %p247, %p248
      %p250 = pneg %p249
      // Predicated region
      $region9: #{csa_forward.1} parent=5 // pred_check
        _
      $region10: #{csa_forward.1} parent=5 // pred_check_branch
        %252 = sbr.rel (%p249) target = $region12
      $region11: #{csa_forward.1} parent=5 // pred_region
        %s253 = ssub.s32 %s19, 1
        // Predicated region
        $region13: #{csa_forward.1} parent=11 // pred_check
          %p254 = pneg %p66
        $region14: #{csa_forward.1} parent=11 // pred_check_branch
          %256 = sbr.rel (%p254) target = $region16
        $region15: #{csa_forward.1} parent=11 // pred_region
          _
        $region16: #{csa_forward.1} parent=11 // pred_fallthru
          _
        // Predicated region
        $region17: #{csa_forward.1} parent=11 // pred_check
          %p257 = pneg %p87
        $region18: #{csa_forward.1} parent=11 // pred_check_branch
          %259 = sbr.rel (%p257) target = $region20
        $region19: #{csa_forward.1} parent=11 // pred_region
          _
        $region20: #{csa_forward.1} parent=11 // pred_fallthru
          _
        // Predicated region
        $region21: #{csa_forward.1} parent=11 // pred_check
          %p260 = pneg %p108
        $region22: #{csa_forward.1} parent=11 // pred_check_branch
          %262 = sbr.rel (%p260) target = $region24
        $region23: #{csa_forward.1} parent=11 // pred_region
          %s264 = ssub.s32 32, 32
          %265 = vsyncadd [#allocation4], %s264
          %s267 = sshll.u32 %s3, 4
          %s268 = int_to_ptr.vmem [resolvable:$true] %s267
          %270 = dma.vmem_to_smem %s268, 32, [#allocation3], [#allocation4]
        $region24: #{csa_forward.1} parent=11 // pred_fallthru
          _
        // Predicated region
        $region25: #{csa_forward.1} parent=11 // pred_check
          %p271 = pneg %p129
        $region26: #{csa_forward.1} parent=11 // pred_check_branch
          %273 = sbr.rel (%p271) target = $region28
        $region27: #{csa_forward.1} parent=11 // pred_region
          %s275 = ssub.s32 16, 16
          %276 = vsyncadd [#allocation6], %s275
          %s278 = sshll.u32 %s4, 4
          %s279 = int_to_ptr.vmem [resolvable:$true] %s278
          %281 = dma.vmem_to_smem %s279, 16, [#allocation5], [#allocation6]
        $region28: #{csa_forward.1} parent=11 // pred_fallthru
          _
        // Predicated region
        $region29: #{csa_forward.1} parent=11 // pred_check
          %p282 = pneg %p150
        $region30: #{csa_forward.1} parent=11 // pred_check_branch
          %284 = sbr.rel (%p282) target = $region32
        $region31: #{csa_forward.1} parent=11 // pred_region
          %s286 = ssub.s32 32, 32
          %287 = vsyncadd [#allocation6], %s286
          %s289 = sshll.u32 %s5, 4
          %s290 = int_to_ptr.vmem [resolvable:$true] %s289
          %292 = dma.vmem_to_smem %s290, 32, [#allocation7], [#allocation6]
        $region32: #{csa_forward.1} parent=11 // pred_fallthru
          _
        // Predicated region
        $region33: #{csa_forward.1} parent=11 // pred_check
          %p293 = pneg %p171
        $region34: #{csa_forward.1} parent=11 // pred_check_branch
          %295 = sbr.rel (%p293) target = $region36
        $region35: #{csa_forward.1} parent=11 // pred_region
          %s297 = ssub.s32 16, 16
          %298 = vsyncadd [#allocation9], %s297
          %s300 = sshll.u32 %s6, 4
          %s301 = int_to_ptr.vmem [resolvable:$true] %s300
          %303 = dma.vmem_to_smem %s301, 16, [#allocation8], [#allocation9]
        $region36: #{csa_forward.1} parent=11 // pred_fallthru
          _
        // Predicated region
        $region37: #{csa_forward.1} parent=11 // pred_check
          %p304 = pneg %p192
        $region38: #{csa_forward.1} parent=11 // pred_check_branch
          %306 = sbr.rel (%p304) target = $region40
        $region39: #{csa_forward.1} parent=11 // pred_region
          %s308 = ssub.s32 16, 16
          %309 = vsyncadd [#allocation9], %s308
          %s311 = sshll.u32 %s7, 4
          %s312 = int_to_ptr.vmem [resolvable:$true] %s311
          %314 = dma.vmem_to_smem %s312, 16, [#allocation10], [#allocation9]
        $region40: #{csa_forward.1} parent=11 // pred_fallthru
          _
        // Predicated region
        $region41: #{csa_forward.1} parent=11 // pred_check
          %p315 = pneg %p213
        $region42: #{csa_forward.1} parent=11 // pred_check_branch
          %317 = sbr.rel (%p315) target = $region44
        $region43: #{csa_forward.1} parent=11 // pred_region
          _
        $region44: #{csa_forward.1} parent=11 // pred_fallthru
          _
      $region12: #{csa_forward.1} parent=5 // pred_fallthru
        _
      %p318 = scmp.lt.s32.totalorder %s19, 2
      // Predicated region
      $region45: #{csa_forward.1} parent=5 // pred_check
        %p319 = pneg %p318
      $region46: #{csa_forward.1} parent=5 // pred_check_branch
        %321 = sbr.rel (%p319) target = $region48
      $region47: #{csa_forward.1} parent=5 // pred_region
        // Predicated region
        $region49: #{csa_forward.1} parent=47 // pred_check
          %p322 = pneg %p39
        $region50: #{csa_forward.1} parent=47 // pred_check_branch
          %324 = sbr.rel (%p322) target = $region52
        $region51: #{csa_forward.1} parent=47 // pred_region
          %p325 = scmp.lt.s32.totalorder %s19, 1
          %s326 = scalar_select %p325, %s19, 1
          %s327 = smul.addr %s326, 2
          %s328 = smul.addr %s327, 4
          %s329 = scalar_lea.vmem %s0, %s328
        $region52: #{csa_forward.1} parent=47 // pred_fallthru
          _
      $region48: #{csa_forward.1} parent=5 // pred_fallthru
        _
      %p330 = scmp.le.s32.totalorder 1, %s19
      %p331 = scmp.lt.s32.totalorder %s19, 3
      %p332 = pnand %p330, %p331
      %p333 = pneg %p332
      // Predicated region
      $region53: #{csa_forward.1} parent=5 // pred_check
        _
      $region54: #{csa_forward.1} parent=5 // pred_check_branch
        %335 = sbr.rel (%p332) target = $region56
      $region55: #{csa_forward.1} parent=5 // pred_region
        %s336 = ssub.s32 %s19, 1
        // Predicated region
        $region57: #{csa_forward.1} parent=55 // pred_check
          %p337 = pneg %p108
        $region58: #{csa_forward.1} parent=55 // pred_check_branch
          %339 = sbr.rel (%p337) target = $region60
        $region59: #{csa_forward.1} parent=55 // pred_region
          %340 = dma.done [#allocation4], 32
        $region60: #{csa_forward.1} parent=55 // pred_fallthru
          _
        // Predicated region
        $region61: #{csa_forward.1} parent=55 // pred_check
          %p341 = pneg %p129
        $region62: #{csa_forward.1} parent=55 // pred_check_branch
          %343 = sbr.rel (%p341) target = $region64
        $region63: #{csa_forward.1} parent=55 // pred_region
          %344 = dma.done [#allocation6], 16
        $region64: #{csa_forward.1} parent=55 // pred_fallthru
          _
        // Predicated region
        $region65: #{csa_forward.1} parent=55 // pred_check
          %p345 = pneg %p150
        $region66: #{csa_forward.1} parent=55 // pred_check_branch
          %347 = sbr.rel (%p345) target = $region68
        $region67: #{csa_forward.1} parent=55 // pred_region
          %348 = dma.done [#allocation6], 32
        $region68: #{csa_forward.1} parent=55 // pred_fallthru
          _
        // Predicated region
        $region69: #{csa_forward.1} parent=55 // pred_check
          %p349 = pneg %p171
        $region70: #{csa_forward.1} parent=55 // pred_check_branch
          %351 = sbr.rel (%p349) target = $region72
        $region71: #{csa_forward.1} parent=55 // pred_region
          %352 = dma.done [#allocation9], 16
        $region72: #{csa_forward.1} parent=55 // pred_fallthru
          _
        // Predicated region
        $region73: #{csa_forward.1} parent=55 // pred_check
          %p353 = pneg %p192
        $region74: #{csa_forward.1} parent=55 // pred_check_branch
          %355 = sbr.rel (%p353) target = $region76
        $region75: #{csa_forward.1} parent=55 // pred_region
          %356 = dma.done [#allocation9], 16
        $region76: #{csa_forward.1} parent=55 // pred_fallthru
          _
        %357 = sfence
        %p358 = scmp.lt.s32.totalorder %s24, 1
        %s359 = scalar_select %p358, %s24, 1
        %s360 = smul.addr %s359, 2
        %s361 = smul.addr %s360, 4
        %s362 = scalar_lea.vmem %s0, %s361
        %p363 = pneg %p45
        %p364 = pneg %p42
        %p365 = pneg %p66
        %p366 = pneg %p63
        %p367 = pneg %p87
        %p368 = pneg %p84
        %p369 = pneg %p108
        %p370 = pneg %p105
        %p371 = pneg %p129
        %p372 = pneg %p126
        %p373 = pneg %p150
        %p374 = pneg %p147
        %p375 = pneg %p171
        %p376 = pneg %p168
        %p377 = pneg %p192
        %p378 = pneg %p189
        %p379 = pneg %p213
        %p380 = pneg %p210
        %p381 = pneg %p239
        %p382 = pneg %p236
        %p383 = scmp.lt.s32.totalorder %s24, 1
        %s384 = scalar_select %p383, %s24, 1
        %s385 = smul.addr %s384, 2
        %s386 = smul.addr %s385, 4
        %s387 = scalar_lea.vmem %s9, %s386
        %p388 = scmp.lt.s32.totalorder %s24, 1
        %s389 = scalar_select %p388, %s24, 1
        %s390 = smul.addr %s389, 2
        %s391 = smul.addr %s390, 4
        %s392 = scalar_lea.vmem %s0, %s391
        %p393 = scmp.lt.s32.totalorder %s24, 1
        %s394 = scalar_select %p393, %s24, 1
        %s395 = smul.addr %s394, 2
        %s396 = smul.addr %s395, 4
        %s397 = scalar_lea.vmem %s9, %s396
        %v398 = vld [vmem:[%s392] sm:$0xff]
        %v400 = vcombine.high %v398, %v398
        %vm402 = vcmask 1043456
        %v403 = vsel %vm402, %v398, 0.0
        %v404 = vsel %vm402, %v400, 0.0
        %v405 = vadd.f32 %v403, %v404
        %406 = vadd.xlane.f32.xlu0 %v405
        %v407 = vpop.xlane.xlu0 %406
        %v408 = vrcp.pop 256.0
        %v409 = vmul.f32 %v407, %v408
        %v410 = vld [vmem:[%s1] sm:$0xf]
        %v411 = vld [vmem:[%s2] sm:$0xf]
        %v412 = vlaneseq
        %v413 = vshrl.u32 %v412, 7
        %v414 = vsub.s32 0, %v413
        %v415 = vrot.slane %v409, %v414
        %v416 = vmul.f32 %v410, %v415
        %v417 = vadd.f32 %v411, %v416
        %v418 = vlaneseq
        %v419 = vshrl.u32 %v418, 7
        %v420 = vsub.s32 1, %v419
        %v421 = vrot.slane %v409, %v420
        %v422 = vmul.f32 %v410, %v421
        %424 = vrot.lane.b32.xlu0 %v422, 127
        %v425 = vpop.permute.xlu0 %424
        %v427 = vadd.f32 %v417, %v425
        %v428 = vlaneseq
        %v429 = vshrl.u32 %v428, 7
        %v430 = vsub.s32 2, %v429
        %v431 = vrot.slane %v409, %v430
        %v432 = vmul.f32 %v410, %v431
        %434 = vrot.lane.b32.xlu0 %v432, 126
        %v435 = vpop.permute.xlu0 %434
        %v437 = vadd.f32 %v427, %v435
        %v438 = vlaneseq
        %v439 = vshrl.u32 %v438, 7
        %v440 = vsub.s32 3, %v439
        %v441 = vrot.slane %v409, %v440
        %v442 = vmul.f32 %v410, %v441
        %444 = vrot.lane.b32.xlu0 %v442, 125
        %v445 = vpop.permute.xlu0 %444
        %v447 = vadd.f32 %v437, %v445
        %449 = vset.pattern.permute.xlu0 0
        %450 = vperm.xlu0 %449, %v447
        %v451 = vpop.permute.xlu0 %450
        %v453 = vunpack.c.l.s4 839922192
        %v454 = vunpack.c.0.s8 %v453
        %v455 = vlaneseq
        %v456 = vshrl.u32 %v455, 7
        %v457 = vsub.s32 %v454, %v456
        %v458 = vrot.slane %v451, %v457
        %v460 = vmul.f32 %v398, %v458
        %v462 = vcombine.high %v460, %v460
        %v464 = vsel %vm402, %v460, -inf
        %v465 = vrot.slane %v464, 4
        %v466 = vmax.f32 %v464, %v465
        %v467 = vrot.slane %v466, 2
        %v468 = vmax.f32 %v466, %v467
        %v469 = vrot.slane %v468, 1
        %v470 = vmax.f32 %v468, %v469
        %v471 = vsel %vm402, %v462, -inf
        %v472 = vrot.slane %v471, 4
        %v473 = vmax.f32 %v471, %v472
        %v474 = vrot.slane %v473, 2
        %v475 = vmax.f32 %v473, %v474
        %v476 = vrot.slane %v475, 1
        %v477 = vmax.f32 %v475, %v476
        %v478 = vsel %vm402, %v460, 0.0
        %v479 = vrot.slane %v478, 4
        %v480 = vadd.f32 %v478, %v479
        %v481 = vrot.slane %v480, 2
        %v482 = vadd.f32 %v480, %v481
        %v483 = vrot.slane %v482, 1
        %v484 = vadd.f32 %v482, %v483
        %v485 = vsel %vm402, %v462, 0.0
        %v486 = vrot.slane %v485, 4
        %v487 = vadd.f32 %v485, %v486
        %v488 = vrot.slane %v487, 2
        %v489 = vadd.f32 %v487, %v488
        %v490 = vrot.slane %v489, 1
        %v491 = vadd.f32 %v489, %v490
        %v492 = vrcp.pop 4.0
        %v493 = vmul.f32 %v484, %v492
        %v494 = vmul.f32 %v491, %v492
        %v495 = vlaneseq
        %v496 = vand.u32 %v495, 127
        %v497 = vadd.s32 %v496, 128
        %v498 = vand.u32 %v496, 15
        %v499 = vand.u32 %v497, 15
        %v500 = vshra.s32 %v496, 4
        %v501 = vshra.s32 %v497, 4
        %vm502 = vcmp.ge.s32.totalorder %v498, 2
        %vm503 = vcmp.ge.s32.totalorder %v499, 2
        %v504 = vsel %vm502, 1.0, 0.0
        %v505 = vsel %vm503, 1.0, 0.0
        %vm506 = vcmp.ge.s32.totalorder %v498, 1
        %vm507 = vcmp.ge.s32.totalorder %v499, 1
        %v508 = vsel %vm506, 1.0, 0.0
        %v509 = vsel %vm507, 1.0, 0.0
        %vm510 = vcmp.lt.s32.totalorder %v498, 15
        %vm511 = vcmp.lt.s32.totalorder %v499, 15
        %v512 = vsel %vm510, 1.0, 0.0
        %v513 = vsel %vm511, 1.0, 0.0
        %vm514 = vcmp.lt.s32.totalorder %v498, 14
        %vm515 = vcmp.lt.s32.totalorder %v499, 14
        %v516 = vsel %vm514, 1.0, 0.0
        %v517 = vsel %vm515, 1.0, 0.0
        %vm518 = vcmp.ge.s32.totalorder %v500, 2
        %vm519 = vcmp.ge.s32.totalorder %v501, 2
        %v520 = vsel %vm518, 1.0, 0.0
        %v521 = vsel %vm519, 1.0, 0.0
        %vm522 = vcmp.ge.s32.totalorder %v500, 1
        %vm523 = vcmp.ge.s32.totalorder %v501, 1
        %v524 = vsel %vm522, 1.0, 0.0
        %v525 = vsel %vm523, 1.0, 0.0
        %vm526 = vcmp.lt.s32.totalorder %v500, 15
        %vm527 = vcmp.lt.s32.totalorder %v501, 15
        %v528 = vsel %vm526, 1.0, 0.0
        %v529 = vsel %vm527, 1.0, 0.0
        %vm530 = vcmp.lt.s32.totalorder %v500, 14
        %vm531 = vcmp.lt.s32.totalorder %v501, 14
        %v532 = vsel %vm530, 1.0, 0.0
        %v533 = vsel %vm531, 1.0, 0.0
        %v534 = vmul.f32 %v520, %v504
        %v535 = vmul.f32 %v521, %v505
        %536 = vrot.lane.b32.xlu0 %v470, 34
        %v537 = vpop.permute.xlu0 %536
        %538 = vrot.lane.b32.xlu0 %v477, 34
        %v539 = vpop.permute.xlu0 %538
        %vm540 = vcmp.lt.s32.totalorder %v496, 34
        %v541 = vsel %vm540, %v537, %v539
        %v542 = vsel %vm540, %v539, %v537
        %v543 = vmul.f32 %v542, %v534
        %v544 = vmul.f32 %v541, %v535
        %s545 = sld [smem:[#allocation3]]
        %v546 = vstv %s545
        %v547 = vmul.f32 %v546, %v543
        %v548 = vmul.f32 %v546, %v544
        %549 = vrot.lane.b32.xlu0 %v493, 34
        %v550 = vpop.permute.xlu0 %549
        %551 = vrot.lane.b32.xlu0 %v494, 34
        %v552 = vpop.permute.xlu0 %551
        %v553 = vsel %vm540, %v550, %v552
        %v554 = vsel %vm540, %v552, %v550
        %v555 = vmul.f32 %v554, %v534
        %v556 = vmul.f32 %v553, %v535
        %s557 = sld [smem:[#allocation3 + $0x80]]
        %v558 = vstv %s557
        %v559 = vmul.f32 %v558, %v555
        %v560 = vmul.f32 %v558, %v556
        %v561 = vmul.f32 %v520, %v508
        %v562 = vmul.f32 %v521, %v509
        %563 = vrot.lane.b32.xlu0 %v470, 33
        %v564 = vpop.permute.xlu0 %563
        %565 = vrot.lane.b32.xlu0 %v477, 33
        %v566 = vpop.permute.xlu0 %565
        %vm567 = vcmp.lt.s32.totalorder %v496, 33
        %v568 = vsel %vm567, %v564, %v566
        %v569 = vsel %vm567, %v566, %v564
        %v570 = vmul.f32 %v569, %v561
        %v571 = vmul.f32 %v568, %v562
        %s572 = sld [smem:[#allocation3 + $0x1]]
        %v573 = vstv %s572
        %v574 = vmul.f32 %v573, %v570
        %v575 = vmul.f32 %v573, %v571
        %v576 = vadd.f32 %v547, %v574
        %v577 = vadd.f32 %v548, %v575
        %578 = vrot.lane.b32.xlu0 %v493, 33
        %v579 = vpop.permute.xlu0 %578
        %580 = vrot.lane.b32.xlu0 %v494, 33
        %v581 = vpop.permute.xlu0 %580
        %v582 = vsel %vm567, %v579, %v581
        %v583 = vsel %vm567, %v581, %v579
        %v584 = vmul.f32 %v583, %v561
        %v585 = vmul.f32 %v582, %v562
        %s586 = sld [smem:[#allocation3 + $0x81]]
        %v587 = vstv %s586
        %v588 = vmul.f32 %v587, %v584
        %v589 = vmul.f32 %v587, %v585
        %v590 = vadd.f32 %v559, %v588
        %v591 = vadd.f32 %v560, %v589
        %592 = vrot.lane.b32.xlu0 %v470, 32
        %v593 = vpop.permute.xlu0 %592
        %594 = vrot.lane.b32.xlu0 %v477, 32
        %v595 = vpop.permute.xlu0 %594
        %vm596 = vcmp.lt.s32.totalorder %v496, 32
        %v597 = vsel %vm596, %v593, %v595
        %v598 = vsel %vm596, %v595, %v593
        %v599 = vmul.f32 %v598, %v520
        %v600 = vmul.f32 %v597, %v521
        %s601 = sld [smem:[#allocation3 + $0x2]]
        %v602 = vstv %s601
        %v603 = vmul.f32 %v602, %v599
        %v604 = vmul.f32 %v602, %v600
        %v605 = vadd.f32 %v576, %v603
        %v606 = vadd.f32 %v577, %v604
        %607 = vrot.lane.b32.xlu0 %v493, 32
        %v608 = vpop.permute.xlu0 %607
        %609 = vrot.lane.b32.xlu0 %v494, 32
        %v610 = vpop.permute.xlu0 %609
        %v611 = vsel %vm596, %v608, %v610
        %v612 = vsel %vm596, %v610, %v608
        %v613 = vmul.f32 %v612, %v520
        %v614 = vmul.f32 %v611, %v521
        %s615 = sld [smem:[#allocation3 + $0x82]]
        %v616 = vstv %s615
        %v617 = vmul.f32 %v616, %v613
        %v618 = vmul.f32 %v616, %v614
        %v619 = vadd.f32 %v590, %v617
        %v620 = vadd.f32 %v591, %v618
        %v621 = vmul.f32 %v520, %v512
        %v622 = vmul.f32 %v521, %v513
        %623 = vrot.lane.b32.xlu0 %v470, 31
        %v624 = vpop.permute.xlu0 %623
        %625 = vrot.lane.b32.xlu0 %v477, 31
        %v626 = vpop.permute.xlu0 %625
        %vm627 = vcmp.lt.s32.totalorder %v496, 31
        %v628 = vsel %vm627, %v624, %v626
        %v629 = vsel %vm627, %v626, %v624
        %v630 = vmul.f32 %v629, %v621
        %v631 = vmul.f32 %v628, %v622
        %s632 = sld [smem:[#allocation3 + $0x3]]
        %v633 = vstv %s632
        %v634 = vmul.f32 %v633, %v630
        %v635 = vmul.f32 %v633, %v631
        %v636 = vadd.f32 %v605, %v634
        %v637 = vadd.f32 %v606, %v635
        %638 = vrot.lane.b32.xlu0 %v493, 31
        %v639 = vpop.permute.xlu0 %638
        %640 = vrot.lane.b32.xlu0 %v494, 31
        %v641 = vpop.permute.xlu0 %640
        %v642 = vsel %vm627, %v639, %v641
        %v643 = vsel %vm627, %v641, %v639
        %v644 = vmul.f32 %v643, %v621
        %v645 = vmul.f32 %v642, %v622
        %s646 = sld [smem:[#allocation3 + $0x83]]
        %v647 = vstv %s646
        %v648 = vmul.f32 %v647, %v644
        %v649 = vmul.f32 %v647, %v645
        %v650 = vadd.f32 %v619, %v648
        %v651 = vadd.f32 %v620, %v649
        %v652 = vmul.f32 %v520, %v516
        %v653 = vmul.f32 %v521, %v517
        %654 = vrot.lane.b32.xlu0 %v470, 30
        %v655 = vpop.permute.xlu0 %654
        %656 = vrot.lane.b32.xlu0 %v477, 30
        %v657 = vpop.permute.xlu0 %656
        %vm658 = vcmp.lt.s32.totalorder %v496, 30
        %v659 = vsel %vm658, %v655, %v657
        %v660 = vsel %vm658, %v657, %v655
        %v661 = vmul.f32 %v660, %v652
        %v662 = vmul.f32 %v659, %v653
        %s663 = sld [smem:[#allocation3 + $0x4]]
        %v664 = vstv %s663
        %v665 = vmul.f32 %v664, %v661
        %v666 = vmul.f32 %v664, %v662
        %v667 = vadd.f32 %v636, %v665
        %v668 = vadd.f32 %v637, %v666
        %669 = vrot.lane.b32.xlu0 %v493, 30
        %v670 = vpop.permute.xlu0 %669
        %671 = vrot.lane.b32.xlu0 %v494, 30
        %v672 = vpop.permute.xlu0 %671
        %v673 = vsel %vm658, %v670, %v672
        %v674 = vsel %vm658, %v672, %v670
        %v675 = vmul.f32 %v674, %v652
        %v676 = vmul.f32 %v673, %v653
        %s677 = sld [smem:[#allocation3 + $0x84]]
        %v678 = vstv %s677
        %v679 = vmul.f32 %v678, %v675
        %v680 = vmul.f32 %v678, %v676
        %v681 = vadd.f32 %v650, %v679
        %v682 = vadd.f32 %v651, %v680
        %v683 = vmul.f32 %v524, %v504
        %v684 = vmul.f32 %v525, %v505
        %685 = vrot.lane.b32.xlu0 %v470, 18
        %v686 = vpop.permute.xlu0 %685
        %687 = vrot.lane.b32.xlu0 %v477, 18
        %v688 = vpop.permute.xlu0 %687
        %vm689 = vcmp.lt.s32.totalorder %v496, 18
        %v690 = vsel %vm689, %v686, %v688
        %v691 = vsel %vm689, %v688, %v686
        %v692 = vmul.f32 %v691, %v683
        %v693 = vmul.f32 %v690, %v684
        %s694 = sld [smem:[#allocation3 + $0x5]]
        %v695 = vstv %s694
        %v696 = vmul.f32 %v695, %v692
        %v697 = vmul.f32 %v695, %v693
        %v698 = vadd.f32 %v667, %v696
        %v699 = vadd.f32 %v668, %v697
        %700 = vrot.lane.b32.xlu0 %v493, 18
        %v701 = vpop.permute.xlu0 %700
        %702 = vrot.lane.b32.xlu0 %v494, 18
        %v703 = vpop.permute.xlu0 %702
        %v704 = vsel %vm689, %v701, %v703
        %v705 = vsel %vm689, %v703, %v701
        %v706 = vmul.f32 %v705, %v683
        %v707 = vmul.f32 %v704, %v684
        %s708 = sld [smem:[#allocation3 + $0x85]]
        %v709 = vstv %s708
        %v710 = vmul.f32 %v709, %v706
        %v711 = vmul.f32 %v709, %v707
        %v712 = vadd.f32 %v681, %v710
        %v713 = vadd.f32 %v682, %v711
        %v714 = vmul.f32 %v524, %v508
        %v715 = vmul.f32 %v525, %v509
        %716 = vrot.lane.b32.xlu0 %v470, 17
        %v717 = vpop.permute.xlu0 %716
        %718 = vrot.lane.b32.xlu0 %v477, 17
        %v719 = vpop.permute.xlu0 %718
        %vm720 = vcmp.lt.s32.totalorder %v496, 17
        %v721 = vsel %vm720, %v717, %v719
        %v722 = vsel %vm720, %v719, %v717
        %v723 = vmul.f32 %v722, %v714
        %v724 = vmul.f32 %v721, %v715
        %s725 = sld [smem:[#allocation3 + $0x6]]
        %v726 = vstv %s725
        %v727 = vmul.f32 %v726, %v723
        %v728 = vmul.f32 %v726, %v724
        %v729 = vadd.f32 %v698, %v727
        %v730 = vadd.f32 %v699, %v728
        %731 = vrot.lane.b32.xlu0 %v493, 17
        %v732 = vpop.permute.xlu0 %731
        %733 = vrot.lane.b32.xlu0 %v494, 17
        %v734 = vpop.permute.xlu0 %733
        %v735 = vsel %vm720, %v732, %v734
        %v736 = vsel %vm720, %v734, %v732
        %v737 = vmul.f32 %v736, %v714
        %v738 = vmul.f32 %v735, %v715
        %s739 = sld [smem:[#allocation3 + $0x86]]
        %v740 = vstv %s739
        %v741 = vmul.f32 %v740, %v737
        %v742 = vmul.f32 %v740, %v738
        %v743 = vadd.f32 %v712, %v741
        %v744 = vadd.f32 %v713, %v742
        %745 = vrot.lane.b32.xlu0 %v470, 16
        %v746 = vpop.permute.xlu0 %745
        %747 = vrot.lane.b32.xlu0 %v477, 16
        %v748 = vpop.permute.xlu0 %747
        %vm749 = vcmp.lt.s32.totalorder %v496, 16
        %v750 = vsel %vm749, %v746, %v748
        %v751 = vsel %vm749, %v748, %v746
        %v752 = vmul.f32 %v751, %v524
        %v753 = vmul.f32 %v750, %v525
        %s754 = sld [smem:[#allocation3 + $0x7]]
        %v755 = vstv %s754
        %v756 = vmul.f32 %v755, %v752
        %v757 = vmul.f32 %v755, %v753
        %v758 = vadd.f32 %v729, %v756
        %v759 = vadd.f32 %v730, %v757
        %760 = vrot.lane.b32.xlu0 %v493, 16
        %v761 = vpop.permute.xlu0 %760
        %762 = vrot.lane.b32.xlu0 %v494, 16
        %v763 = vpop.permute.xlu0 %762
        %v764 = vsel %vm749, %v761, %v763
        %v765 = vsel %vm749, %v763, %v761
        %v766 = vmul.f32 %v765, %v524
        %v767 = vmul.f32 %v764, %v525
        %s768 = sld [smem:[#allocation3 + $0x87]]
        %v769 = vstv %s768
        %v770 = vmul.f32 %v769, %v766
        %v771 = vmul.f32 %v769, %v767
        %v772 = vadd.f32 %v743, %v770
        %v773 = vadd.f32 %v744, %v771
        %v774 = vmul.f32 %v524, %v512
        %v775 = vmul.f32 %v525, %v513
        %776 = vrot.lane.b32.xlu0 %v470, 15
        %v777 = vpop.permute.xlu0 %776
        %778 = vrot.lane.b32.xlu0 %v477, 15
        %v779 = vpop.permute.xlu0 %778
        %vm780 = vcmp.lt.s32.totalorder %v496, 15
        %v781 = vsel %vm780, %v777, %v779
        %v782 = vsel %vm780, %v779, %v777
        %v783 = vmul.f32 %v782, %v774
        %v784 = vmul.f32 %v781, %v775
        %s785 = sld [smem:[#allocation3 + $0x8]]
        %v786 = vstv %s785
        %v787 = vmul.f32 %v786, %v783
        %v788 = vmul.f32 %v786, %v784
        %v789 = vadd.f32 %v758, %v787
        %v790 = vadd.f32 %v759, %v788
        %791 = vrot.lane.b32.xlu0 %v493, 15
        %v792 = vpop.permute.xlu0 %791
        %793 = vrot.lane.b32.xlu0 %v494, 15
        %v794 = vpop.permute.xlu0 %793
        %v795 = vsel %vm780, %v792, %v794
        %v796 = vsel %vm780, %v794, %v792
        %v797 = vmul.f32 %v796, %v774
        %v798 = vmul.f32 %v795, %v775
        %s799 = sld [smem:[#allocation3 + $0x88]]
        %v800 = vstv %s799
        %v801 = vmul.f32 %v800, %v797
        %v802 = vmul.f32 %v800, %v798
        %v803 = vadd.f32 %v772, %v801
        %v804 = vadd.f32 %v773, %v802
        %v805 = vmul.f32 %v524, %v516
        %v806 = vmul.f32 %v525, %v517
        %807 = vrot.lane.b32.xlu0 %v470, 14
        %v808 = vpop.permute.xlu0 %807
        %809 = vrot.lane.b32.xlu0 %v477, 14
        %v810 = vpop.permute.xlu0 %809
        %vm811 = vcmp.lt.s32.totalorder %v496, 14
        %v812 = vsel %vm811, %v808, %v810
        %v813 = vsel %vm811, %v810, %v808
        %v814 = vmul.f32 %v813, %v805
        %v815 = vmul.f32 %v812, %v806
        %s816 = sld [smem:[#allocation3 + $0x9]]
        %v817 = vstv %s816
        %v818 = vmul.f32 %v817, %v814
        %v819 = vmul.f32 %v817, %v815
        %v820 = vadd.f32 %v789, %v818
        %v821 = vadd.f32 %v790, %v819
        %822 = vrot.lane.b32.xlu0 %v493, 14
        %v823 = vpop.permute.xlu0 %822
        %824 = vrot.lane.b32.xlu0 %v494, 14
        %v825 = vpop.permute.xlu0 %824
        %v826 = vsel %vm811, %v823, %v825
        %v827 = vsel %vm811, %v825, %v823
        %v828 = vmul.f32 %v827, %v805
        %v829 = vmul.f32 %v826, %v806
        %s830 = sld [smem:[#allocation3 + $0x89]]
        %v831 = vstv %s830
        %v832 = vmul.f32 %v831, %v828
        %v833 = vmul.f32 %v831, %v829
        %v834 = vadd.f32 %v803, %v832
        %v835 = vadd.f32 %v804, %v833
        %836 = vrot.lane.b32.xlu0 %v470, 2
        %v837 = vpop.permute.xlu0 %836
        %838 = vrot.lane.b32.xlu0 %v477, 2
        %v839 = vpop.permute.xlu0 %838
        %vm840 = vcmp.lt.s32.totalorder %v496, 2
        %v841 = vsel %vm840, %v837, %v839
        %v842 = vsel %vm840, %v839, %v837
        %v843 = vmul.f32 %v842, %v504
        %v844 = vmul.f32 %v841, %v505
        %s845 = sld [smem:[#allocation3 + $0xa]]
        %v846 = vstv %s845
        %v847 = vmul.f32 %v846, %v843
        %v848 = vmul.f32 %v846, %v844
        %v849 = vadd.f32 %v820, %v847
        %v850 = vadd.f32 %v821, %v848
        %851 = vrot.lane.b32.xlu0 %v493, 2
        %v852 = vpop.permute.xlu0 %851
        %853 = vrot.lane.b32.xlu0 %v494, 2
        %v854 = vpop.permute.xlu0 %853
        %v855 = vsel %vm840, %v852, %v854
        %v856 = vsel %vm840, %v854, %v852
        %v857 = vmul.f32 %v856, %v504
        %v858 = vmul.f32 %v855, %v505
        %s859 = sld [smem:[#allocation3 + $0x8a]]
        %v860 = vstv %s859
        %v861 = vmul.f32 %v860, %v857
        %v862 = vmul.f32 %v860, %v858
        %v863 = vadd.f32 %v834, %v861
        %v864 = vadd.f32 %v835, %v862
        %865 = vrot.lane.b32.xlu0 %v470, 1
        %v866 = vpop.permute.xlu0 %865
        %867 = vrot.lane.b32.xlu0 %v477, 1
        %v868 = vpop.permute.xlu0 %867
        %vm869 = vcmp.lt.s32.totalorder %v496, 1
        %v870 = vsel %vm869, %v866, %v868
        %v871 = vsel %vm869, %v868, %v866
        %v872 = vmul.f32 %v871, %v508
        %v873 = vmul.f32 %v870, %v509
        %s874 = sld [smem:[#allocation3 + $0xb]]
        %v875 = vstv %s874
        %v876 = vmul.f32 %v875, %v872
        %v877 = vmul.f32 %v875, %v873
        %v878 = vadd.f32 %v849, %v876
        %v879 = vadd.f32 %v850, %v877
        %880 = vrot.lane.b32.xlu0 %v493, 1
        %v881 = vpop.permute.xlu0 %880
        %882 = vrot.lane.b32.xlu0 %v494, 1
        %v883 = vpop.permute.xlu0 %882
        %v884 = vsel %vm869, %v881, %v883
        %v885 = vsel %vm869, %v883, %v881
        %v886 = vmul.f32 %v885, %v508
        %v887 = vmul.f32 %v884, %v509
        %s888 = sld [smem:[#allocation3 + $0x8b]]
        %v889 = vstv %s888
        %v890 = vmul.f32 %v889, %v886
        %v891 = vmul.f32 %v889, %v887
        %v892 = vadd.f32 %v863, %v890
        %v893 = vadd.f32 %v864, %v891
        %s894 = sld [smem:[#allocation3 + $0xc]]
        %v895 = vstv %s894
        %v896 = vmul.f32 %v895, %v470
        %v897 = vmul.f32 %v895, %v477
        %v898 = vadd.f32 %v878, %v896
        %v899 = vadd.f32 %v879, %v897
        %s900 = sld [smem:[#allocation3 + $0x8c]]
        %v901 = vstv %s900
        %v902 = vmul.f32 %v901, %v493
        %v903 = vmul.f32 %v901, %v494
        %v904 = vadd.f32 %v892, %v902
        %v905 = vadd.f32 %v893, %v903
        %906 = vrot.lane.b32.xlu0 %v470, 127
        %v907 = vpop.permute.xlu0 %906
        %908 = vrot.lane.b32.xlu0 %v477, 127
        %v909 = vpop.permute.xlu0 %908
        %vm910 = vcmp.lt.s32.totalorder %v496, 127
        %v911 = vsel %vm910, %v907, %v909
        %v912 = vsel %vm910, %v909, %v907
        %v913 = vmul.f32 %v911, %v512
        %v914 = vmul.f32 %v912, %v513
        %s915 = sld [smem:[#allocation3 + $0xd]]
        %v916 = vstv %s915
        %v917 = vmul.f32 %v916, %v913
        %v918 = vmul.f32 %v916, %v914
        %v919 = vadd.f32 %v898, %v917
        %v920 = vadd.f32 %v899, %v918
        %921 = vrot.lane.b32.xlu0 %v493, 127
        %v922 = vpop.permute.xlu0 %921
        %923 = vrot.lane.b32.xlu0 %v494, 127
        %v924 = vpop.permute.xlu0 %923
        %v925 = vsel %vm910, %v922, %v924
        %v926 = vsel %vm910, %v924, %v922
        %v927 = vmul.f32 %v925, %v512
        %v928 = vmul.f32 %v926, %v513
        %s929 = sld [smem:[#allocation3 + $0x8d]]
        %v930 = vstv %s929
        %v931 = vmul.f32 %v930, %v927
        %v932 = vmul.f32 %v930, %v928
        %v933 = vadd.f32 %v904, %v931
        %v934 = vadd.f32 %v905, %v932
        %935 = vrot.lane.b32.xlu0 %v470, 126
        %v936 = vpop.permute.xlu0 %935
        %937 = vrot.lane.b32.xlu0 %v477, 126
        %v938 = vpop.permute.xlu0 %937
        %vm939 = vcmp.lt.s32.totalorder %v496, 126
        %v940 = vsel %vm939, %v936, %v938
        %v941 = vsel %vm939, %v938, %v936
        %v942 = vmul.f32 %v940, %v516
        %v943 = vmul.f32 %v941, %v517
        %s944 = sld [smem:[#allocation3 + $0xe]]
        %v945 = vstv %s944
        %v946 = vmul.f32 %v945, %v942
        %v947 = vmul.f32 %v945, %v943
        %v948 = vadd.f32 %v919, %v946
        %v949 = vadd.f32 %v920, %v947
        %950 = vrot.lane.b32.xlu0 %v493, 126
        %v951 = vpop.permute.xlu0 %950
        %952 = vrot.lane.b32.xlu0 %v494, 126
        %v953 = vpop.permute.xlu0 %952
        %v954 = vsel %vm939, %v951, %v953
        %v955 = vsel %vm939, %v953, %v951
        %v956 = vmul.f32 %v954, %v516
        %v957 = vmul.f32 %v955, %v517
        %s958 = sld [smem:[#allocation3 + $0x8e]]
        %v959 = vstv %s958
        %v960 = vmul.f32 %v959, %v956
        %v961 = vmul.f32 %v959, %v957
        %v962 = vadd.f32 %v933, %v960
        %v963 = vadd.f32 %v934, %v961
        %v964 = vmul.f32 %v528, %v504
        %v965 = vmul.f32 %v529, %v505
        %966 = vrot.lane.b32.xlu0 %v470, 114
        %v967 = vpop.permute.xlu0 %966
        %968 = vrot.lane.b32.xlu0 %v477, 114
        %v969 = vpop.permute.xlu0 %968
        %vm970 = vcmp.lt.s32.totalorder %v496, 114
        %v971 = vsel %vm970, %v967, %v969
        %v972 = vsel %vm970, %v969, %v967
        %v973 = vmul.f32 %v971, %v964
        %v974 = vmul.f32 %v972, %v965
        %s975 = sld [smem:[#allocation3 + $0xf]]
        %v976 = vstv %s975
        %v977 = vmul.f32 %v976, %v973
        %v978 = vmul.f32 %v976, %v974
        %v979 = vadd.f32 %v948, %v977
        %v980 = vadd.f32 %v949, %v978
        %981 = vrot.lane.b32.xlu0 %v493, 114
        %v982 = vpop.permute.xlu0 %981
        %983 = vrot.lane.b32.xlu0 %v494, 114
        %v984 = vpop.permute.xlu0 %983
        %v985 = vsel %vm970, %v982, %v984
        %v986 = vsel %vm970, %v984, %v982
        %v987 = vmul.f32 %v985, %v964
        %v988 = vmul.f32 %v986, %v965
        %s989 = sld [smem:[#allocation3 + $0x8f]]
        %v990 = vstv %s989
        %v991 = vmul.f32 %v990, %v987
        %v992 = vmul.f32 %v990, %v988
        %v993 = vadd.f32 %v962, %v991
        %v994 = vadd.f32 %v963, %v992
        %v995 = vmul.f32 %v528, %v508
        %v996 = vmul.f32 %v529, %v509
        %997 = vrot.lane.b32.xlu0 %v470, 113
        %v998 = vpop.permute.xlu0 %997
        %999 = vrot.lane.b32.xlu0 %v477, 113
        %v1000 = vpop.permute.xlu0 %999
        %vm1001 = vcmp.lt.s32.totalorder %v496, 113
        %v1002 = vsel %vm1001, %v998, %v1000
        %v1003 = vsel %vm1001, %v1000, %v998
        %v1004 = vmul.f32 %v1002, %v995
        %v1005 = vmul.f32 %v1003, %v996
        %s1006 = sld [smem:[#allocation3 + $0x10]]
        %v1007 = vstv %s1006
        %v1008 = vmul.f32 %v1007, %v1004
        %v1009 = vmul.f32 %v1007, %v1005
        %v1010 = vadd.f32 %v979, %v1008
        %v1011 = vadd.f32 %v980, %v1009
        %1012 = vrot.lane.b32.xlu0 %v493, 113
        %v1013 = vpop.permute.xlu0 %1012
        %1014 = vrot.lane.b32.xlu0 %v494, 113
        %v1015 = vpop.permute.xlu0 %1014
        %v1016 = vsel %vm1001, %v1013, %v1015
        %v1017 = vsel %vm1001, %v1015, %v1013
        %v1018 = vmul.f32 %v1016, %v995
        %v1019 = vmul.f32 %v1017, %v996
        %s1020 = sld [smem:[#allocation3 + $0x90]]
        %v1021 = vstv %s1020
        %v1022 = vmul.f32 %v1021, %v1018
        %v1023 = vmul.f32 %v1021, %v1019
        %v1024 = vadd.f32 %v993, %v1022
        %v1025 = vadd.f32 %v994, %v1023
        %1026 = vrot.lane.b32.xlu0 %v470, 112
        %v1027 = vpop.permute.xlu0 %1026
        %1028 = vrot.lane.b32.xlu0 %v477, 112
        %v1029 = vpop.permute.xlu0 %1028
        %vm1030 = vcmp.lt.s32.totalorder %v496, 112
        %v1031 = vsel %vm1030, %v1027, %v1029
        %v1032 = vsel %vm1030, %v1029, %v1027
        %v1033 = vmul.f32 %v1031, %v528
        %v1034 = vmul.f32 %v1032, %v529
        %s1035 = sld [smem:[#allocation3 + $0x11]]
        %v1036 = vstv %s1035
        %v1037 = vmul.f32 %v1036, %v1033
        %v1038 = vmul.f32 %v1036, %v1034
        %v1039 = vadd.f32 %v1010, %v1037
        %v1040 = vadd.f32 %v1011, %v1038
        %1041 = vrot.lane.b32.xlu0 %v493, 112
        %v1042 = vpop.permute.xlu0 %1041
        %1043 = vrot.lane.b32.xlu0 %v494, 112
        %v1044 = vpop.permute.xlu0 %1043
        %v1045 = vsel %vm1030, %v1042, %v1044
        %v1046 = vsel %vm1030, %v1044, %v1042
        %v1047 = vmul.f32 %v1045, %v528
        %v1048 = vmul.f32 %v1046, %v529
        %s1049 = sld [smem:[#allocation3 + $0x91]]
        %v1050 = vstv %s1049
        %v1051 = vmul.f32 %v1050, %v1047
        %v1052 = vmul.f32 %v1050, %v1048
        %v1053 = vadd.f32 %v1024, %v1051
        %v1054 = vadd.f32 %v1025, %v1052
        %v1055 = vmul.f32 %v528, %v512
        %v1056 = vmul.f32 %v529, %v513
        %1057 = vrot.lane.b32.xlu0 %v470, 111
        %v1058 = vpop.permute.xlu0 %1057
        %1059 = vrot.lane.b32.xlu0 %v477, 111
        %v1060 = vpop.permute.xlu0 %1059
        %vm1061 = vcmp.lt.s32.totalorder %v496, 111
        %v1062 = vsel %vm1061, %v1058, %v1060
        %v1063 = vsel %vm1061, %v1060, %v1058
        %v1064 = vmul.f32 %v1062, %v1055
        %v1065 = vmul.f32 %v1063, %v1056
        %s1066 = sld [smem:[#allocation3 + $0x12]]
        %v1067 = vstv %s1066
        %v1068 = vmul.f32 %v1067, %v1064
        %v1069 = vmul.f32 %v1067, %v1065
        %v1070 = vadd.f32 %v1039, %v1068
        %v1071 = vadd.f32 %v1040, %v1069
        %1072 = vrot.lane.b32.xlu0 %v493, 111
        %v1073 = vpop.permute.xlu0 %1072
        %1074 = vrot.lane.b32.xlu0 %v494, 111
        %v1075 = vpop.permute.xlu0 %1074
        %v1076 = vsel %vm1061, %v1073, %v1075
        %v1077 = vsel %vm1061, %v1075, %v1073
        %v1078 = vmul.f32 %v1076, %v1055
        %v1079 = vmul.f32 %v1077, %v1056
        %s1080 = sld [smem:[#allocation3 + $0x92]]
        %v1081 = vstv %s1080
        %v1082 = vmul.f32 %v1081, %v1078
        %v1083 = vmul.f32 %v1081, %v1079
        %v1084 = vadd.f32 %v1053, %v1082
        %v1085 = vadd.f32 %v1054, %v1083
        %v1086 = vmul.f32 %v528, %v516
        %v1087 = vmul.f32 %v529, %v517
        %1088 = vrot.lane.b32.xlu0 %v470, 110
        %v1089 = vpop.permute.xlu0 %1088
        %1090 = vrot.lane.b32.xlu0 %v477, 110
        %v1091 = vpop.permute.xlu0 %1090
        %vm1092 = vcmp.lt.s32.totalorder %v496, 110
        %v1093 = vsel %vm1092, %v1089, %v1091
        %v1094 = vsel %vm1092, %v1091, %v1089
        %v1095 = vmul.f32 %v1093, %v1086
        %v1096 = vmul.f32 %v1094, %v1087
        %s1097 = sld [smem:[#allocation3 + $0x13]]
        %v1098 = vstv %s1097
        %v1099 = vmul.f32 %v1098, %v1095
        %v1100 = vmul.f32 %v1098, %v1096
        %v1101 = vadd.f32 %v1070, %v1099
        %v1102 = vadd.f32 %v1071, %v1100
        %1103 = vrot.lane.b32.xlu0 %v493, 110
        %v1104 = vpop.permute.xlu0 %1103
        %1105 = vrot.lane.b32.xlu0 %v494, 110
        %v1106 = vpop.permute.xlu0 %1105
        %v1107 = vsel %vm1092, %v1104, %v1106
        %v1108 = vsel %vm1092, %v1106, %v1104
        %v1109 = vmul.f32 %v1107, %v1086
        %v1110 = vmul.f32 %v1108, %v1087
        %s1111 = sld [smem:[#allocation3 + $0x93]]
        %v1112 = vstv %s1111
        %v1113 = vmul.f32 %v1112, %v1109
        %v1114 = vmul.f32 %v1112, %v1110
        %v1115 = vadd.f32 %v1084, %v1113
        %v1116 = vadd.f32 %v1085, %v1114
        %v1117 = vmul.f32 %v532, %v504
        %v1118 = vmul.f32 %v533, %v505
        %1119 = vrot.lane.b32.xlu0 %v470, 98
        %v1120 = vpop.permute.xlu0 %1119
        %1121 = vrot.lane.b32.xlu0 %v477, 98
        %v1122 = vpop.permute.xlu0 %1121
        %vm1123 = vcmp.lt.s32.totalorder %v496, 98
        %v1124 = vsel %vm1123, %v1120, %v1122
        %v1125 = vsel %vm1123, %v1122, %v1120
        %v1126 = vmul.f32 %v1124, %v1117
        %v1127 = vmul.f32 %v1125, %v1118
        %s1128 = sld [smem:[#allocation3 + $0x14]]
        %v1129 = vstv %s1128
        %v1130 = vmul.f32 %v1129, %v1126
        %v1131 = vmul.f32 %v1129, %v1127
        %v1132 = vadd.f32 %v1101, %v1130
        %v1133 = vadd.f32 %v1102, %v1131
        %1134 = vrot.lane.b32.xlu0 %v493, 98
        %v1135 = vpop.permute.xlu0 %1134
        %1136 = vrot.lane.b32.xlu0 %v494, 98
        %v1137 = vpop.permute.xlu0 %1136
        %v1138 = vsel %vm1123, %v1135, %v1137
        %v1139 = vsel %vm1123, %v1137, %v1135
        %v1140 = vmul.f32 %v1138, %v1117
        %v1141 = vmul.f32 %v1139, %v1118
        %s1142 = sld [smem:[#allocation3 + $0x94]]
        %v1143 = vstv %s1142
        %v1144 = vmul.f32 %v1143, %v1140
        %v1145 = vmul.f32 %v1143, %v1141
        %v1146 = vadd.f32 %v1115, %v1144
        %v1147 = vadd.f32 %v1116, %v1145
        %v1148 = vmul.f32 %v532, %v508
        %v1149 = vmul.f32 %v533, %v509
        %1150 = vrot.lane.b32.xlu0 %v470, 97
        %v1151 = vpop.permute.xlu0 %1150
        %1152 = vrot.lane.b32.xlu0 %v477, 97
        %v1153 = vpop.permute.xlu0 %1152
        %vm1154 = vcmp.lt.s32.totalorder %v496, 97
        %v1155 = vsel %vm1154, %v1151, %v1153
        %v1156 = vsel %vm1154, %v1153, %v1151
        %v1157 = vmul.f32 %v1155, %v1148
        %v1158 = vmul.f32 %v1156, %v1149
        %s1159 = sld [smem:[#allocation3 + $0x15]]
        %v1160 = vstv %s1159
        %v1161 = vmul.f32 %v1160, %v1157
        %v1162 = vmul.f32 %v1160, %v1158
        %v1163 = vadd.f32 %v1132, %v1161
        %v1164 = vadd.f32 %v1133, %v1162
        %1165 = vrot.lane.b32.xlu0 %v493, 97
        %v1166 = vpop.permute.xlu0 %1165
        %1167 = vrot.lane.b32.xlu0 %v494, 97
        %v1168 = vpop.permute.xlu0 %1167
        %v1169 = vsel %vm1154, %v1166, %v1168
        %v1170 = vsel %vm1154, %v1168, %v1166
        %v1171 = vmul.f32 %v1169, %v1148
        %v1172 = vmul.f32 %v1170, %v1149
        %s1173 = sld [smem:[#allocation3 + $0x95]]
        %v1174 = vstv %s1173
        %v1175 = vmul.f32 %v1174, %v1171
        %v1176 = vmul.f32 %v1174, %v1172
        %v1177 = vadd.f32 %v1146, %v1175
        %v1178 = vadd.f32 %v1147, %v1176
        %1179 = vrot.lane.b32.xlu0 %v470, 96
        %v1180 = vpop.permute.xlu0 %1179
        %1181 = vrot.lane.b32.xlu0 %v477, 96
        %v1182 = vpop.permute.xlu0 %1181
        %vm1183 = vcmp.lt.s32.totalorder %v496, 96
        %v1184 = vsel %vm1183, %v1180, %v1182
        %v1185 = vsel %vm1183, %v1182, %v1180
        %v1186 = vmul.f32 %v1184, %v532
        %v1187 = vmul.f32 %v1185, %v533
        %s1188 = sld [smem:[#allocation3 + $0x16]]
        %v1189 = vstv %s1188
        %v1190 = vmul.f32 %v1189, %v1186
        %v1191 = vmul.f32 %v1189, %v1187
        %v1192 = vadd.f32 %v1163, %v1190
        %v1193 = vadd.f32 %v1164, %v1191
        %1194 = vrot.lane.b32.xlu0 %v493, 96
        %v1195 = vpop.permute.xlu0 %1194
        %1196 = vrot.lane.b32.xlu0 %v494, 96
        %v1197 = vpop.permute.xlu0 %1196
        %v1198 = vsel %vm1183, %v1195, %v1197
        %v1199 = vsel %vm1183, %v1197, %v1195
        %v1200 = vmul.f32 %v1198, %v532
        %v1201 = vmul.f32 %v1199, %v533
        %s1202 = sld [smem:[#allocation3 + $0x96]]
        %v1203 = vstv %s1202
        %v1204 = vmul.f32 %v1203, %v1200
        %v1205 = vmul.f32 %v1203, %v1201
        %v1206 = vadd.f32 %v1177, %v1204
        %v1207 = vadd.f32 %v1178, %v1205
        %v1208 = vmul.f32 %v532, %v512
        %v1209 = vmul.f32 %v533, %v513
        %1210 = vrot.lane.b32.xlu0 %v470, 95
        %v1211 = vpop.permute.xlu0 %1210
        %1212 = vrot.lane.b32.xlu0 %v477, 95
        %v1213 = vpop.permute.xlu0 %1212
        %vm1214 = vcmp.lt.s32.totalorder %v496, 95
        %v1215 = vsel %vm1214, %v1211, %v1213
        %v1216 = vsel %vm1214, %v1213, %v1211
        %v1217 = vmul.f32 %v1215, %v1208
        %v1218 = vmul.f32 %v1216, %v1209
        %s1219 = sld [smem:[#allocation3 + $0x17]]
        %v1220 = vstv %s1219
        %v1221 = vmul.f32 %v1220, %v1217
        %v1222 = vmul.f32 %v1220, %v1218
        %v1223 = vadd.f32 %v1192, %v1221
        %v1224 = vadd.f32 %v1193, %v1222
        %1225 = vrot.lane.b32.xlu0 %v493, 95
        %v1226 = vpop.permute.xlu0 %1225
        %1227 = vrot.lane.b32.xlu0 %v494, 95
        %v1228 = vpop.permute.xlu0 %1227
        %v1229 = vsel %vm1214, %v1226, %v1228
        %v1230 = vsel %vm1214, %v1228, %v1226
        %v1231 = vmul.f32 %v1229, %v1208
        %v1232 = vmul.f32 %v1230, %v1209
        %s1233 = sld [smem:[#allocation3 + $0x97]]
        %v1234 = vstv %s1233
        %v1235 = vmul.f32 %v1234, %v1231
        %v1236 = vmul.f32 %v1234, %v1232
        %v1237 = vadd.f32 %v1206, %v1235
        %v1238 = vadd.f32 %v1207, %v1236
        %v1239 = vmul.f32 %v532, %v516
        %v1240 = vmul.f32 %v533, %v517
        %1241 = vrot.lane.b32.xlu0 %v470, 94
        %v1242 = vpop.permute.xlu0 %1241
        %1243 = vrot.lane.b32.xlu0 %v477, 94
        %v1244 = vpop.permute.xlu0 %1243
        %vm1245 = vcmp.lt.s32.totalorder %v496, 94
        %v1246 = vsel %vm1245, %v1242, %v1244
        %v1247 = vsel %vm1245, %v1244, %v1242
        %v1248 = vmul.f32 %v1246, %v1239
        %v1249 = vmul.f32 %v1247, %v1240
        %s1250 = sld [smem:[#allocation3 + $0x18]]
        %v1251 = vstv %s1250
        %v1252 = vmul.f32 %v1251, %v1248
        %v1253 = vmul.f32 %v1251, %v1249
        %v1254 = vadd.f32 %v1223, %v1252
        %v1255 = vadd.f32 %v1224, %v1253
        %1256 = vrot.lane.b32.xlu0 %v493, 94
        %v1257 = vpop.permute.xlu0 %1256
        %1258 = vrot.lane.b32.xlu0 %v494, 94
        %v1259 = vpop.permute.xlu0 %1258
        %v1260 = vsel %vm1245, %v1257, %v1259
        %v1261 = vsel %vm1245, %v1259, %v1257
        %v1262 = vmul.f32 %v1260, %v1239
        %v1263 = vmul.f32 %v1261, %v1240
        %s1264 = sld [smem:[#allocation3 + $0x98]]
        %v1265 = vstv %s1264
        %v1266 = vmul.f32 %v1265, %v1262
        %v1267 = vmul.f32 %v1265, %v1263
        %v1268 = vadd.f32 %v1237, %v1266
        %v1269 = vadd.f32 %v1238, %v1267
        %s1270 = sld [smem:[#allocation5]]
        %v1271 = vstv %s1270
        %v1272 = vadd.f32 %v1254, %v1271
        %v1273 = vadd.f32 %v1255, %v1271
        %s1274 = sld [smem:[#allocation5 + $0x1]]
        %v1275 = vstv %s1274
        %v1276 = vadd.f32 %v1268, %v1275
        %v1277 = vadd.f32 %v1269, %v1275
        %vm1278 = vcmp.ge.s32.totalorder %v498, 6
        %vm1279 = vcmp.ge.s32.totalorder %v499, 6
        %v1280 = vsel %vm1278, 1.0, 0.0
        %v1281 = vsel %vm1279, 1.0, 0.0
        %vm1282 = vcmp.ge.s32.totalorder %v498, 3
        %vm1283 = vcmp.ge.s32.totalorder %v499, 3
        %v1284 = vsel %vm1282, 1.0, 0.0
        %v1285 = vsel %vm1283, 1.0, 0.0
        %vm1286 = vcmp.lt.s32.totalorder %v498, 13
        %vm1287 = vcmp.lt.s32.totalorder %v499, 13
        %v1288 = vsel %vm1286, 1.0, 0.0
        %v1289 = vsel %vm1287, 1.0, 0.0
        %vm1290 = vcmp.lt.s32.totalorder %v498, 10
        %vm1291 = vcmp.lt.s32.totalorder %v499, 10
        %v1292 = vsel %vm1290, 1.0, 0.0
        %v1293 = vsel %vm1291, 1.0, 0.0
        %vm1294 = vcmp.ge.s32.totalorder %v500, 6
        %vm1295 = vcmp.ge.s32.totalorder %v501, 6
        %v1296 = vsel %vm1294, 1.0, 0.0
        %v1297 = vsel %vm1295, 1.0, 0.0
        %vm1298 = vcmp.ge.s32.totalorder %v500, 3
        %vm1299 = vcmp.ge.s32.totalorder %v501, 3
        %v1300 = vsel %vm1298, 1.0, 0.0
        %v1301 = vsel %vm1299, 1.0, 0.0
        %vm1302 = vcmp.lt.s32.totalorder %v500, 13
        %vm1303 = vcmp.lt.s32.totalorder %v501, 13
        %v1304 = vsel %vm1302, 1.0, 0.0
        %v1305 = vsel %vm1303, 1.0, 0.0
        %vm1306 = vcmp.lt.s32.totalorder %v500, 10
        %vm1307 = vcmp.lt.s32.totalorder %v501, 10
        %v1308 = vsel %vm1306, 1.0, 0.0
        %v1309 = vsel %vm1307, 1.0, 0.0
        %v1310 = vmul.f32 %v1296, %v1280
        %v1311 = vmul.f32 %v1297, %v1281
        %1312 = vrot.lane.b32.xlu0 %v1272, 102
        %v1313 = vpop.permute.xlu0 %1312
        %1314 = vrot.lane.b32.xlu0 %v1273, 102
        %v1315 = vpop.permute.xlu0 %1314
        %vm1316 = vcmp.lt.s32.totalorder %v496, 102
        %v1317 = vsel %vm1316, %v1313, %v1315
        %v1318 = vsel %vm1316, %v1315, %v1313
        %v1319 = vmul.f32 %v1318, %v1310
        %v1320 = vmul.f32 %v1317, %v1311
        %s1321 = sld [smem:[#allocation7]]
        %v1322 = vstv %s1321
        %v1323 = vmul.f32 %v1322, %v1319
        %v1324 = vmul.f32 %v1322, %v1320
        %1325 = vrot.lane.b32.xlu0 %v1276, 102
        %v1326 = vpop.permute.xlu0 %1325
        %1327 = vrot.lane.b32.xlu0 %v1277, 102
        %v1328 = vpop.permute.xlu0 %1327
        %v1329 = vsel %vm1316, %v1326, %v1328
        %v1330 = vsel %vm1316, %v1328, %v1326
        %v1331 = vmul.f32 %v1330, %v1310
        %v1332 = vmul.f32 %v1329, %v1311
        %s1333 = sld [smem:[#allocation7 + $0x80]]
        %v1334 = vstv %s1333
        %v1335 = vmul.f32 %v1334, %v1331
        %v1336 = vmul.f32 %v1334, %v1332
        %v1337 = vmul.f32 %v1296, %v1284
        %v1338 = vmul.f32 %v1297, %v1285
        %1339 = vrot.lane.b32.xlu0 %v1272, 99
        %v1340 = vpop.permute.xlu0 %1339
        %1341 = vrot.lane.b32.xlu0 %v1273, 99
        %v1342 = vpop.permute.xlu0 %1341
        %vm1343 = vcmp.lt.s32.totalorder %v496, 99
        %v1344 = vsel %vm1343, %v1340, %v1342
        %v1345 = vsel %vm1343, %v1342, %v1340
        %v1346 = vmul.f32 %v1345, %v1337
        %v1347 = vmul.f32 %v1344, %v1338
        %s1348 = sld [smem:[#allocation7 + $0x1]]
        %v1349 = vstv %s1348
        %v1350 = vmul.f32 %v1349, %v1346
        %v1351 = vmul.f32 %v1349, %v1347
        %v1352 = vadd.f32 %v1323, %v1350
        %v1353 = vadd.f32 %v1324, %v1351
        %1354 = vrot.lane.b32.xlu0 %v1276, 99
        %v1355 = vpop.permute.xlu0 %1354
        %1356 = vrot.lane.b32.xlu0 %v1277, 99
        %v1357 = vpop.permute.xlu0 %1356
        %v1358 = vsel %vm1343, %v1355, %v1357
        %v1359 = vsel %vm1343, %v1357, %v1355
        %v1360 = vmul.f32 %v1359, %v1337
        %v1361 = vmul.f32 %v1358, %v1338
        %s1362 = sld [smem:[#allocation7 + $0x81]]
        %v1363 = vstv %s1362
        %v1364 = vmul.f32 %v1363, %v1360
        %v1365 = vmul.f32 %v1363, %v1361
        %v1366 = vadd.f32 %v1335, %v1364
        %v1367 = vadd.f32 %v1336, %v1365
        %1368 = vrot.lane.b32.xlu0 %v1272, 96
        %v1369 = vpop.permute.xlu0 %1368
        %1370 = vrot.lane.b32.xlu0 %v1273, 96
        %v1371 = vpop.permute.xlu0 %1370
        %v1372 = vsel %vm1183, %v1369, %v1371
        %v1373 = vsel %vm1183, %v1371, %v1369
        %v1374 = vmul.f32 %v1373, %v1296
        %v1375 = vmul.f32 %v1372, %v1297
        %s1376 = sld [smem:[#allocation7 + $0x2]]
        %v1377 = vstv %s1376
        %v1378 = vmul.f32 %v1377, %v1374
        %v1379 = vmul.f32 %v1377, %v1375
        %v1380 = vadd.f32 %v1352, %v1378
        %v1381 = vadd.f32 %v1353, %v1379
        %1382 = vrot.lane.b32.xlu0 %v1276, 96
        %v1383 = vpop.permute.xlu0 %1382
        %1384 = vrot.lane.b32.xlu0 %v1277, 96
        %v1385 = vpop.permute.xlu0 %1384
        %v1386 = vsel %vm1183, %v1383, %v1385
        %v1387 = vsel %vm1183, %v1385, %v1383
        %v1388 = vmul.f32 %v1387, %v1296
        %v1389 = vmul.f32 %v1386, %v1297
        %s1390 = sld [smem:[#allocation7 + $0x82]]
        %v1391 = vstv %s1390
        %v1392 = vmul.f32 %v1391, %v1388
        %v1393 = vmul.f32 %v1391, %v1389
        %v1394 = vadd.f32 %v1366, %v1392
        %v1395 = vadd.f32 %v1367, %v1393
        %v1396 = vmul.f32 %v1296, %v1288
        %v1397 = vmul.f32 %v1297, %v1289
        %1398 = vrot.lane.b32.xlu0 %v1272, 93
        %v1399 = vpop.permute.xlu0 %1398
        %1400 = vrot.lane.b32.xlu0 %v1273, 93
        %v1401 = vpop.permute.xlu0 %1400
        %vm1402 = vcmp.lt.s32.totalorder %v496, 93
        %v1403 = vsel %vm1402, %v1399, %v1401
        %v1404 = vsel %vm1402, %v1401, %v1399
        %v1405 = vmul.f32 %v1404, %v1396
        %v1406 = vmul.f32 %v1403, %v1397
        %s1407 = sld [smem:[#allocation7 + $0x3]]
        %v1408 = vstv %s1407
        %v1409 = vmul.f32 %v1408, %v1405
        %v1410 = vmul.f32 %v1408, %v1406
        %v1411 = vadd.f32 %v1380, %v1409
        %v1412 = vadd.f32 %v1381, %v1410
        %1413 = vrot.lane.b32.xlu0 %v1276, 93
        %v1414 = vpop.permute.xlu0 %1413
        %1415 = vrot.lane.b32.xlu0 %v1277, 93
        %v1416 = vpop.permute.xlu0 %1415
        %v1417 = vsel %vm1402, %v1414, %v1416
        %v1418 = vsel %vm1402, %v1416, %v1414
        %v1419 = vmul.f32 %v1418, %v1396
        %v1420 = vmul.f32 %v1417, %v1397
        %s1421 = sld [smem:[#allocation7 + $0x83]]
        %v1422 = vstv %s1421
        %v1423 = vmul.f32 %v1422, %v1419
        %v1424 = vmul.f32 %v1422, %v1420
        %v1425 = vadd.f32 %v1394, %v1423
        %v1426 = vadd.f32 %v1395, %v1424
        %v1427 = vmul.f32 %v1296, %v1292
        %v1428 = vmul.f32 %v1297, %v1293
        %1429 = vrot.lane.b32.xlu0 %v1272, 90
        %v1430 = vpop.permute.xlu0 %1429
        %1431 = vrot.lane.b32.xlu0 %v1273, 90
        %v1432 = vpop.permute.xlu0 %1431
        %vm1433 = vcmp.lt.s32.totalorder %v496, 90
        %v1434 = vsel %vm1433, %v1430, %v1432
        %v1435 = vsel %vm1433, %v1432, %v1430
        %v1436 = vmul.f32 %v1435, %v1427
        %v1437 = vmul.f32 %v1434, %v1428
        %s1438 = sld [smem:[#allocation7 + $0x4]]
        %v1439 = vstv %s1438
        %v1440 = vmul.f32 %v1439, %v1436
        %v1441 = vmul.f32 %v1439, %v1437
        %v1442 = vadd.f32 %v1411, %v1440
        %v1443 = vadd.f32 %v1412, %v1441
        %1444 = vrot.lane.b32.xlu0 %v1276, 90
        %v1445 = vpop.permute.xlu0 %1444
        %1446 = vrot.lane.b32.xlu0 %v1277, 90
        %v1447 = vpop.permute.xlu0 %1446
        %v1448 = vsel %vm1433, %v1445, %v1447
        %v1449 = vsel %vm1433, %v1447, %v1445
        %v1450 = vmul.f32 %v1449, %v1427
        %v1451 = vmul.f32 %v1448, %v1428
        %s1452 = sld [smem:[#allocation7 + $0x84]]
        %v1453 = vstv %s1452
        %v1454 = vmul.f32 %v1453, %v1450
        %v1455 = vmul.f32 %v1453, %v1451
        %v1456 = vadd.f32 %v1425, %v1454
        %v1457 = vadd.f32 %v1426, %v1455
        %v1458 = vmul.f32 %v1300, %v1280
        %v1459 = vmul.f32 %v1301, %v1281
        %1460 = vrot.lane.b32.xlu0 %v1272, 54
        %v1461 = vpop.permute.xlu0 %1460
        %1462 = vrot.lane.b32.xlu0 %v1273, 54
        %v1463 = vpop.permute.xlu0 %1462
        %vm1464 = vcmp.lt.s32.totalorder %v496, 54
        %v1465 = vsel %vm1464, %v1461, %v1463
        %v1466 = vsel %vm1464, %v1463, %v1461
        %v1467 = vmul.f32 %v1466, %v1458
        %v1468 = vmul.f32 %v1465, %v1459
        %s1469 = sld [smem:[#allocation7 + $0x5]]
        %v1470 = vstv %s1469
        %v1471 = vmul.f32 %v1470, %v1467
        %v1472 = vmul.f32 %v1470, %v1468
        %v1473 = vadd.f32 %v1442, %v1471
        %v1474 = vadd.f32 %v1443, %v1472
        %1475 = vrot.lane.b32.xlu0 %v1276, 54
        %v1476 = vpop.permute.xlu0 %1475
        %1477 = vrot.lane.b32.xlu0 %v1277, 54
        %v1478 = vpop.permute.xlu0 %1477
        %v1479 = vsel %vm1464, %v1476, %v1478
        %v1480 = vsel %vm1464, %v1478, %v1476
        %v1481 = vmul.f32 %v1480, %v1458
        %v1482 = vmul.f32 %v1479, %v1459
        %s1483 = sld [smem:[#allocation7 + $0x85]]
        %v1484 = vstv %s1483
        %v1485 = vmul.f32 %v1484, %v1481
        %v1486 = vmul.f32 %v1484, %v1482
        %v1487 = vadd.f32 %v1456, %v1485
        %v1488 = vadd.f32 %v1457, %v1486
        %v1489 = vmul.f32 %v1300, %v1284
        %v1490 = vmul.f32 %v1301, %v1285
        %1491 = vrot.lane.b32.xlu0 %v1272, 51
        %v1492 = vpop.permute.xlu0 %1491
        %1493 = vrot.lane.b32.xlu0 %v1273, 51
        %v1494 = vpop.permute.xlu0 %1493
        %vm1495 = vcmp.lt.s32.totalorder %v496, 51
        %v1496 = vsel %vm1495, %v1492, %v1494
        %v1497 = vsel %vm1495, %v1494, %v1492
        %v1498 = vmul.f32 %v1497, %v1489
        %v1499 = vmul.f32 %v1496, %v1490
        %s1500 = sld [smem:[#allocation7 + $0x6]]
        %v1501 = vstv %s1500
        %v1502 = vmul.f32 %v1501, %v1498
        %v1503 = vmul.f32 %v1501, %v1499
        %v1504 = vadd.f32 %v1473, %v1502
        %v1505 = vadd.f32 %v1474, %v1503
        %1506 = vrot.lane.b32.xlu0 %v1276, 51
        %v1507 = vpop.permute.xlu0 %1506
        %1508 = vrot.lane.b32.xlu0 %v1277, 51
        %v1509 = vpop.permute.xlu0 %1508
        %v1510 = vsel %vm1495, %v1507, %v1509
        %v1511 = vsel %vm1495, %v1509, %v1507
        %v1512 = vmul.f32 %v1511, %v1489
        %v1513 = vmul.f32 %v1510, %v1490
        %s1514 = sld [smem:[#allocation7 + $0x86]]
        %v1515 = vstv %s1514
        %v1516 = vmul.f32 %v1515, %v1512
        %v1517 = vmul.f32 %v1515, %v1513
        %v1518 = vadd.f32 %v1487, %v1516
        %v1519 = vadd.f32 %v1488, %v1517
        %1520 = vrot.lane.b32.xlu0 %v1272, 48
        %v1521 = vpop.permute.xlu0 %1520
        %1522 = vrot.lane.b32.xlu0 %v1273, 48
        %v1523 = vpop.permute.xlu0 %1522
        %vm1524 = vcmp.lt.s32.totalorder %v496, 48
        %v1525 = vsel %vm1524, %v1521, %v1523
        %v1526 = vsel %vm1524, %v1523, %v1521
        %v1527 = vmul.f32 %v1526, %v1300
        %v1528 = vmul.f32 %v1525, %v1301
        %s1529 = sld [smem:[#allocation7 + $0x7]]
        %v1530 = vstv %s1529
        %v1531 = vmul.f32 %v1530, %v1527
        %v1532 = vmul.f32 %v1530, %v1528
        %v1533 = vadd.f32 %v1504, %v1531
        %v1534 = vadd.f32 %v1505, %v1532
        %1535 = vrot.lane.b32.xlu0 %v1276, 48
        %v1536 = vpop.permute.xlu0 %1535
        %1537 = vrot.lane.b32.xlu0 %v1277, 48
        %v1538 = vpop.permute.xlu0 %1537
        %v1539 = vsel %vm1524, %v1536, %v1538
        %v1540 = vsel %vm1524, %v1538, %v1536
        %v1541 = vmul.f32 %v1540, %v1300
        %v1542 = vmul.f32 %v1539, %v1301
        %s1543 = sld [smem:[#allocation7 + $0x87]]
        %v1544 = vstv %s1543
        %v1545 = vmul.f32 %v1544, %v1541
        %v1546 = vmul.f32 %v1544, %v1542
        %v1547 = vadd.f32 %v1518, %v1545
        %v1548 = vadd.f32 %v1519, %v1546
        %v1549 = vmul.f32 %v1300, %v1288
        %v1550 = vmul.f32 %v1301, %v1289
        %1551 = vrot.lane.b32.xlu0 %v1272, 45
        %v1552 = vpop.permute.xlu0 %1551
        %1553 = vrot.lane.b32.xlu0 %v1273, 45
        %v1554 = vpop.permute.xlu0 %1553
        %vm1555 = vcmp.lt.s32.totalorder %v496, 45
        %v1556 = vsel %vm1555, %v1552, %v1554
        %v1557 = vsel %vm1555, %v1554, %v1552
        %v1558 = vmul.f32 %v1557, %v1549
        %v1559 = vmul.f32 %v1556, %v1550
        %s1560 = sld [smem:[#allocation7 + $0x8]]
        %v1561 = vstv %s1560
        %v1562 = vmul.f32 %v1561, %v1558
        %v1563 = vmul.f32 %v1561, %v1559
        %v1564 = vadd.f32 %v1533, %v1562
        %v1565 = vadd.f32 %v1534, %v1563
        %1566 = vrot.lane.b32.xlu0 %v1276, 45
        %v1567 = vpop.permute.xlu0 %1566
        %1568 = vrot.lane.b32.xlu0 %v1277, 45
        %v1569 = vpop.permute.xlu0 %1568
        %v1570 = vsel %vm1555, %v1567, %v1569
        %v1571 = vsel %vm1555, %v1569, %v1567
        %v1572 = vmul.f32 %v1571, %v1549
        %v1573 = vmul.f32 %v1570, %v1550
        %s1574 = sld [smem:[#allocation7 + $0x88]]
        %v1575 = vstv %s1574
        %v1576 = vmul.f32 %v1575, %v1572
        %v1577 = vmul.f32 %v1575, %v1573
        %v1578 = vadd.f32 %v1547, %v1576
        %v1579 = vadd.f32 %v1548, %v1577
        %v1580 = vmul.f32 %v1300, %v1292
        %v1581 = vmul.f32 %v1301, %v1293
        %1582 = vrot.lane.b32.xlu0 %v1272, 42
        %v1583 = vpop.permute.xlu0 %1582
        %1584 = vrot.lane.b32.xlu0 %v1273, 42
        %v1585 = vpop.permute.xlu0 %1584
        %vm1586 = vcmp.lt.s32.totalorder %v496, 42
        %v1587 = vsel %vm1586, %v1583, %v1585
        %v1588 = vsel %vm1586, %v1585, %v1583
        %v1589 = vmul.f32 %v1588, %v1580
        %v1590 = vmul.f32 %v1587, %v1581
        %s1591 = sld [smem:[#allocation7 + $0x9]]
        %v1592 = vstv %s1591
        %v1593 = vmul.f32 %v1592, %v1589
        %v1594 = vmul.f32 %v1592, %v1590
        %v1595 = vadd.f32 %v1564, %v1593
        %v1596 = vadd.f32 %v1565, %v1594
        %1597 = vrot.lane.b32.xlu0 %v1276, 42
        %v1598 = vpop.permute.xlu0 %1597
        %1599 = vrot.lane.b32.xlu0 %v1277, 42
        %v1600 = vpop.permute.xlu0 %1599
        %v1601 = vsel %vm1586, %v1598, %v1600
        %v1602 = vsel %vm1586, %v1600, %v1598
        %v1603 = vmul.f32 %v1602, %v1580
        %v1604 = vmul.f32 %v1601, %v1581
        %s1605 = sld [smem:[#allocation7 + $0x89]]
        %v1606 = vstv %s1605
        %v1607 = vmul.f32 %v1606, %v1603
        %v1608 = vmul.f32 %v1606, %v1604
        %v1609 = vadd.f32 %v1578, %v1607
        %v1610 = vadd.f32 %v1579, %v1608
        %1611 = vrot.lane.b32.xlu0 %v1272, 6
        %v1612 = vpop.permute.xlu0 %1611
        %1613 = vrot.lane.b32.xlu0 %v1273, 6
        %v1614 = vpop.permute.xlu0 %1613
        %vm1615 = vcmp.lt.s32.totalorder %v496, 6
        %v1616 = vsel %vm1615, %v1612, %v1614
        %v1617 = vsel %vm1615, %v1614, %v1612
        %v1618 = vmul.f32 %v1617, %v1280
        %v1619 = vmul.f32 %v1616, %v1281
        %s1620 = sld [smem:[#allocation7 + $0xa]]
        %v1621 = vstv %s1620
        %v1622 = vmul.f32 %v1621, %v1618
        %v1623 = vmul.f32 %v1621, %v1619
        %v1624 = vadd.f32 %v1595, %v1622
        %v1625 = vadd.f32 %v1596, %v1623
        %1626 = vrot.lane.b32.xlu0 %v1276, 6
        %v1627 = vpop.permute.xlu0 %1626
        %1628 = vrot.lane.b32.xlu0 %v1277, 6
        %v1629 = vpop.permute.xlu0 %1628
        %v1630 = vsel %vm1615, %v1627, %v1629
        %v1631 = vsel %vm1615, %v1629, %v1627
        %v1632 = vmul.f32 %v1631, %v1280
        %v1633 = vmul.f32 %v1630, %v1281
        %s1634 = sld [smem:[#allocation7 + $0x8a]]
        %v1635 = vstv %s1634
        %v1636 = vmul.f32 %v1635, %v1632
        %v1637 = vmul.f32 %v1635, %v1633
        %v1638 = vadd.f32 %v1609, %v1636
        %v1639 = vadd.f32 %v1610, %v1637
        %1640 = vrot.lane.b32.xlu0 %v1272, 3
        %v1641 = vpop.permute.xlu0 %1640
        %1642 = vrot.lane.b32.xlu0 %v1273, 3
        %v1643 = vpop.permute.xlu0 %1642
        %vm1644 = vcmp.lt.s32.totalorder %v496, 3
        %v1645 = vsel %vm1644, %v1641, %v1643
        %v1646 = vsel %vm1644, %v1643, %v1641
        %v1647 = vmul.f32 %v1646, %v1284
        %v1648 = vmul.f32 %v1645, %v1285
        %s1649 = sld [smem:[#allocation7 + $0xb]]
        %v1650 = vstv %s1649
        %v1651 = vmul.f32 %v1650, %v1647
        %v1652 = vmul.f32 %v1650, %v1648
        %v1653 = vadd.f32 %v1624, %v1651
        %v1654 = vadd.f32 %v1625, %v1652
        %1655 = vrot.lane.b32.xlu0 %v1276, 3
        %v1656 = vpop.permute.xlu0 %1655
        %1657 = vrot.lane.b32.xlu0 %v1277, 3
        %v1658 = vpop.permute.xlu0 %1657
        %v1659 = vsel %vm1644, %v1656, %v1658
        %v1660 = vsel %vm1644, %v1658, %v1656
        %v1661 = vmul.f32 %v1660, %v1284
        %v1662 = vmul.f32 %v1659, %v1285
        %s1663 = sld [smem:[#allocation7 + $0x8b]]
        %v1664 = vstv %s1663
        %v1665 = vmul.f32 %v1664, %v1661
        %v1666 = vmul.f32 %v1664, %v1662
        %v1667 = vadd.f32 %v1638, %v1665
        %v1668 = vadd.f32 %v1639, %v1666
        %s1669 = sld [smem:[#allocation7 + $0xc]]
        %v1670 = vstv %s1669
        %v1671 = vmul.f32 %v1670, %v1272
        %v1672 = vmul.f32 %v1670, %v1273
        %v1673 = vadd.f32 %v1653, %v1671
        %v1674 = vadd.f32 %v1654, %v1672
        %s1675 = sld [smem:[#allocation7 + $0x8c]]
        %v1676 = vstv %s1675
        %v1677 = vmul.f32 %v1676, %v1276
        %v1678 = vmul.f32 %v1676, %v1277
        %v1679 = vadd.f32 %v1667, %v1677
        %v1680 = vadd.f32 %v1668, %v1678
        %1681 = vrot.lane.b32.xlu0 %v1272, 125
        %v1682 = vpop.permute.xlu0 %1681
        %1683 = vrot.lane.b32.xlu0 %v1273, 125
        %v1684 = vpop.permute.xlu0 %1683
        %vm1685 = vcmp.lt.s32.totalorder %v496, 125
        %v1686 = vsel %vm1685, %v1682, %v1684
        %v1687 = vsel %vm1685, %v1684, %v1682
        %v1688 = vmul.f32 %v1686, %v1288
        %v1689 = vmul.f32 %v1687, %v1289
        %s1690 = sld [smem:[#allocation7 + $0xd]]
        %v1691 = vstv %s1690
        %v1692 = vmul.f32 %v1691, %v1688
        %v1693 = vmul.f32 %v1691, %v1689
        %v1694 = vadd.f32 %v1673, %v1692
        %v1695 = vadd.f32 %v1674, %v1693
        %1696 = vrot.lane.b32.xlu0 %v1276, 125
        %v1697 = vpop.permute.xlu0 %1696
        %1698 = vrot.lane.b32.xlu0 %v1277, 125
        %v1699 = vpop.permute.xlu0 %1698
        %v1700 = vsel %vm1685, %v1697, %v1699
        %v1701 = vsel %vm1685, %v1699, %v1697
        %v1702 = vmul.f32 %v1700, %v1288
        %v1703 = vmul.f32 %v1701, %v1289
        %s1704 = sld [smem:[#allocation7 + $0x8d]]
        %v1705 = vstv %s1704
        %v1706 = vmul.f32 %v1705, %v1702
        %v1707 = vmul.f32 %v1705, %v1703
        %v1708 = vadd.f32 %v1679, %v1706
        %v1709 = vadd.f32 %v1680, %v1707
        %1710 = vrot.lane.b32.xlu0 %v1272, 122
        %v1711 = vpop.permute.xlu0 %1710
        %1712 = vrot.lane.b32.xlu0 %v1273, 122
        %v1713 = vpop.permute.xlu0 %1712
        %vm1714 = vcmp.lt.s32.totalorder %v496, 122
        %v1715 = vsel %vm1714, %v1711, %v1713
        %v1716 = vsel %vm1714, %v1713, %v1711
        %v1717 = vmul.f32 %v1715, %v1292
        %v1718 = vmul.f32 %v1716, %v1293
        %s1719 = sld [smem:[#allocation7 + $0xe]]
        %v1720 = vstv %s1719
        %v1721 = vmul.f32 %v1720, %v1717
        %v1722 = vmul.f32 %v1720, %v1718
        %v1723 = vadd.f32 %v1694, %v1721
        %v1724 = vadd.f32 %v1695, %v1722
        %1725 = vrot.lane.b32.xlu0 %v1276, 122
        %v1726 = vpop.permute.xlu0 %1725
        %1727 = vrot.lane.b32.xlu0 %v1277, 122
        %v1728 = vpop.permute.xlu0 %1727
        %v1729 = vsel %vm1714, %v1726, %v1728
        %v1730 = vsel %vm1714, %v1728, %v1726
        %v1731 = vmul.f32 %v1729, %v1292
        %v1732 = vmul.f32 %v1730, %v1293
        %s1733 = sld [smem:[#allocation7 + $0x8e]]
        %v1734 = vstv %s1733
        %v1735 = vmul.f32 %v1734, %v1731
        %v1736 = vmul.f32 %v1734, %v1732
        %v1737 = vadd.f32 %v1708, %v1735
        %v1738 = vadd.f32 %v1709, %v1736
        %v1739 = vmul.f32 %v1304, %v1280
        %v1740 = vmul.f32 %v1305, %v1281
        %1741 = vrot.lane.b32.xlu0 %v1272, 86
        %v1742 = vpop.permute.xlu0 %1741
        %1743 = vrot.lane.b32.xlu0 %v1273, 86
        %v1744 = vpop.permute.xlu0 %1743
        %vm1745 = vcmp.lt.s32.totalorder %v496, 86
        %v1746 = vsel %vm1745, %v1742, %v1744
        %v1747 = vsel %vm1745, %v1744, %v1742
        %v1748 = vmul.f32 %v1746, %v1739
        %v1749 = vmul.f32 %v1747, %v1740
        %s1750 = sld [smem:[#allocation7 + $0xf]]
        %v1751 = vstv %s1750
        %v1752 = vmul.f32 %v1751, %v1748
        %v1753 = vmul.f32 %v1751, %v1749
        %v1754 = vadd.f32 %v1723, %v1752
        %v1755 = vadd.f32 %v1724, %v1753
        %1756 = vrot.lane.b32.xlu0 %v1276, 86
        %v1757 = vpop.permute.xlu0 %1756
        %1758 = vrot.lane.b32.xlu0 %v1277, 86
        %v1759 = vpop.permute.xlu0 %1758
        %v1760 = vsel %vm1745, %v1757, %v1759
        %v1761 = vsel %vm1745, %v1759, %v1757
        %v1762 = vmul.f32 %v1760, %v1739
        %v1763 = vmul.f32 %v1761, %v1740
        %s1764 = sld [smem:[#allocation7 + $0x8f]]
        %v1765 = vstv %s1764
        %v1766 = vmul.f32 %v1765, %v1762
        %v1767 = vmul.f32 %v1765, %v1763
        %v1768 = vadd.f32 %v1737, %v1766
        %v1769 = vadd.f32 %v1738, %v1767
        %v1770 = vmul.f32 %v1304, %v1284
        %v1771 = vmul.f32 %v1305, %v1285
        %1772 = vrot.lane.b32.xlu0 %v1272, 83
        %v1773 = vpop.permute.xlu0 %1772
        %1774 = vrot.lane.b32.xlu0 %v1273, 83
        %v1775 = vpop.permute.xlu0 %1774
        %vm1776 = vcmp.lt.s32.totalorder %v496, 83
        %v1777 = vsel %vm1776, %v1773, %v1775
        %v1778 = vsel %vm1776, %v1775, %v1773
        %v1779 = vmul.f32 %v1777, %v1770
        %v1780 = vmul.f32 %v1778, %v1771
        %s1781 = sld [smem:[#allocation7 + $0x10]]
        %v1782 = vstv %s1781
        %v1783 = vmul.f32 %v1782, %v1779
        %v1784 = vmul.f32 %v1782, %v1780
        %v1785 = vadd.f32 %v1754, %v1783
        %v1786 = vadd.f32 %v1755, %v1784
        %1787 = vrot.lane.b32.xlu0 %v1276, 83
        %v1788 = vpop.permute.xlu0 %1787
        %1789 = vrot.lane.b32.xlu0 %v1277, 83
        %v1790 = vpop.permute.xlu0 %1789
        %v1791 = vsel %vm1776, %v1788, %v1790
        %v1792 = vsel %vm1776, %v1790, %v1788
        %v1793 = vmul.f32 %v1791, %v1770
        %v1794 = vmul.f32 %v1792, %v1771
        %s1795 = sld [smem:[#allocation7 + $0x90]]
        %v1796 = vstv %s1795
        %v1797 = vmul.f32 %v1796, %v1793
        %v1798 = vmul.f32 %v1796, %v1794
        %v1799 = vadd.f32 %v1768, %v1797
        %v1800 = vadd.f32 %v1769, %v1798
        %1801 = vrot.lane.b32.xlu0 %v1272, 80
        %v1802 = vpop.permute.xlu0 %1801
        %1803 = vrot.lane.b32.xlu0 %v1273, 80
        %v1804 = vpop.permute.xlu0 %1803
        %vm1805 = vcmp.lt.s32.totalorder %v496, 80
        %v1806 = vsel %vm1805, %v1802, %v1804
        %v1807 = vsel %vm1805, %v1804, %v1802
        %v1808 = vmul.f32 %v1806, %v1304
        %v1809 = vmul.f32 %v1807, %v1305
        %s1810 = sld [smem:[#allocation7 + $0x11]]
        %v1811 = vstv %s1810
        %v1812 = vmul.f32 %v1811, %v1808
        %v1813 = vmul.f32 %v1811, %v1809
        %v1814 = vadd.f32 %v1785, %v1812
        %v1815 = vadd.f32 %v1786, %v1813
        %1816 = vrot.lane.b32.xlu0 %v1276, 80
        %v1817 = vpop.permute.xlu0 %1816
        %1818 = vrot.lane.b32.xlu0 %v1277, 80
        %v1819 = vpop.permute.xlu0 %1818
        %v1820 = vsel %vm1805, %v1817, %v1819
        %v1821 = vsel %vm1805, %v1819, %v1817
        %v1822 = vmul.f32 %v1820, %v1304
        %v1823 = vmul.f32 %v1821, %v1305
        %s1824 = sld [smem:[#allocation7 + $0x91]]
        %v1825 = vstv %s1824
        %v1826 = vmul.f32 %v1825, %v1822
        %v1827 = vmul.f32 %v1825, %v1823
        %v1828 = vadd.f32 %v1799, %v1826
        %v1829 = vadd.f32 %v1800, %v1827
        %v1830 = vmul.f32 %v1304, %v1288
        %v1831 = vmul.f32 %v1305, %v1289
        %1832 = vrot.lane.b32.xlu0 %v1272, 77
        %v1833 = vpop.permute.xlu0 %1832
        %1834 = vrot.lane.b32.xlu0 %v1273, 77
        %v1835 = vpop.permute.xlu0 %1834
        %vm1836 = vcmp.lt.s32.totalorder %v496, 77
        %v1837 = vsel %vm1836, %v1833, %v1835
        %v1838 = vsel %vm1836, %v1835, %v1833
        %v1839 = vmul.f32 %v1837, %v1830
        %v1840 = vmul.f32 %v1838, %v1831
        %s1841 = sld [smem:[#allocation7 + $0x12]]
        %v1842 = vstv %s1841
        %v1843 = vmul.f32 %v1842, %v1839
        %v1844 = vmul.f32 %v1842, %v1840
        %v1845 = vadd.f32 %v1814, %v1843
        %v1846 = vadd.f32 %v1815, %v1844
        %1847 = vrot.lane.b32.xlu0 %v1276, 77
        %v1848 = vpop.permute.xlu0 %1847
        %1849 = vrot.lane.b32.xlu0 %v1277, 77
        %v1850 = vpop.permute.xlu0 %1849
        %v1851 = vsel %vm1836, %v1848, %v1850
        %v1852 = vsel %vm1836, %v1850, %v1848
        %v1853 = vmul.f32 %v1851, %v1830
        %v1854 = vmul.f32 %v1852, %v1831
        %s1855 = sld [smem:[#allocation7 + $0x92]]
        %v1856 = vstv %s1855
        %v1857 = vmul.f32 %v1856, %v1853
        %v1858 = vmul.f32 %v1856, %v1854
        %v1859 = vadd.f32 %v1828, %v1857
        %v1860 = vadd.f32 %v1829, %v1858
        %v1861 = vmul.f32 %v1304, %v1292
        %v1862 = vmul.f32 %v1305, %v1293
        %1863 = vrot.lane.b32.xlu0 %v1272, 74
        %v1864 = vpop.permute.xlu0 %1863
        %1865 = vrot.lane.b32.xlu0 %v1273, 74
        %v1866 = vpop.permute.xlu0 %1865
        %vm1867 = vcmp.lt.s32.totalorder %v496, 74
        %v1868 = vsel %vm1867, %v1864, %v1866
        %v1869 = vsel %vm1867, %v1866, %v1864
        %v1870 = vmul.f32 %v1868, %v1861
        %v1871 = vmul.f32 %v1869, %v1862
        %s1872 = sld [smem:[#allocation7 + $0x13]]
        %v1873 = vstv %s1872
        %v1874 = vmul.f32 %v1873, %v1870
        %v1875 = vmul.f32 %v1873, %v1871
        %v1876 = vadd.f32 %v1845, %v1874
        %v1877 = vadd.f32 %v1846, %v1875
        %1878 = vrot.lane.b32.xlu0 %v1276, 74
        %v1879 = vpop.permute.xlu0 %1878
        %1880 = vrot.lane.b32.xlu0 %v1277, 74
        %v1881 = vpop.permute.xlu0 %1880
        %v1882 = vsel %vm1867, %v1879, %v1881
        %v1883 = vsel %vm1867, %v1881, %v1879
        %v1884 = vmul.f32 %v1882, %v1861
        %v1885 = vmul.f32 %v1883, %v1862
        %s1886 = sld [smem:[#allocation7 + $0x93]]
        %v1887 = vstv %s1886
        %v1888 = vmul.f32 %v1887, %v1884
        %v1889 = vmul.f32 %v1887, %v1885
        %v1890 = vadd.f32 %v1859, %v1888
        %v1891 = vadd.f32 %v1860, %v1889
        %v1892 = vmul.f32 %v1308, %v1280
        %v1893 = vmul.f32 %v1309, %v1281
        %1894 = vrot.lane.b32.xlu0 %v1272, 38
        %v1895 = vpop.permute.xlu0 %1894
        %1896 = vrot.lane.b32.xlu0 %v1273, 38
        %v1897 = vpop.permute.xlu0 %1896
        %vm1898 = vcmp.lt.s32.totalorder %v496, 38
        %v1899 = vsel %vm1898, %v1895, %v1897
        %v1900 = vsel %vm1898, %v1897, %v1895
        %v1901 = vmul.f32 %v1899, %v1892
        %v1902 = vmul.f32 %v1900, %v1893
        %s1903 = sld [smem:[#allocation7 + $0x14]]
        %v1904 = vstv %s1903
        %v1905 = vmul.f32 %v1904, %v1901
        %v1906 = vmul.f32 %v1904, %v1902
        %v1907 = vadd.f32 %v1876, %v1905
        %v1908 = vadd.f32 %v1877, %v1906
        %1909 = vrot.lane.b32.xlu0 %v1276, 38
        %v1910 = vpop.permute.xlu0 %1909
        %1911 = vrot.lane.b32.xlu0 %v1277, 38
        %v1912 = vpop.permute.xlu0 %1911
        %v1913 = vsel %vm1898, %v1910, %v1912
        %v1914 = vsel %vm1898, %v1912, %v1910
        %v1915 = vmul.f32 %v1913, %v1892
        %v1916 = vmul.f32 %v1914, %v1893
        %s1917 = sld [smem:[#allocation7 + $0x94]]
        %v1918 = vstv %s1917
        %v1919 = vmul.f32 %v1918, %v1915
        %v1920 = vmul.f32 %v1918, %v1916
        %v1921 = vadd.f32 %v1890, %v1919
        %v1922 = vadd.f32 %v1891, %v1920
        %v1923 = vmul.f32 %v1308, %v1284
        %v1924 = vmul.f32 %v1309, %v1285
        %1925 = vrot.lane.b32.xlu0 %v1272, 35
        %v1926 = vpop.permute.xlu0 %1925
        %1927 = vrot.lane.b32.xlu0 %v1273, 35
        %v1928 = vpop.permute.xlu0 %1927
        %vm1929 = vcmp.lt.s32.totalorder %v496, 35
        %v1930 = vsel %vm1929, %v1926, %v1928
        %v1931 = vsel %vm1929, %v1928, %v1926
        %v1932 = vmul.f32 %v1930, %v1923
        %v1933 = vmul.f32 %v1931, %v1924
        %s1934 = sld [smem:[#allocation7 + $0x15]]
        %v1935 = vstv %s1934
        %v1936 = vmul.f32 %v1935, %v1932
        %v1937 = vmul.f32 %v1935, %v1933
        %v1938 = vadd.f32 %v1907, %v1936
        %v1939 = vadd.f32 %v1908, %v1937
        %1940 = vrot.lane.b32.xlu0 %v1276, 35
        %v1941 = vpop.permute.xlu0 %1940
        %1942 = vrot.lane.b32.xlu0 %v1277, 35
        %v1943 = vpop.permute.xlu0 %1942
        %v1944 = vsel %vm1929, %v1941, %v1943
        %v1945 = vsel %vm1929, %v1943, %v1941
        %v1946 = vmul.f32 %v1944, %v1923
        %v1947 = vmul.f32 %v1945, %v1924
        %s1948 = sld [smem:[#allocation7 + $0x95]]
        %v1949 = vstv %s1948
        %v1950 = vmul.f32 %v1949, %v1946
        %v1951 = vmul.f32 %v1949, %v1947
        %v1952 = vadd.f32 %v1921, %v1950
        %v1953 = vadd.f32 %v1922, %v1951
        %1954 = vrot.lane.b32.xlu0 %v1272, 32
        %v1955 = vpop.permute.xlu0 %1954
        %1956 = vrot.lane.b32.xlu0 %v1273, 32
        %v1957 = vpop.permute.xlu0 %1956
        %v1958 = vsel %vm596, %v1955, %v1957
        %v1959 = vsel %vm596, %v1957, %v1955
        %v1960 = vmul.f32 %v1958, %v1308
        %v1961 = vmul.f32 %v1959, %v1309
        %s1962 = sld [smem:[#allocation7 + $0x16]]
        %v1963 = vstv %s1962
        %v1964 = vmul.f32 %v1963, %v1960
        %v1965 = vmul.f32 %v1963, %v1961
        %v1966 = vadd.f32 %v1938, %v1964
        %v1967 = vadd.f32 %v1939, %v1965
        %1968 = vrot.lane.b32.xlu0 %v1276, 32
        %v1969 = vpop.permute.xlu0 %1968
        %1970 = vrot.lane.b32.xlu0 %v1277, 32
        %v1971 = vpop.permute.xlu0 %1970
        %v1972 = vsel %vm596, %v1969, %v1971
        %v1973 = vsel %vm596, %v1971, %v1969
        %v1974 = vmul.f32 %v1972, %v1308
        %v1975 = vmul.f32 %v1973, %v1309
        %s1976 = sld [smem:[#allocation7 + $0x96]]
        %v1977 = vstv %s1976
        %v1978 = vmul.f32 %v1977, %v1974
        %v1979 = vmul.f32 %v1977, %v1975
        %v1980 = vadd.f32 %v1952, %v1978
        %v1981 = vadd.f32 %v1953, %v1979
        %v1982 = vmul.f32 %v1308, %v1288
        %v1983 = vmul.f32 %v1309, %v1289
        %1984 = vrot.lane.b32.xlu0 %v1272, 29
        %v1985 = vpop.permute.xlu0 %1984
        %1986 = vrot.lane.b32.xlu0 %v1273, 29
        %v1987 = vpop.permute.xlu0 %1986
        %vm1988 = vcmp.lt.s32.totalorder %v496, 29
        %v1989 = vsel %vm1988, %v1985, %v1987
        %v1990 = vsel %vm1988, %v1987, %v1985
        %v1991 = vmul.f32 %v1989, %v1982
        %v1992 = vmul.f32 %v1990, %v1983
        %s1993 = sld [smem:[#allocation7 + $0x17]]
        %v1994 = vstv %s1993
        %v1995 = vmul.f32 %v1994, %v1991
        %v1996 = vmul.f32 %v1994, %v1992
        %v1997 = vadd.f32 %v1966, %v1995
        %v1998 = vadd.f32 %v1967, %v1996
        %1999 = vrot.lane.b32.xlu0 %v1276, 29
        %v2000 = vpop.permute.xlu0 %1999
        %2001 = vrot.lane.b32.xlu0 %v1277, 29
        %v2002 = vpop.permute.xlu0 %2001
        %v2003 = vsel %vm1988, %v2000, %v2002
        %v2004 = vsel %vm1988, %v2002, %v2000
        %v2005 = vmul.f32 %v2003, %v1982
        %v2006 = vmul.f32 %v2004, %v1983
        %s2007 = sld [smem:[#allocation7 + $0x97]]
        %v2008 = vstv %s2007
        %v2009 = vmul.f32 %v2008, %v2005
        %v2010 = vmul.f32 %v2008, %v2006
        %v2011 = vadd.f32 %v1980, %v2009
        %v2012 = vadd.f32 %v1981, %v2010
        %v2013 = vmul.f32 %v1308, %v1292
        %v2014 = vmul.f32 %v1309, %v1293
        %2015 = vrot.lane.b32.xlu0 %v1272, 26
        %v2016 = vpop.permute.xlu0 %2015
        %2017 = vrot.lane.b32.xlu0 %v1273, 26
        %v2018 = vpop.permute.xlu0 %2017
        %vm2019 = vcmp.lt.s32.totalorder %v496, 26
        %v2020 = vsel %vm2019, %v2016, %v2018
        %v2021 = vsel %vm2019, %v2018, %v2016
        %v2022 = vmul.f32 %v2020, %v2013
        %v2023 = vmul.f32 %v2021, %v2014
        %s2024 = sld [smem:[#allocation7 + $0x18]]
        %v2025 = vstv %s2024
        %v2026 = vmul.f32 %v2025, %v2022
        %v2027 = vmul.f32 %v2025, %v2023
        %v2028 = vadd.f32 %v1997, %v2026
        %v2029 = vadd.f32 %v1998, %v2027
        %2030 = vrot.lane.b32.xlu0 %v1276, 26
        %v2031 = vpop.permute.xlu0 %2030
        %2032 = vrot.lane.b32.xlu0 %v1277, 26
        %v2033 = vpop.permute.xlu0 %2032
        %v2034 = vsel %vm2019, %v2031, %v2033
        %v2035 = vsel %vm2019, %v2033, %v2031
        %v2036 = vmul.f32 %v2034, %v2013
        %v2037 = vmul.f32 %v2035, %v2014
        %s2038 = sld [smem:[#allocation7 + $0x98]]
        %v2039 = vstv %s2038
        %v2040 = vmul.f32 %v2039, %v2036
        %v2041 = vmul.f32 %v2039, %v2037
        %v2042 = vadd.f32 %v2011, %v2040
        %v2043 = vadd.f32 %v2012, %v2041
        %s2044 = sld [smem:[#allocation8]]
        %v2045 = vstv %s2044
        %v2046 = vadd.f32 %v2028, %v2045
        %v2047 = vadd.f32 %v2029, %v2045
        %s2048 = sld [smem:[#allocation8 + $0x1]]
        %v2049 = vstv %s2048
        %v2050 = vadd.f32 %v2042, %v2049
        %v2051 = vadd.f32 %v2043, %v2049
        %s2052 = sld [smem:[#allocation10]]
        %v2053 = vstv %s2052
        %v2054 = vmul.f32 %v2053, %v2046
        %v2055 = vmul.f32 %v2053, %v2047
        %s2056 = sld [smem:[#allocation10 + $0x1]]
        %v2057 = vstv %s2056
        %v2058 = vmul.f32 %v2057, %v2050
        %v2059 = vmul.f32 %v2057, %v2051
        %v2060 = vadd.f32 %v2054, %v2058
        %v2061 = vadd.f32 %v2055, %v2059
        %s2062 = sld [smem:[#allocation2]]
        %v2063 = vstv %s2062
        %v2064 = vadd.f32 %v2060, %v2063
        %v2065 = vadd.f32 %v2061, %v2063
        %v2066 = vlaneseq
        %v2067 = vshrl.u32 %v2066, 7
        %v2068 = vsub.s32 0, %v2067
        %v2069 = vrot.slane %v2064, %v2068
        %v2070 = vlaneseq
        %v2071 = vshrl.u32 %v2070, 7
        %v2072 = vsub.s32 0, %v2071
        %v2073 = vrot.slane %v2065, %v2072
        %v2074 = vmul.f32 %v2069, %v460
        %v2075 = vmul.f32 %v2073, %v462
        %v2078 = vcombine.low %v2074, %v2075
        %2080 = vst [vmem:[%s397] sm:$0xff] %v2078
        %p2081 = scmp.lt.s32.totalorder %s24, 1
        %s2082 = scalar_select %p2081, %s24, 1
        %s2083 = smul.addr %s2082, 2
        %s2084 = smul.addr %s2083, 4
        %s2085 = scalar_lea.vmem %s9, %s2084
        // Predicated region
        $region77: #{csa_forward.1} parent=55 // pred_check
          %p2086 = pneg %p236
        $region78: #{csa_forward.1} parent=55 // pred_check_branch
          %2088 = sbr.rel (%p2086) target = $region80
        $region79: #{csa_forward.1} parent=55 // pred_region
          _
        $region80: #{csa_forward.1} parent=55 // pred_fallthru
          _
      $region56: #{csa_forward.1} parent=5 // pred_fallthru
        _
      %p2089 = scmp.le.s32.totalorder 2, %s19
      // Predicated region
      $region81: #{csa_forward.1} parent=5 // pred_check
        %p2090 = pneg %p2089
      $region82: #{csa_forward.1} parent=5 // pred_check_branch
        %2092 = sbr.rel (%p2090) target = $region84
      $region83: #{csa_forward.1} parent=5 // pred_region
        %s2093 = ssub.s32 %s19, 2
        // Predicated region
        $region85: #{csa_forward.1} parent=83 // pred_check
          %p2094 = pneg %p242
        $region86: #{csa_forward.1} parent=83 // pred_check_branch
          %2096 = sbr.rel (%p2094) target = $region88
        $region87: #{csa_forward.1} parent=83 // pred_region
          %p2097 = scmp.lt.s32.totalorder %s25, 1
          %s2098 = scalar_select %p2097, %s25, 1
          %s2099 = smul.addr %s2098, 2
          %s2100 = smul.addr %s2099, 4
          %s2101 = scalar_lea.vmem %s9, %s2100
        $region88: #{csa_forward.1} parent=83 // pred_fallthru
          _
      $region84: #{csa_forward.1} parent=5 // pred_fallthru
        _
    $region6: #{csa_forward.1} parent=1 // loop_footer
      %s23 = sadd.s32 1, %s19
    $region7: #{csa_forward.1} parent=1 // loop_footer_branch
      %18 = sbr.rel target = $region3
    $region8: #{csa_forward.1} parent=1 // loop_exit
      _
    %2102 = vsyncpa [#allocation4], 1
    %s2103 = scalar_lea.sflag [#allocation4], 1
    %2104 = vsyncpa %s2103, 1
    %2105 = vsyncpa [#allocation6], 1
    %2106 = vsyncpa [#allocation9], 1

</llo_original>
